<compile_context>
chip_gen: v7x
topology: tpu7x:2x2x1
jax: 0.10.0
libtpu: 0.0.40
codegen_flags: <defaults>
</compile_context>

<pallas_src>
import functools

import jax
import jax.numpy as jnp
from jax.experimental import pallas as pl
from jax.experimental.pallas import tpu as pltpu


def local_attention_kernel(x_ref, wqkv_ref, bq_ref, wo_ref, bo_ref, out_ref,
                           *, num_heads):
    # x_ref:    (TS, B, E)   seq-tile, batch(=attention axis), embed
    # wqkv_ref: (E, 3E)      Q columns pre-scaled by 1/sqrt(Dh)
    # bq_ref:   (1, E)       Q bias, pre-scaled (K bias dropped, V bias folded into bo)
    # wo_ref:   (E, E)       bo_ref:  (1, E)  effective output bias (bo + bv @ Wo)
    x = x_ref[...]
    in_dtype = x.dtype
    TS, B, E = x.shape
    Dh = E // num_heads

    # Fused QKV projection: single contraction over E, f32 accumulation on MXU.
    qkv = jnp.einsum("sbe,ef->sbf", x, wqkv_ref[...],
                     preferred_element_type=jnp.float32)          # (TS, B, 3E)
    q = (qkv[..., :E]
         + bq_ref[...].reshape(1, 1, E).astype(jnp.float32)).astype(in_dtype)
    k = qkv[..., E:2 * E].astype(in_dtype)                        # no bias needed
    v = qkv[..., 2 * E:].astype(in_dtype)                         # bias folded into bo

    wo = wo_ref[...]
    acc = jnp.zeros((TS, B, E), jnp.float32)
    for h in range(num_heads):            # static unroll; temps die every iteration
        lo, hi = h * Dh, (h + 1) * Dh
        qh, kh, vh = q[..., lo:hi], k[..., lo:hi], v[..., lo:hi]      # (TS, B, Dh)
        s = jnp.einsum("sbd,scd->sbc", qh, kh,
                       preferred_element_type=jnp.float32)            # (TS, B, B)
        s = s - jnp.max(s, axis=-1, keepdims=True)
        p = jnp.exp(s)
        p = p * pl.reciprocal(jnp.sum(p, axis=-1, keepdims=True), approx=True)
        oh = jnp.einsum("sbc,scd->sbd", p.astype(in_dtype), vh,
                        preferred_element_type=jnp.float32)           # (TS, B, Dh)
        # Accumulate through the output projection: acc += oh @ Wo[lo:hi, :]
        acc = acc + jnp.einsum("sbd,de->sbe", oh.astype(in_dtype), wo[lo:hi, :],
                               preferred_element_type=jnp.float32)
    out = acc + bo_ref[...].reshape(1, 1, E).astype(jnp.float32)
    out_ref[...] = out.astype(out_ref.dtype)


def _choose_seq_tile(S, B, E, requested, vmem_budget_bytes=8 * 1024 * 1024):
    """Largest divisor of S that is <= requested and keeps per-tile f32 temps small."""
    cap = min(requested if requested is not None else S, S)
    best = 1
    for ts in range(1, cap + 1):
        if S % ts:
            continue
        # rough f32 footprint: x/out tile + qkv + per-head scores
        est = 4 * ts * B * (2 * E + 3 * E + B)
        if est <= vmem_budget_bytes:
            best = ts
    return best


def local_attention(x, params, *, num_heads, window_size, seq_tile=128):
    """x: (batch, seq, embed) -> (batch, seq, embed), matching the PyTorch module."""
    del window_size  # output is invariant to the window grouping (see header note)
    B, S, E = x.shape
    Dh = E // num_heads
    scale = 1.0 / jnp.sqrt(jnp.float32(Dh))

    # One-time weight prep (outside the hot path):
    wqkv = jnp.transpose(params["in_proj_weight"])           # (E, 3E)
    wqkv = wqkv.at[:, :E].multiply(scale)                    # fold softmax scale into Q
    bq = (params["in_proj_bias"][:E] * scale).reshape(1, E)  # scaled Q bias only
    bv = params["in_proj_bias"][2 * E:]                      # V bias, folded below
    wo = jnp.transpose(params["out_proj_weight"])            # (E, E)
    bo = (params["out_proj_bias"] + bv @ wo).reshape(1, E)   # effective output bias

    # Seq-leading layout so the per-column attention batch axis leads every
    # in-kernel einsum (outer-dims-only transpose, done once outside the kernel).
    # TODO(synk): fold this transpose into the producer/consumer layout when the
    # kernel is embedded in a larger graph to avoid the extra HBM round trip.
    x_t = jnp.transpose(x, (1, 0, 2))                        # (S, B, E)

    ts = _choose_seq_tile(S, B, E, seq_tile)
    grid = (S // ts,)

    flops = 2 * S * B * (3 * E * E + 2 * B * E + E * E)
    bytes_accessed = 2 * S * B * E * x.dtype.itemsize + (4 * E * E + 2 * E) * 4
    cost = pl.CostEstimate(flops=flops, transcendentals=S * B * B,
                           bytes_accessed=bytes_accessed)

    kernel = functools.partial(local_attention_kernel, num_heads=num_heads)
    out_t = pl.pallas_call(
        kernel,
        out_shape=jax.ShapeDtypeStruct((S, B, E), x.dtype),
        grid=grid,
        in_specs=[
            pl.BlockSpec((ts, B, E), lambda i: (i, 0, 0)),   # streamed over S
            pl.BlockSpec((E, 3 * E), lambda i: (0, 0)),      # VMEM-resident weights
            pl.BlockSpec((1, E), lambda i: (0, 0)),
            pl.BlockSpec((E, E), lambda i: (0, 0)),
            pl.BlockSpec((1, E), lambda i: (0, 0)),
        ],
        out_specs=pl.BlockSpec((ts, B, E), lambda i: (i, 0, 0)),
        compiler_params=pltpu.CompilerParams(
            dimension_semantics=("parallel",),
            vmem_limit_bytes=32 * 1024 * 1024,
        ),
        cost_estimate=cost,
    )(x_t, wqkv, bq, wo, bo)
    return jnp.transpose(out_t, (1, 0, 2))                   # back to (B, S, E)


def _reference(x, params, *, num_heads):
    """Pure-JAX reference of the same semantics (sanity check)."""
    B, S, E = x.shape
    Dh = E // num_heads
    qkv = jnp.einsum("bse,fe->bsf", x, params["in_proj_weight"]) + params["in_proj_bias"]
    q, k, v = qkv[..., :E], qkv[..., E:2 * E], qkv[..., 2 * E:]
    q = q * (1.0 / jnp.sqrt(jnp.float32(Dh)))
    q = q.reshape(B, S, num_heads, Dh)
    k = k.reshape(B, S, num_heads, Dh)
    v = v.reshape(B, S, num_heads, Dh)
    scores = jnp.einsum("bshd,cshd->shbc", q, k)
    p = jax.nn.softmax(scores, axis=-1)
    o = jnp.einsum("shbc,cshd->bshd", p, v).reshape(B, S, E)
    return jnp.einsum("bse,fe->bsf", o, params["out_proj_weight"]) + params["out_proj_bias"]


if __name__ == "__main__":
    B, S, E, H, W = 2, 8, 32, 4, 4  # batch, seq, embed, heads, window_size
    key = jax.random.PRNGKey(0)
    kx, k1, k2, k3, k4 = jax.random.split(key, 5)

    x = jax.random.normal(kx, (B, S, E), dtype=jnp.float32)
    params = {
        # nn.MultiheadAttention parameter shapes: in_proj (3E, E) + (3E,),
        # out_proj Linear(E, E): weight (E, E) + bias (E,).
        "in_proj_weight": jax.random.normal(k1, (3 * E, E), jnp.float32) / jnp.sqrt(E),
        "in_proj_bias": jax.random.normal(k2, (3 * E,), jnp.float32) * 0.01,
        "out_proj_weight": jax.random.normal(k3, (E, E), jnp.float32) / jnp.sqrt(E),
        "out_proj_bias": jax.random.normal(k4, (E,), jnp.float32) * 0.01,
    }

    # seq_tile=4 -> grid=(2,): exercises the streamed/pipelined path even at toy size.
    out = local_attention(x, params, num_heads=H, window_size=W, seq_tile=4)
    out = jax.block_until_ready(out)

    ref = _reference(x, params, num_heads=H)
    assert out.shape == (B, S, E)
    assert jnp.allclose(out, ref, rtol=2e-2, atol=2e-2)

    print("KERNEL_OK")
</pallas_src>

<mosaic_0001>
module attributes {stable_mosaic.version = 11 : i64} {
  func.func @local_attention_kernel(%arg0: i32, %arg1: memref<4x2x32xf32, #tpu.memory_space<vmem>>, %arg2: memref<32x96xf32, #tpu.memory_space<vmem>>, %arg3: memref<1x32xf32, #tpu.memory_space<vmem>>, %arg4: memref<32x32xf32, #tpu.memory_space<vmem>>, %arg5: memref<1x32xf32, #tpu.memory_space<vmem>>, %arg6: memref<4x2x32xf32, #tpu.memory_space<vmem>>) attributes {dimension_semantics = [#tpu.dimension_semantics<parallel>], iteration_bounds = array<i64: 2>, scalar_prefetch = 0 : i64, scratch_operands = 0 : i64, tpu.core_type = #tpu.core_type<tc>, window_params = [{transform_indices = @transform_0, window_bounds = array<i64: 4, 2, 32>}, {pipeline_mode = #tpu.pipeline_mode<synchronous>, transform_indices = @transform_1, window_bounds = array<i64: 32, 96>}, {pipeline_mode = #tpu.pipeline_mode<synchronous>, transform_indices = @transform_2, window_bounds = array<i64: 1, 32>}, {pipeline_mode = #tpu.pipeline_mode<synchronous>, transform_indices = @transform_3, window_bounds = array<i64: 32, 32>}, {pipeline_mode = #tpu.pipeline_mode<synchronous>, transform_indices = @transform_4, window_bounds = array<i64: 1, 32>}, {transform_indices = @transform_5, window_bounds = array<i64: 4, 2, 32>}]} {
    %c0 = arith.constant 0 : index
    %c0_0 = arith.constant 0 : index
    %c0_1 = arith.constant 0 : index
    %0 = vector.load %arg1[%c0, %c0_0, %c0_1] : memref<4x2x32xf32, #tpu.memory_space<vmem>>, vector<4x2x32xf32>
    %c0_2 = arith.constant 0 : index
    %c0_3 = arith.constant 0 : index
    %1 = vector.load %arg2[%c0_2, %c0_3] : memref<32x96xf32, #tpu.memory_space<vmem>>, vector<32x96xf32>
    "tpu.trace_start"() <{level = 10 : i32, message = "sbe,ef->sbf"}> : () -> ()
    %cst = arith.constant dense<0.000000e+00> : vector<4x2x96xf32>
    %2 = tpu.matmul %0, %1, %cst {dimension_numbers = #tpu.dot_dimension_numbers<[2], [0], [0, 1], [1], [0, 0, 0, 1, 1, 1], [], []>} : vector<4x2x32xf32>, vector<32x96xf32>, vector<4x2x96xf32> -> vector<4x2x96xf32>
    "tpu.trace_stop"() : () -> ()
    %3 = vector.extract_strided_slice %2 {offsets = [0, 0, 0], sizes = [4, 2, 32], strides = [1, 1, 1]} : vector<4x2x96xf32> to vector<4x2x32xf32>
    %c0_4 = arith.constant 0 : index
    %c0_5 = arith.constant 0 : index
    %4 = vector.load %arg3[%c0_4, %c0_5] : memref<1x32xf32, #tpu.memory_space<vmem>>, vector<1x32xf32>
    %5 = vector.shape_cast %4 : vector<1x32xf32> to vector<1x1x32xf32>
    %6 = vector.broadcast %5 : vector<1x1x32xf32> to vector<4x2x32xf32>
    %7 = arith.addf %3, %6 : vector<4x2x32xf32>
    %8 = vector.extract_strided_slice %2 {offsets = [0, 0, 32], sizes = [4, 2, 32], strides = [1, 1, 1]} : vector<4x2x96xf32> to vector<4x2x32xf32>
    %9 = vector.extract_strided_slice %2 {offsets = [0, 0, 64], sizes = [4, 2, 32], strides = [1, 1, 1]} : vector<4x2x96xf32> to vector<4x2x32xf32>
    %c0_6 = arith.constant 0 : index
    %c0_7 = arith.constant 0 : index
    %10 = vector.load %arg4[%c0_6, %c0_7] : memref<32x32xf32, #tpu.memory_space<vmem>>, vector<32x32xf32>
    %cst_8 = arith.constant 0.000000e+00 : f32
    %11 = vector.broadcast %cst_8 : f32 to vector<4x2x32xf32>
    %12 = vector.extract_strided_slice %7 {offsets = [0, 0, 0], sizes = [4, 2, 8], strides = [1, 1, 1]} : vector<4x2x32xf32> to vector<4x2x8xf32>
    %13 = vector.extract_strided_slice %8 {offsets = [0, 0, 0], sizes = [4, 2, 8], strides = [1, 1, 1]} : vector<4x2x32xf32> to vector<4x2x8xf32>
    %14 = vector.extract_strided_slice %9 {offsets = [0, 0, 0], sizes = [4, 2, 8], strides = [1, 1, 1]} : vector<4x2x32xf32> to vector<4x2x8xf32>
    "tpu.trace_start"() <{level = 10 : i32, message = "sbd,scd->sbc"}> : () -> ()
    %cst_9 = arith.constant dense<0.000000e+00> : vector<4x2x2xf32>
    %15 = tpu.matmul %12, %13, %cst_9 {dimension_numbers = #tpu.dot_dimension_numbers<[2], [2], [1], [1], [0, 0, 0, 1, 1, 1], [0], [0]>} : vector<4x2x8xf32>, vector<4x2x8xf32>, vector<4x2x2xf32> -> vector<4x2x2xf32>
    "tpu.trace_stop"() : () -> ()
    %cst_10 = arith.constant dense<0xFF800000> : vector<4x2xf32>
    %16 = vector.multi_reduction <maximumf>, %15, %cst_10 [2] : vector<4x2x2xf32> to vector<4x2xf32>
    %17 = vector.shape_cast %16 : vector<4x2xf32> to vector<4x2x1xf32>
    %18 = vector.broadcast %17 : vector<4x2x1xf32> to vector<4x2x2xf32>
    %19 = arith.subf %15, %18 : vector<4x2x2xf32>
    %20 = math.exp %19 : vector<4x2x2xf32>
    %cst_11 = arith.constant dense<0.000000e+00> : vector<4x2xf32>
    %21 = vector.multi_reduction <add>, %20, %cst_11 [2] : vector<4x2x2xf32> to vector<4x2xf32>
    %22 = vector.shape_cast %21 : vector<4x2xf32> to vector<4x2x1xf32>
    %23 = tpu.reciprocal %22 {approx = true} : vector<4x2x1xf32> -> vector<4x2x1xf32>
    %24 = vector.broadcast %23 : vector<4x2x1xf32> to vector<4x2x2xf32>
    %25 = arith.mulf %20, %24 : vector<4x2x2xf32>
    "tpu.trace_start"() <{level = 10 : i32, message = "sbc,scd->sbd"}> : () -> ()
    %cst_12 = arith.constant dense<0.000000e+00> : vector<4x2x8xf32>
    %26 = tpu.matmul %25, %14, %cst_12 {dimension_numbers = #tpu.dot_dimension_numbers<[2], [1], [1], [2], [0, 0, 0, 1, 1, 2], [0], [0]>} : vector<4x2x2xf32>, vector<4x2x8xf32>, vector<4x2x8xf32> -> vector<4x2x8xf32>
    "tpu.trace_stop"() : () -> ()
    %27 = vector.extract_strided_slice %10 {offsets = [0, 0], sizes = [8, 32], strides = [1, 1]} : vector<32x32xf32> to vector<8x32xf32>
    "tpu.trace_start"() <{level = 10 : i32, message = "sbd,de->sbe"}> : () -> ()
    %cst_13 = arith.constant dense<0.000000e+00> : vector<4x2x32xf32>
    %28 = tpu.matmul %26, %27, %cst_13 {dimension_numbers = #tpu.dot_dimension_numbers<[2], [0], [0, 1], [1], [0, 0, 0, 1, 1, 1], [], []>} : vector<4x2x8xf32>, vector<8x32xf32>, vector<4x2x32xf32> -> vector<4x2x32xf32>
    "tpu.trace_stop"() : () -> ()
    %29 = arith.addf %11, %28 : vector<4x2x32xf32>
    %30 = vector.extract_strided_slice %7 {offsets = [0, 0, 8], sizes = [4, 2, 8], strides = [1, 1, 1]} : vector<4x2x32xf32> to vector<4x2x8xf32>
    %31 = vector.extract_strided_slice %8 {offsets = [0, 0, 8], sizes = [4, 2, 8], strides = [1, 1, 1]} : vector<4x2x32xf32> to vector<4x2x8xf32>
    %32 = vector.extract_strided_slice %9 {offsets = [0, 0, 8], sizes = [4, 2, 8], strides = [1, 1, 1]} : vector<4x2x32xf32> to vector<4x2x8xf32>
    "tpu.trace_start"() <{level = 10 : i32, message = "sbd,scd->sbc"}> : () -> ()
    %cst_14 = arith.constant dense<0.000000e+00> : vector<4x2x2xf32>
    %33 = tpu.matmul %30, %31, %cst_14 {dimension_numbers = #tpu.dot_dimension_numbers<[2], [2], [1], [1], [0, 0, 0, 1, 1, 1], [0], [0]>} : vector<4x2x8xf32>, vector<4x2x8xf32>, vector<4x2x2xf32> -> vector<4x2x2xf32>
    "tpu.trace_stop"() : () -> ()
    %cst_15 = arith.constant dense<0xFF800000> : vector<4x2xf32>
    %34 = vector.multi_reduction <maximumf>, %33, %cst_15 [2] : vector<4x2x2xf32> to vector<4x2xf32>
    %35 = vector.shape_cast %34 : vector<4x2xf32> to vector<4x2x1xf32>
    %36 = vector.broadcast %35 : vector<4x2x1xf32> to vector<4x2x2xf32>
    %37 = arith.subf %33, %36 : vector<4x2x2xf32>
    %38 = math.exp %37 : vector<4x2x2xf32>
    %cst_16 = arith.constant dense<0.000000e+00> : vector<4x2xf32>
    %39 = vector.multi_reduction <add>, %38, %cst_16 [2] : vector<4x2x2xf32> to vector<4x2xf32>
    %40 = vector.shape_cast %39 : vector<4x2xf32> to vector<4x2x1xf32>
    %41 = tpu.reciprocal %40 {approx = true} : vector<4x2x1xf32> -> vector<4x2x1xf32>
    %42 = vector.broadcast %41 : vector<4x2x1xf32> to vector<4x2x2xf32>
    %43 = arith.mulf %38, %42 : vector<4x2x2xf32>
    "tpu.trace_start"() <{level = 10 : i32, message = "sbc,scd->sbd"}> : () -> ()
    %cst_17 = arith.constant dense<0.000000e+00> : vector<4x2x8xf32>
    %44 = tpu.matmul %43, %32, %cst_17 {dimension_numbers = #tpu.dot_dimension_numbers<[2], [1], [1], [2], [0, 0, 0, 1, 1, 2], [0], [0]>} : vector<4x2x2xf32>, vector<4x2x8xf32>, vector<4x2x8xf32> -> vector<4x2x8xf32>
    "tpu.trace_stop"() : () -> ()
    %45 = vector.extract_strided_slice %10 {offsets = [8, 0], sizes = [8, 32], strides = [1, 1]} : vector<32x32xf32> to vector<8x32xf32>
    "tpu.trace_start"() <{level = 10 : i32, message = "sbd,de->sbe"}> : () -> ()
    %cst_18 = arith.constant dense<0.000000e+00> : vector<4x2x32xf32>
    %46 = tpu.matmul %44, %45, %cst_18 {dimension_numbers = #tpu.dot_dimension_numbers<[2], [0], [0, 1], [1], [0, 0, 0, 1, 1, 1], [], []>} : vector<4x2x8xf32>, vector<8x32xf32>, vector<4x2x32xf32> -> vector<4x2x32xf32>
    "tpu.trace_stop"() : () -> ()
    %47 = arith.addf %29, %46 : vector<4x2x32xf32>
    %48 = vector.extract_strided_slice %7 {offsets = [0, 0, 16], sizes = [4, 2, 8], strides = [1, 1, 1]} : vector<4x2x32xf32> to vector<4x2x8xf32>
    %49 = vector.extract_strided_slice %8 {offsets = [0, 0, 16], sizes = [4, 2, 8], strides = [1, 1, 1]} : vector<4x2x32xf32> to vector<4x2x8xf32>
    %50 = vector.extract_strided_slice %9 {offsets = [0, 0, 16], sizes = [4, 2, 8], strides = [1, 1, 1]} : vector<4x2x32xf32> to vector<4x2x8xf32>
    "tpu.trace_start"() <{level = 10 : i32, message = "sbd,scd->sbc"}> : () -> ()
    %cst_19 = arith.constant dense<0.000000e+00> : vector<4x2x2xf32>
    %51 = tpu.matmul %48, %49, %cst_19 {dimension_numbers = #tpu.dot_dimension_numbers<[2], [2], [1], [1], [0, 0, 0, 1, 1, 1], [0], [0]>} : vector<4x2x8xf32>, vector<4x2x8xf32>, vector<4x2x2xf32> -> vector<4x2x2xf32>
    "tpu.trace_stop"() : () -> ()
    %cst_20 = arith.constant dense<0xFF800000> : vector<4x2xf32>
    %52 = vector.multi_reduction <maximumf>, %51, %cst_20 [2] : vector<4x2x2xf32> to vector<4x2xf32>
    %53 = vector.shape_cast %52 : vector<4x2xf32> to vector<4x2x1xf32>
    %54 = vector.broadcast %53 : vector<4x2x1xf32> to vector<4x2x2xf32>
    %55 = arith.subf %51, %54 : vector<4x2x2xf32>
    %56 = math.exp %55 : vector<4x2x2xf32>
    %cst_21 = arith.constant dense<0.000000e+00> : vector<4x2xf32>
    %57 = vector.multi_reduction <add>, %56, %cst_21 [2] : vector<4x2x2xf32> to vector<4x2xf32>
    %58 = vector.shape_cast %57 : vector<4x2xf32> to vector<4x2x1xf32>
    %59 = tpu.reciprocal %58 {approx = true} : vector<4x2x1xf32> -> vector<4x2x1xf32>
    %60 = vector.broadcast %59 : vector<4x2x1xf32> to vector<4x2x2xf32>
    %61 = arith.mulf %56, %60 : vector<4x2x2xf32>
    "tpu.trace_start"() <{level = 10 : i32, message = "sbc,scd->sbd"}> : () -> ()
    %cst_22 = arith.constant dense<0.000000e+00> : vector<4x2x8xf32>
    %62 = tpu.matmul %61, %50, %cst_22 {dimension_numbers = #tpu.dot_dimension_numbers<[2], [1], [1], [2], [0, 0, 0, 1, 1, 2], [0], [0]>} : vector<4x2x2xf32>, vector<4x2x8xf32>, vector<4x2x8xf32> -> vector<4x2x8xf32>
    "tpu.trace_stop"() : () -> ()
    %63 = vector.extract_strided_slice %10 {offsets = [16, 0], sizes = [8, 32], strides = [1, 1]} : vector<32x32xf32> to vector<8x32xf32>
    "tpu.trace_start"() <{level = 10 : i32, message = "sbd,de->sbe"}> : () -> ()
    %cst_23 = arith.constant dense<0.000000e+00> : vector<4x2x32xf32>
    %64 = tpu.matmul %62, %63, %cst_23 {dimension_numbers = #tpu.dot_dimension_numbers<[2], [0], [0, 1], [1], [0, 0, 0, 1, 1, 1], [], []>} : vector<4x2x8xf32>, vector<8x32xf32>, vector<4x2x32xf32> -> vector<4x2x32xf32>
    "tpu.trace_stop"() : () -> ()
    %65 = arith.addf %47, %64 : vector<4x2x32xf32>
    %66 = vector.extract_strided_slice %7 {offsets = [0, 0, 24], sizes = [4, 2, 8], strides = [1, 1, 1]} : vector<4x2x32xf32> to vector<4x2x8xf32>
    %67 = vector.extract_strided_slice %8 {offsets = [0, 0, 24], sizes = [4, 2, 8], strides = [1, 1, 1]} : vector<4x2x32xf32> to vector<4x2x8xf32>
    %68 = vector.extract_strided_slice %9 {offsets = [0, 0, 24], sizes = [4, 2, 8], strides = [1, 1, 1]} : vector<4x2x32xf32> to vector<4x2x8xf32>
    "tpu.trace_start"() <{level = 10 : i32, message = "sbd,scd->sbc"}> : () -> ()
    %cst_24 = arith.constant dense<0.000000e+00> : vector<4x2x2xf32>
    %69 = tpu.matmul %66, %67, %cst_24 {dimension_numbers = #tpu.dot_dimension_numbers<[2], [2], [1], [1], [0, 0, 0, 1, 1, 1], [0], [0]>} : vector<4x2x8xf32>, vector<4x2x8xf32>, vector<4x2x2xf32> -> vector<4x2x2xf32>
    "tpu.trace_stop"() : () -> ()
    %cst_25 = arith.constant dense<0xFF800000> : vector<4x2xf32>
    %70 = vector.multi_reduction <maximumf>, %69, %cst_25 [2] : vector<4x2x2xf32> to vector<4x2xf32>
    %71 = vector.shape_cast %70 : vector<4x2xf32> to vector<4x2x1xf32>
    %72 = vector.broadcast %71 : vector<4x2x1xf32> to vector<4x2x2xf32>
    %73 = arith.subf %69, %72 : vector<4x2x2xf32>
    %74 = math.exp %73 : vector<4x2x2xf32>
    %cst_26 = arith.constant dense<0.000000e+00> : vector<4x2xf32>
    %75 = vector.multi_reduction <add>, %74, %cst_26 [2] : vector<4x2x2xf32> to vector<4x2xf32>
    %76 = vector.shape_cast %75 : vector<4x2xf32> to vector<4x2x1xf32>
    %77 = tpu.reciprocal %76 {approx = true} : vector<4x2x1xf32> -> vector<4x2x1xf32>
    %78 = vector.broadcast %77 : vector<4x2x1xf32> to vector<4x2x2xf32>
    %79 = arith.mulf %74, %78 : vector<4x2x2xf32>
    "tpu.trace_start"() <{level = 10 : i32, message = "sbc,scd->sbd"}> : () -> ()
    %cst_27 = arith.constant dense<0.000000e+00> : vector<4x2x8xf32>
    %80 = tpu.matmul %79, %68, %cst_27 {dimension_numbers = #tpu.dot_dimension_numbers<[2], [1], [1], [2], [0, 0, 0, 1, 1, 2], [0], [0]>} : vector<4x2x2xf32>, vector<4x2x8xf32>, vector<4x2x8xf32> -> vector<4x2x8xf32>
    "tpu.trace_stop"() : () -> ()
    %81 = vector.extract_strided_slice %10 {offsets = [24, 0], sizes = [8, 32], strides = [1, 1]} : vector<32x32xf32> to vector<8x32xf32>
    "tpu.trace_start"() <{level = 10 : i32, message = "sbd,de->sbe"}> : () -> ()
    %cst_28 = arith.constant dense<0.000000e+00> : vector<4x2x32xf32>
    %82 = tpu.matmul %80, %81, %cst_28 {dimension_numbers = #tpu.dot_dimension_numbers<[2], [0], [0, 1], [1], [0, 0, 0, 1, 1, 1], [], []>} : vector<4x2x8xf32>, vector<8x32xf32>, vector<4x2x32xf32> -> vector<4x2x32xf32>
    "tpu.trace_stop"() : () -> ()
    %83 = arith.addf %65, %82 : vector<4x2x32xf32>
    %c0_29 = arith.constant 0 : index
    %c0_30 = arith.constant 0 : index
    %84 = vector.load %arg5[%c0_29, %c0_30] : memref<1x32xf32, #tpu.memory_space<vmem>>, vector<1x32xf32>
    %85 = vector.shape_cast %84 : vector<1x32xf32> to vector<1x1x32xf32>
    %86 = vector.broadcast %85 : vector<1x1x32xf32> to vector<4x2x32xf32>
    %87 = arith.addf %83, %86 : vector<4x2x32xf32>
    %c0_31 = arith.constant 0 : index
    %c0_32 = arith.constant 0 : index
    %c0_33 = arith.constant 0 : index
    %88 = vector.load %arg6[%c0_31, %c0_32, %c0_33] : memref<4x2x32xf32, #tpu.memory_space<vmem>>, vector<4x2x32xf32>
    tpu.vector_store %arg6[%c0_31, %c0_32, %c0_33], %87 {strides = array<i32>} : memref<4x2x32xf32, #tpu.memory_space<vmem>>, vector<4x2x32xf32>,
    return
  }
  func.func @transform_0(%arg0: i32) -> (i32, i32, i32) {
    %c0_i32 = arith.constant 0 : i32
    %c0_i32_0 = arith.constant 0 : i32
    %c0_i32_1 = arith.constant 0 : i32
    return %arg0, %c0_i32, %c0_i32_0 : i32, i32, i32
  }
  func.func @transform_1(%arg0: i32) -> (i32, i32) {
    %c0_i32 = arith.constant 0 : i32
    %c0_i32_0 = arith.constant 0 : i32
    %c0_i32_1 = arith.constant 0 : i32
    return %c0_i32, %c0_i32_0 : i32, i32
  }
  func.func @transform_2(%arg0: i32) -> (i32, i32) {
    %c0_i32 = arith.constant 0 : i32
    %c0_i32_0 = arith.constant 0 : i32
    %c0_i32_1 = arith.constant 0 : i32
    return %c0_i32, %c0_i32_0 : i32, i32
  }
  func.func @transform_3(%arg0: i32) -> (i32, i32) {
    %c0_i32 = arith.constant 0 : i32
    %c0_i32_0 = arith.constant 0 : i32
    %c0_i32_1 = arith.constant 0 : i32
    return %c0_i32, %c0_i32_0 : i32, i32
  }
  func.func @transform_4(%arg0: i32) -> (i32, i32) {
    %c0_i32 = arith.constant 0 : i32
    %c0_i32_0 = arith.constant 0 : i32
    %c0_i32_1 = arith.constant 0 : i32
    return %c0_i32, %c0_i32_0 : i32, i32
  }
  func.func @transform_5(%arg0: i32) -> (i32, i32, i32) {
    %c0_i32 = arith.constant 0 : i32
    %c0_i32_0 = arith.constant 0 : i32
    %c0_i32_1 = arith.constant 0 : i32
    return %arg0, %c0_i32, %c0_i32_0 : i32, i32, i32
  }
}

</mosaic_0001>

<llo_original>
// kernel: tpu_custom_call.1
$region0: #{tpu_custom_call.1}
  #allocation0 [shape = 'u32[]', space=smem, size = 0x4, offset = 0x4, fixed_abs, tag = 'smem constant byte address 0x4 - core index']
  #allocation1 [shape = 'u32[144,128]{1,0:T(1,128)}', space=vmem, size = 0x12000, scoped, tag = 'internal scratch']
  %s0 = inlined_call_operand.hbm [shape: f32[8,2,32], index: 0, kind: input, shape index: {}]
  %s1 = inlined_call_operand.hbm [shape: f32[32,96], index: 1, kind: input, shape index: {}]
  %s2 = inlined_call_operand.vmem [shape: f32[1,32], index: 2, kind: input, shape index: {}]
  %s3 = inlined_call_operand.hbm [shape: f32[32,32], index: 3, kind: input, shape index: {}]
  %s4 = inlined_call_operand.vmem [shape: f32[1,32], index: 4, kind: input, shape index: {}]
  %s5 = inlined_call_operand.hbm [shape: f32[8,2,32], index: 5, kind: output, shape index: {}]
  %s6 = sld [smem:[#allocation0]]
  $region65: #{tpu_custom_call.1} parent=0
    _
  %s8 = ssub.s32 1, %s6
  %s9 = scalar_select 0, %s8, %s6
  $region1: #{tpu_custom_call.1} parent=0
    #allocation2 [shape = 'u8[8192]{0}', space=vmem, size = 0x2000, scoped, tag = 'input window, operand 0']
    #allocation3 [shape = 's32[2]{0}', space=sflag, size = 0x8, scoped, tag = 'scoped memory for tpu_custom_call.1']
    #allocation4 [shape = 's32[2]{0}', space=sflag, size = 0x8, scoped, tag = 'scoped memory for tpu_custom_call.1']
    #allocation5 [shape = 'u8[16384]{0}', space=vmem, size = 0x4000, scoped, tag = 'input window, operand 1, single buffered']
    #allocation6 [shape = 's32[1]{0}', space=sflag, size = 0x4, scoped, tag = 'scoped memory for tpu_custom_call.1']
    #allocation7 [shape = 'u8[16384]{0}', space=vmem, size = 0x4000, scoped, tag = 'input window, operand 3, single buffered']
    #allocation8 [shape = 'u8[8192]{0}', space=vmem, size = 0x2000, scoped, tag = 'output window, operand 0']
    %10 = vsyncpa [#allocation3], 0
    %s11 = scalar_lea.sflag [#allocation3], 1
    %12 = vsyncpa %s11, 0
    %13 = vsyncpa [#allocation6], 0
    %14 = vsyncpa [#allocation4], 0
    %s15 = scalar_lea.sflag [#allocation4], 1
    %16 = vsyncpa %s15, 0
    loop: start=0, step=1, limit=4
    $region2: #{tpu_custom_call.1} parent=1 // loop_pre_header
      _
    $region3: #{tpu_custom_call.1} parent=1 // loop_header
      %s18 = sphi 0, %s22
      %p19 = scmp.ge.s32.totalorder %s18, 4
      %s28 = sphi 0, %s30
      %s31 = sphi 0, %s28
      %s32 = sphi 0, %s31
      %s48 = sphi 0, %s32
      %s52 = sphi 0, %s52
      %s54 = sphi 0, %s52
      %s55 = sphi 0, %s54
      %s69 = sphi 0, %s55
      %s73 = sphi 0, %s73
      %s75 = sphi 0, %s73
      %s76 = sphi 0, %s75
      %s90 = sphi 0, %s76
      %s94 = sphi 0, %s94
      %s96 = sphi 0, %s94
      %s97 = sphi 0, %s96
      %s111 = sphi 0, %s97
      %s115 = sphi 0, %s115
      %s117 = sphi 0, %s115
      %s118 = sphi 0, %s117
      %s132 = sphi 0, %s118
      %s138 = sphi 0, %s140
      %s141 = sphi 0, %s138
      %s142 = sphi 0, %s141
      %s158 = sphi 0, %s142
    $region4: #{tpu_custom_call.1} parent=1 // loop_header_branch
      %21 = sbr.rel (%p19) target = $region8
    $region5: #{tpu_custom_call.1} parent=1 // loop_body
      %s23 = ssub.s32 %s18, 1
      %s24 = ssub.s32 %s18, 2
      %s25 = sadd.s32 %s18, 1
      %s26 = ssub.s32 %s18, %s25
      %p27 = scmp.eq.s32.totalorder %s26, 0
      %s29 = sadd.s32 %s28, 1
      %s30 = scalar_select %p27, %s28, %s29
      %p33 = pneg %p27
      %p34 = scmp.eq.s32.totalorder %s18, 1
      %p35 = por %p33, %p34
      %p36 = scmp.ne.s32.totalorder %s28, %s31
      %p37 = scmp.eq.s32.totalorder %s18, 0
      %p38 = por %p36, %p37
      %p39 = scmp.ne.s32.totalorder %s28, %s31
      %p40 = scmp.eq.s32.totalorder %s23, 1
      %p41 = por %p39, %p40
      %p42 = scmp.ne.s32.totalorder %s31, %s32
      %p43 = scmp.eq.s32.totalorder %s23, 0
      %p44 = por %p42, %p43
      %p45 = scmp.ne.s32.totalorder %s31, %s32
      %p46 = scmp.eq.s32.totalorder %s24, 1
      %p47 = por %p45, %p46
      %p49 = scmp.ne.s32.totalorder %s32, %s48
      %p50 = scmp.eq.s32.totalorder %s24, 0
      %p51 = por %p49, %p50
      %s53 = sadd.s32 %s52, 1
      %p56 = scmp.eq.s32.totalorder %s18, 1
      %p57 = scmp.ne.s32.totalorder %s52, %s54
      %p58 = scmp.eq.s32.totalorder %s18, 0
      %p59 = por %p57, %p58
      %p60 = scmp.ne.s32.totalorder %s52, %s54
      %p61 = scmp.eq.s32.totalorder %s23, 1
      %p62 = por %p60, %p61
      %p63 = scmp.ne.s32.totalorder %s54, %s55
      %p64 = scmp.eq.s32.totalorder %s23, 0
      %p65 = por %p63, %p64
      %p66 = scmp.ne.s32.totalorder %s54, %s55
      %p67 = scmp.eq.s32.totalorder %s24, 1
      %p68 = por %p66, %p67
      %p70 = scmp.ne.s32.totalorder %s55, %s69
      %p71 = scmp.eq.s32.totalorder %s24, 0
      %p72 = por %p70, %p71
      %s74 = sadd.s32 %s73, 1
      %p77 = scmp.eq.s32.totalorder %s18, 1
      %p78 = scmp.ne.s32.totalorder %s73, %s75
      %p79 = scmp.eq.s32.totalorder %s18, 0
      %p80 = por %p78, %p79
      %p81 = scmp.ne.s32.totalorder %s73, %s75
      %p82 = scmp.eq.s32.totalorder %s23, 1
      %p83 = por %p81, %p82
      %p84 = scmp.ne.s32.totalorder %s75, %s76
      %p85 = scmp.eq.s32.totalorder %s23, 0
      %p86 = por %p84, %p85
      %p87 = scmp.ne.s32.totalorder %s75, %s76
      %p88 = scmp.eq.s32.totalorder %s24, 1
      %p89 = por %p87, %p88
      %p91 = scmp.ne.s32.totalorder %s76, %s90
      %p92 = scmp.eq.s32.totalorder %s24, 0
      %p93 = por %p91, %p92
      %s95 = sadd.s32 %s94, 1
      %p98 = scmp.eq.s32.totalorder %s18, 1
      %p99 = scmp.ne.s32.totalorder %s94, %s96
      %p100 = scmp.eq.s32.totalorder %s18, 0
      %p101 = por %p99, %p100
      %p102 = scmp.ne.s32.totalorder %s94, %s96
      %p103 = scmp.eq.s32.totalorder %s23, 1
      %p104 = por %p102, %p103
      %p105 = scmp.ne.s32.totalorder %s96, %s97
      %p106 = scmp.eq.s32.totalorder %s23, 0
      %p107 = por %p105, %p106
      %p108 = scmp.ne.s32.totalorder %s96, %s97
      %p109 = scmp.eq.s32.totalorder %s24, 1
      %p110 = por %p108, %p109
      %p112 = scmp.ne.s32.totalorder %s97, %s111
      %p113 = scmp.eq.s32.totalorder %s24, 0
      %p114 = por %p112, %p113
      %s116 = sadd.s32 %s115, 1
      %p119 = scmp.eq.s32.totalorder %s18, 1
      %p120 = scmp.ne.s32.totalorder %s115, %s117
      %p121 = scmp.eq.s32.totalorder %s18, 0
      %p122 = por %p120, %p121
      %p123 = scmp.ne.s32.totalorder %s115, %s117
      %p124 = scmp.eq.s32.totalorder %s23, 1
      %p125 = por %p123, %p124
      %p126 = scmp.ne.s32.totalorder %s117, %s118
      %p127 = scmp.eq.s32.totalorder %s23, 0
      %p128 = por %p126, %p127
      %p129 = scmp.ne.s32.totalorder %s117, %s118
      %p130 = scmp.eq.s32.totalorder %s24, 1
      %p131 = por %p129, %p130
      %p133 = scmp.ne.s32.totalorder %s118, %s132
      %p134 = scmp.eq.s32.totalorder %s24, 0
      %p135 = por %p133, %p134
      %s136 = ssub.s32 %s18, %s25
      %p137 = scmp.eq.s32.totalorder %s136, 0
      %s139 = sadd.s32 %s138, 1
      %s140 = scalar_select %p137, %s138, %s139
      %p143 = pneg %p137
      %p144 = scmp.eq.s32.totalorder %s18, 1
      %p145 = por %p143, %p144
      %p146 = scmp.ne.s32.totalorder %s138, %s141
      %p147 = scmp.eq.s32.totalorder %s18, 0
      %p148 = por %p146, %p147
      %p149 = scmp.ne.s32.totalorder %s138, %s141
      %p150 = scmp.eq.s32.totalorder %s23, 1
      %p151 = por %p149, %p150
      %p152 = scmp.ne.s32.totalorder %s141, %s142
      %p153 = scmp.eq.s32.totalorder %s23, 0
      %p154 = por %p152, %p153
      %p155 = scmp.ne.s32.totalorder %s141, %s142
      %p156 = scmp.eq.s32.totalorder %s24, 1
      %p157 = por %p155, %p156
      %p159 = scmp.ne.s32.totalorder %s142, %s158
      %p160 = scmp.eq.s32.totalorder %s24, 0
      %p161 = por %p159, %p160
      %p162 = scmp.le.s32.totalorder 1, %s18
      %p163 = scmp.lt.s32.totalorder %s18, 3
      %p164 = pnand %p162, %p163
      %p165 = pneg %p164
      // Predicated region
      $region9: #{tpu_custom_call.1} parent=5 // pred_check
        _
      $region10: #{tpu_custom_call.1} parent=5 // pred_check_branch
        %167 = sbr.rel (%p164) target = $region12
      $region11: #{tpu_custom_call.1} parent=5 // pred_region
        %s168 = ssub.s32 %s18, 1
        // Predicated region
        $region13: #{tpu_custom_call.1} parent=11 // pred_check
          %p169 = pneg %p65
        $region14: #{tpu_custom_call.1} parent=11 // pred_check_branch
          %171 = sbr.rel (%p169) target = $region16
        $region15: #{tpu_custom_call.1} parent=11 // pred_region
          %s173 = ssub.s32 512, 512
          %174 = vsyncadd [#allocation6], %s173
          %s175 = sshll.u32 [#allocation5], 4
          %s176 = int_to_ptr.vmem [resolvable:$true] %s175
          %181 = dma.hbm_to_vmem [thread:$0]  %s1, 512, %s176, [#allocation6], 128, 128, 8
        $region16: #{tpu_custom_call.1} parent=11 // pred_fallthru
          _
        // Predicated region
        $region17: #{tpu_custom_call.1} parent=11 // pred_check
          %p182 = pneg %p86
        $region18: #{tpu_custom_call.1} parent=11 // pred_check_branch
          %184 = sbr.rel (%p182) target = $region20
        $region19: #{tpu_custom_call.1} parent=11 // pred_region
          _
        $region20: #{tpu_custom_call.1} parent=11 // pred_fallthru
          _
        // Predicated region
        $region21: #{tpu_custom_call.1} parent=11 // pred_check
          %p185 = pneg %p107
        $region22: #{tpu_custom_call.1} parent=11 // pred_check_branch
          %187 = sbr.rel (%p185) target = $region24
        $region23: #{tpu_custom_call.1} parent=11 // pred_region
          %s189 = ssub.s32 512, 512
          %190 = vsyncadd [#allocation6], %s189
          %s191 = sshll.u32 [#allocation7], 4
          %s192 = int_to_ptr.vmem [resolvable:$true] %s191
          %197 = dma.hbm_to_vmem [thread:$0]  %s3, 512, %s192, [#allocation6], 128, 128, 8
        $region24: #{tpu_custom_call.1} parent=11 // pred_fallthru
          _
        // Predicated region
        $region25: #{tpu_custom_call.1} parent=11 // pred_check
          %p198 = pneg %p128
        $region26: #{tpu_custom_call.1} parent=11 // pred_check_branch
          %200 = sbr.rel (%p198) target = $region28
        $region27: #{tpu_custom_call.1} parent=11 // pred_region
          _
        $region28: #{tpu_custom_call.1} parent=11 // pred_fallthru
          _
      $region12: #{tpu_custom_call.1} parent=5 // pred_fallthru
        _
      %p201 = scmp.lt.s32.totalorder %s18, 2
      // Predicated region
      $region29: #{tpu_custom_call.1} parent=5 // pred_check
        %p202 = pneg %p201
      $region30: #{tpu_custom_call.1} parent=5 // pred_check_branch
        %204 = sbr.rel (%p202) target = $region32
      $region31: #{tpu_custom_call.1} parent=5 // pred_region
        // Predicated region
        $region33: #{tpu_custom_call.1} parent=31 // pred_check
          %p205 = pneg %p38
        $region34: #{tpu_custom_call.1} parent=31 // pred_check_branch
          %207 = sbr.rel (%p205) target = $region36
        $region35: #{tpu_custom_call.1} parent=31 // pred_region
          %s208 = sand.u32 %s28, 1
          %s209 = scalar_lea.sflag [#allocation3], %s208
          %s210 = sand.u32 %s28, 1
          %s211 = smul.addr %s210, 8
          %s212 = scalar_lea.vmem [#allocation2], %s211
          %s213 = smul.u32 4, %s18
          %s215 = ssub.s32 128, 128
          %216 = vsyncadd %s209, %s215
          %s217 = smul.addr %s213, 32
          %s218 = scalar_lea.hbm %s0, %s217
          %s219 = sshll.u32 %s212, 4
          %s220 = int_to_ptr.vmem [resolvable:$true] %s219
          %225 = dma.hbm_to_vmem [thread:$0]  %s218, 128, %s220, %s209, 32, 32, 2
        $region36: #{tpu_custom_call.1} parent=31 // pred_fallthru
          _
      $region32: #{tpu_custom_call.1} parent=5 // pred_fallthru
        _
      %p226 = scmp.le.s32.totalorder 1, %s18
      %p227 = scmp.lt.s32.totalorder %s18, 3
      %p228 = pnand %p226, %p227
      %p229 = pneg %p228
      // Predicated region
      $region37: #{tpu_custom_call.1} parent=5 // pred_check
        _
      $region38: #{tpu_custom_call.1} parent=5 // pred_check_branch
        %231 = sbr.rel (%p228) target = $region40
      $region39: #{tpu_custom_call.1} parent=5 // pred_region
        %s232 = ssub.s32 %s18, 1
        %s233 = sand.u32 %s31, 1
        %s234 = scalar_lea.sflag [#allocation3], %s233
        %s235 = sand.u32 %s31, 1
        %s236 = smul.addr %s235, 8
        %s237 = scalar_lea.vmem [#allocation2], %s236
        // Predicated region
        $region41: #{tpu_custom_call.1} parent=39 // pred_check
          %p238 = pneg %p44
        $region42: #{tpu_custom_call.1} parent=39 // pred_check_branch
          %240 = sbr.rel (%p238) target = $region44
        $region43: #{tpu_custom_call.1} parent=39 // pred_region
          %241 = dma.done %s234, 128
        $region44: #{tpu_custom_call.1} parent=39 // pred_fallthru
          _
        // Predicated region
        $region45: #{tpu_custom_call.1} parent=39 // pred_check
          %p242 = pneg %p65
        $region46: #{tpu_custom_call.1} parent=39 // pred_check_branch
          %244 = sbr.rel (%p242) target = $region48
        $region47: #{tpu_custom_call.1} parent=39 // pred_region
          %245 = dma.done [#allocation6], 512
        $region48: #{tpu_custom_call.1} parent=39 // pred_fallthru
          _
        // Predicated region
        $region49: #{tpu_custom_call.1} parent=39 // pred_check
          %p246 = pneg %p107
        $region50: #{tpu_custom_call.1} parent=39 // pred_check_branch
          %248 = sbr.rel (%p246) target = $region52
        $region51: #{tpu_custom_call.1} parent=39 // pred_region
          %249 = dma.done [#allocation6], 512
        $region52: #{tpu_custom_call.1} parent=39 // pred_fallthru
          _
        %s250 = sand.u32 %s31, 1
        %s251 = scalar_lea.sflag [#allocation3], %s250
        %s252 = sand.u32 %s31, 1
        %s253 = smul.addr %s252, 8
        %s254 = scalar_lea.vmem [#allocation2], %s253
        %p255 = pneg %p44
        %p256 = pneg %p41
        %p257 = pneg %p65
        %p258 = pneg %p62
        %p259 = pneg %p86
        %p260 = pneg %p83
        %p261 = pneg %p107
        %p262 = pneg %p104
        %p263 = pneg %p128
        %p264 = pneg %p125
        %p265 = pneg %p154
        %p266 = pneg %p151
        %s267 = sand.u32 %s141, 1
        %s268 = scalar_lea.sflag [#allocation4], %s267
        %s269 = sand.u32 %s141, 1
        %s270 = smul.addr %s269, 8
        %s271 = scalar_lea.vmem [#allocation8], %s270
        %s272 = smul.u32 4, %s23
        %s273 = smul.u32 4, %s23
        %v274 = vld [vmem:[%s237] sm:$0x3]
        %v275 = vld [vmem:[%s237 + $0x2] sm:$0x3]
        %v276 = vld [vmem:[%s237 + $0x4] sm:$0x3]
        %v277 = vld [vmem:[%s237 + $0x6] sm:$0x3]
        %v278 = vld [vmem:[#allocation5] sm:$0xff]
        %v279 = vld [vmem:[#allocation5 + $0x8] sm:$0xff]
        %v280 = vld [vmem:[#allocation5 + $0x10] sm:$0xff]
        %v281 = vld [vmem:[#allocation5 + $0x18] sm:$0xff]
        %v286 = vcombine.low %v274, %v275
        %v287 = vcombine.low %v276, %v277
        %v289 = vunpack.c.l.s4 1983009808
        %v290 = vunpack.c.0.s8 %v289
        %v291 = vlaneseq
        %v292 = vshrl.u32 %v291, 7
        %v293 = vsub.s32 %v290, %v292
        %v294 = vrot.slane %v286, %v293
        %v296 = vunpack.c.l.s4 1983009808
        %v297 = vunpack.c.0.s8 %v296
        %v298 = vlaneseq
        %v299 = vshrl.u32 %v298, 7
        %v300 = vsub.s32 %v297, %v299
        %v301 = vrot.slane %v287, %v300
        %v302 = vcombine.low %v294, %v301
        %vm303 = vcmask 261120
        %v304 = vsel %vm303, %v302, 0
        %306 = vmatprep.subr.mxu0 0.0
        %307 = vmatpush1.msra.mxu0 %v278
        %308 = vmatprep.subr.mxu0 0.0
        %309 = vmatpush1.msra.mxu0 %v279
        %310 = vmatprep.subr.mxu0 0.0
        %311 = vmatpush1.msra.mxu0 %v280
        %312 = vmatprep.subr.mxu0 0.0
        %313 = vmatpush1.msra.mxu0 %v281
        %314 = vmatprep.subr.mxu0 0.0
        %315 = vmatpush1.msra.mxu0 0.0
        %316 = vmatprep.subr.mxu0 0.0
        %317 = vmatpush1.msra.mxu0 0.0
        %318 = vmatprep.subr.mxu0 0.0
        %319 = vmatpush1.msra.mxu0 0.0
        %320 = vmatprep.subr.mxu0 0.0
        %321 = vmatpush1.msra.mxu0 0.0
        %322 = vmatprep.subr.mxu0 0.0
        %323 = vmatpush1.msra.mxu0 0.0
        %324 = vmatprep.subr.mxu0 0.0
        %325 = vmatpush1.msra.mxu0 0.0
        %326 = vmatprep.subr.mxu0 0.0
        %327 = vmatpush1.msra.mxu0 0.0
        %328 = vmatprep.subr.mxu0 0.0
        %329 = vmatpush1.msra.mxu0 0.0
        %330 = vmatprep.subr.mxu0 0.0
        %331 = vmatpush1.msra.mxu0 0.0
        %332 = vmatprep.subr.mxu0 0.0
        %333 = vmatpush1.msra.mxu0 0.0
        %334 = vmatprep.subr.mxu0 0.0
        %335 = vmatpush1.msra.mxu0 0.0
        %336 = vmatprep.subr.mxu0 0.0
        %337 = vmatpush1.msra.mxu0 0.0
        %338 = vmatprep.subr.mxu0 0.0
        %339 = vmatpush1.msra.mxu0 0.0
        %340 = vmatprep.subr.mxu0 0.0
        %341 = vmatpush1.msra.mxu0 0.0
        %342 = vmatprep.subr.mxu0 0.0
        %343 = vmatpush1.msra.mxu0 0.0
        %344 = vmatprep.subr.mxu0 0.0
        %345 = vmatpush1.msra.mxu0 0.0
        %346 = vmatprep.subr.mxu0 0.0
        %347 = vmatpush1.msra.mxu0 0.0
        %348 = vmatprep.subr.mxu0 0.0
        %349 = vmatpush1.msra.mxu0 0.0
        %350 = vmatprep.subr.mxu0 0.0
        %351 = vmatpush1.msra.mxu0 0.0
        %352 = vmatprep.subr.mxu0 0.0
        %353 = vmatpush1.msra.mxu0 0.0
        %354 = vmatprep.subr.mxu0 0.0
        %355 = vmatpush1.msra.mxu0 0.0
        %356 = vmatprep.subr.mxu0 0.0
        %357 = vmatpush1.msra.mxu0 0.0
        %358 = vmatprep.subr.mxu0 0.0
        %359 = vmatpush1.msra.mxu0 0.0
        %360 = vmatprep.subr.mxu0 0.0
        %361 = vmatpush1.msra.mxu0 0.0
        %362 = vmatprep.subr.mxu0 0.0
        %363 = vmatpush1.msra.mxu0 0.0
        %364 = vmatprep.subr.mxu0 0.0
        %365 = vmatpush1.msra.mxu0 0.0
        %366 = vmatprep.subr.mxu0 0.0
        %367 = vmatpush1.msra.mxu0 0.0
        %368 = vmatprep.subr.mxu0 0.0
        %369 = vmatpush1.msra.mxu0 0.0
        %370 = vmatprep.mubr.f32.mxu0 0.0
        %371 = vmatmul.mubr.f32.gmra.mrb[0].mxu0 %v304
        %v372 = vpop.f32.mrb[0].mxu0
        %v373 = vadd.f32 0.0, %v372
        %v374 = vpop.f32.mrb[0].mxu0
        %375 = vdwg.mxu0
        %v377 = vcombine.high %v373, %v373
        %v379 = vunpack.c.l.s4 1983009808
        %v380 = vunpack.c.0.s8 %v379
        %v381 = vlaneseq
        %v382 = vshrl.u32 %v381, 7
        %v383 = vsub.s32 %v380, %v382
        %v384 = vrot.slane %v373, %v383
        %v386 = vunpack.c.l.s4 1983009808
        %v387 = vunpack.c.0.s8 %v386
        %v388 = vlaneseq
        %v389 = vshrl.u32 %v388, 7
        %v390 = vsub.s32 %v387, %v389
        %v391 = vrot.slane %v377, %v390
        %v392 = vcombine.high %v384, %v384
        %v393 = vcombine.high %v391, %v391
        %v398 = vld [vmem:[%s2] sm:$0x1]
        %v400 = vlaneseq
        %v401 = vshrl.u32 %v400, 7
        %v402 = vsub.s32 0, %v401
        %v403 = vrot.slane %v398, %v402
        %v405 = vadd.f32 %v384, %v403
        %v406 = vadd.f32 %v392, %v403
        %v407 = vadd.f32 %v391, %v403
        %v408 = vadd.f32 %v393, %v403
        %v409 = vld [vmem:[#allocation7] sm:$0xff]
        %v410 = vld [vmem:[#allocation7 + $0x8] sm:$0xff]
        %v411 = vld [vmem:[#allocation7 + $0x10] sm:$0xff]
        %v412 = vld [vmem:[#allocation7 + $0x18] sm:$0xff]
        %v414 = vunpack.c.l.s4 1983009808
        %v415 = vunpack.c.0.s8 %v414
        %v416 = vlaneseq
        %v417 = vshrl.u32 %v416, 7
        %v418 = vsub.s32 %v415, %v417
        %v419 = vrot.slane %v384, %v418
        %420 = vrot.lane.b32.xlu0 %v419, 96
        %v421 = vpop.permute.xlu0 %420
        %vm422 = vcmask 64512
        %v424 = vsel %vm422, %v405, 0
        %v426 = vsel %vm422, %v421, 0
        %428 = vmatprep.subr.mxu0 0.0
        %429 = vmatpush1.xpose.msra.mxu0 %v426
        %430 = vmatprep.subr.mxu0 0.0
        %431 = vmatpush1.xpose.msra.mxu0 0.0
        %432 = vmatprep.subr.mxu0 0.0
        %433 = vmatpush1.xpose.msra.mxu0 0.0
        %434 = vmatprep.subr.mxu0 0.0
        %435 = vmatpush1.xpose.msra.mxu0 0.0
        %436 = vmatprep.subr.mxu0 0.0
        %437 = vmatpush1.xpose.msra.mxu0 0.0
        %438 = vmatprep.subr.mxu0 0.0
        %439 = vmatpush1.xpose.msra.mxu0 0.0
        %440 = vmatprep.subr.mxu0 0.0
        %441 = vmatpush1.xpose.msra.mxu0 0.0
        %442 = vmatprep.subr.mxu0 0.0
        %443 = vmatpush1.xpose.msra.mxu0 0.0
        %444 = vmatprep.subr.mxu0 0.0
        %445 = vmatpush1.xpose.msra.mxu0 0.0
        %446 = vmatprep.subr.mxu0 0.0
        %447 = vmatpush1.xpose.msra.mxu0 0.0
        %448 = vmatprep.subr.mxu0 0.0
        %449 = vmatpush1.xpose.msra.mxu0 0.0
        %450 = vmatprep.subr.mxu0 0.0
        %451 = vmatpush1.xpose.msra.mxu0 0.0
        %452 = vmatprep.subr.mxu0 0.0
        %453 = vmatpush1.xpose.msra.mxu0 0.0
        %454 = vmatprep.subr.mxu0 0.0
        %455 = vmatpush1.xpose.msra.mxu0 0.0
        %456 = vmatprep.subr.mxu0 0.0
        %457 = vmatpush1.xpose.msra.mxu0 0.0
        %458 = vmatprep.subr.mxu0 0.0
        %459 = vmatpush1.xpose.msra.mxu0 0.0
        %460 = vmatprep.subr.mxu0 0.0
        %461 = vmatpush1.xpose.msra.mxu0 0.0
        %462 = vmatprep.subr.mxu0 0.0
        %463 = vmatpush1.xpose.msra.mxu0 0.0
        %464 = vmatprep.subr.mxu0 0.0
        %465 = vmatpush1.xpose.msra.mxu0 0.0
        %466 = vmatprep.subr.mxu0 0.0
        %467 = vmatpush1.xpose.msra.mxu0 0.0
        %468 = vmatprep.subr.mxu0 0.0
        %469 = vmatpush1.xpose.msra.mxu0 0.0
        %470 = vmatprep.subr.mxu0 0.0
        %471 = vmatpush1.xpose.msra.mxu0 0.0
        %472 = vmatprep.subr.mxu0 0.0
        %473 = vmatpush1.xpose.msra.mxu0 0.0
        %474 = vmatprep.subr.mxu0 0.0
        %475 = vmatpush1.xpose.msra.mxu0 0.0
        %476 = vmatprep.subr.mxu0 0.0
        %477 = vmatpush1.xpose.msra.mxu0 0.0
        %478 = vmatprep.subr.mxu0 0.0
        %479 = vmatpush1.xpose.msra.mxu0 0.0
        %480 = vmatprep.subr.mxu0 0.0
        %481 = vmatpush1.xpose.msra.mxu0 0.0
        %482 = vmatprep.subr.mxu0 0.0
        %483 = vmatpush1.xpose.msra.mxu0 0.0
        %484 = vmatprep.subr.mxu0 0.0
        %485 = vmatpush1.xpose.msra.mxu0 0.0
        %486 = vmatprep.subr.mxu0 0.0
        %487 = vmatpush1.xpose.msra.mxu0 0.0
        %488 = vmatprep.subr.mxu0 0.0
        %489 = vmatpush1.xpose.msra.mxu0 0.0
        %490 = vmatprep.subr.mxu0 0.0
        %491 = vmatpush1.xpose.msra.mxu0 0.0
        %492 = vmatprep.mubr.f32.mxu0 0.0
        %493 = vmatmul.mubr.f32.gmra.mrb[0].mxu0 %v424
        %v494 = vpop.f32.mrb[0].mxu0
        %v495 = vadd.f32 0.0, %v494
        %v496 = vpop.f32.mrb[0].mxu0
        %497 = vdwg.mxu0
        %v499 = vunpack.c.l.s4 1983009808
        %v500 = vunpack.c.0.s8 %v499
        %v501 = vlaneseq
        %v502 = vshrl.u32 %v501, 7
        %v503 = vsub.s32 %v500, %v502
        %v504 = vrot.slane %v392, %v503
        %505 = vrot.lane.b32.xlu0 %v504, 96
        %v506 = vpop.permute.xlu0 %505
        %v508 = vsel %vm422, %v406, 0
        %v510 = vsel %vm422, %v506, 0
        %512 = vmatprep.subr.mxu0 0.0
        %513 = vmatpush1.xpose.msra.mxu0 %v510
        %514 = vmatprep.subr.mxu0 0.0
        %515 = vmatpush1.xpose.msra.mxu0 0.0
        %516 = vmatprep.subr.mxu0 0.0
        %517 = vmatpush1.xpose.msra.mxu0 0.0
        %518 = vmatprep.subr.mxu0 0.0
        %519 = vmatpush1.xpose.msra.mxu0 0.0
        %520 = vmatprep.subr.mxu0 0.0
        %521 = vmatpush1.xpose.msra.mxu0 0.0
        %522 = vmatprep.subr.mxu0 0.0
        %523 = vmatpush1.xpose.msra.mxu0 0.0
        %524 = vmatprep.subr.mxu0 0.0
        %525 = vmatpush1.xpose.msra.mxu0 0.0
        %526 = vmatprep.subr.mxu0 0.0
        %527 = vmatpush1.xpose.msra.mxu0 0.0
        %528 = vmatprep.subr.mxu0 0.0
        %529 = vmatpush1.xpose.msra.mxu0 0.0
        %530 = vmatprep.subr.mxu0 0.0
        %531 = vmatpush1.xpose.msra.mxu0 0.0
        %532 = vmatprep.subr.mxu0 0.0
        %533 = vmatpush1.xpose.msra.mxu0 0.0
        %534 = vmatprep.subr.mxu0 0.0
        %535 = vmatpush1.xpose.msra.mxu0 0.0
        %536 = vmatprep.subr.mxu0 0.0
        %537 = vmatpush1.xpose.msra.mxu0 0.0
        %538 = vmatprep.subr.mxu0 0.0
        %539 = vmatpush1.xpose.msra.mxu0 0.0
        %540 = vmatprep.subr.mxu0 0.0
        %541 = vmatpush1.xpose.msra.mxu0 0.0
        %542 = vmatprep.subr.mxu0 0.0
        %543 = vmatpush1.xpose.msra.mxu0 0.0
        %544 = vmatprep.subr.mxu0 0.0
        %545 = vmatpush1.xpose.msra.mxu0 0.0
        %546 = vmatprep.subr.mxu0 0.0
        %547 = vmatpush1.xpose.msra.mxu0 0.0
        %548 = vmatprep.subr.mxu0 0.0
        %549 = vmatpush1.xpose.msra.mxu0 0.0
        %550 = vmatprep.subr.mxu0 0.0
        %551 = vmatpush1.xpose.msra.mxu0 0.0
        %552 = vmatprep.subr.mxu0 0.0
        %553 = vmatpush1.xpose.msra.mxu0 0.0
        %554 = vmatprep.subr.mxu0 0.0
        %555 = vmatpush1.xpose.msra.mxu0 0.0
        %556 = vmatprep.subr.mxu0 0.0
        %557 = vmatpush1.xpose.msra.mxu0 0.0
        %558 = vmatprep.subr.mxu0 0.0
        %559 = vmatpush1.xpose.msra.mxu0 0.0
        %560 = vmatprep.subr.mxu0 0.0
        %561 = vmatpush1.xpose.msra.mxu0 0.0
        %562 = vmatprep.subr.mxu0 0.0
        %563 = vmatpush1.xpose.msra.mxu0 0.0
        %564 = vmatprep.subr.mxu0 0.0
        %565 = vmatpush1.xpose.msra.mxu0 0.0
        %566 = vmatprep.subr.mxu0 0.0
        %567 = vmatpush1.xpose.msra.mxu0 0.0
        %568 = vmatprep.subr.mxu0 0.0
        %569 = vmatpush1.xpose.msra.mxu0 0.0
        %570 = vmatprep.subr.mxu0 0.0
        %571 = vmatpush1.xpose.msra.mxu0 0.0
        %572 = vmatprep.subr.mxu0 0.0
        %573 = vmatpush1.xpose.msra.mxu0 0.0
        %574 = vmatprep.subr.mxu0 0.0
        %575 = vmatpush1.xpose.msra.mxu0 0.0
        %576 = vmatprep.mubr.f32.mxu0 0.0
        %577 = vmatmul.mubr.f32.gmra.mrb[0].mxu0 %v508
        %v578 = vpop.f32.mrb[0].mxu0
        %v579 = vadd.f32 0.0, %v578
        %v580 = vpop.f32.mrb[0].mxu0
        %581 = vdwg.mxu0
        %v583 = vunpack.c.l.s4 1983009808
        %v584 = vunpack.c.0.s8 %v583
        %v585 = vlaneseq
        %v586 = vshrl.u32 %v585, 7
        %v587 = vsub.s32 %v584, %v586
        %v588 = vrot.slane %v391, %v587
        %589 = vrot.lane.b32.xlu0 %v588, 96
        %v590 = vpop.permute.xlu0 %589
        %v592 = vsel %vm422, %v407, 0
        %v594 = vsel %vm422, %v590, 0
        %596 = vmatprep.subr.mxu0 0.0
        %597 = vmatpush1.xpose.msra.mxu0 %v594
        %598 = vmatprep.subr.mxu0 0.0
        %599 = vmatpush1.xpose.msra.mxu0 0.0
        %600 = vmatprep.subr.mxu0 0.0
        %601 = vmatpush1.xpose.msra.mxu0 0.0
        %602 = vmatprep.subr.mxu0 0.0
        %603 = vmatpush1.xpose.msra.mxu0 0.0
        %604 = vmatprep.subr.mxu0 0.0
        %605 = vmatpush1.xpose.msra.mxu0 0.0
        %606 = vmatprep.subr.mxu0 0.0
        %607 = vmatpush1.xpose.msra.mxu0 0.0
        %608 = vmatprep.subr.mxu0 0.0
        %609 = vmatpush1.xpose.msra.mxu0 0.0
        %610 = vmatprep.subr.mxu0 0.0
        %611 = vmatpush1.xpose.msra.mxu0 0.0
        %612 = vmatprep.subr.mxu0 0.0
        %613 = vmatpush1.xpose.msra.mxu0 0.0
        %614 = vmatprep.subr.mxu0 0.0
        %615 = vmatpush1.xpose.msra.mxu0 0.0
        %616 = vmatprep.subr.mxu0 0.0
        %617 = vmatpush1.xpose.msra.mxu0 0.0
        %618 = vmatprep.subr.mxu0 0.0
        %619 = vmatpush1.xpose.msra.mxu0 0.0
        %620 = vmatprep.subr.mxu0 0.0
        %621 = vmatpush1.xpose.msra.mxu0 0.0
        %622 = vmatprep.subr.mxu0 0.0
        %623 = vmatpush1.xpose.msra.mxu0 0.0
        %624 = vmatprep.subr.mxu0 0.0
        %625 = vmatpush1.xpose.msra.mxu0 0.0
        %626 = vmatprep.subr.mxu0 0.0
        %627 = vmatpush1.xpose.msra.mxu0 0.0
        %628 = vmatprep.subr.mxu0 0.0
        %629 = vmatpush1.xpose.msra.mxu0 0.0
        %630 = vmatprep.subr.mxu0 0.0
        %631 = vmatpush1.xpose.msra.mxu0 0.0
        %632 = vmatprep.subr.mxu0 0.0
        %633 = vmatpush1.xpose.msra.mxu0 0.0
        %634 = vmatprep.subr.mxu0 0.0
        %635 = vmatpush1.xpose.msra.mxu0 0.0
        %636 = vmatprep.subr.mxu0 0.0
        %637 = vmatpush1.xpose.msra.mxu0 0.0
        %638 = vmatprep.subr.mxu0 0.0
        %639 = vmatpush1.xpose.msra.mxu0 0.0
        %640 = vmatprep.subr.mxu0 0.0
        %641 = vmatpush1.xpose.msra.mxu0 0.0
        %642 = vmatprep.subr.mxu0 0.0
        %643 = vmatpush1.xpose.msra.mxu0 0.0
        %644 = vmatprep.subr.mxu0 0.0
        %645 = vmatpush1.xpose.msra.mxu0 0.0
        %646 = vmatprep.subr.mxu0 0.0
        %647 = vmatpush1.xpose.msra.mxu0 0.0
        %648 = vmatprep.subr.mxu0 0.0
        %649 = vmatpush1.xpose.msra.mxu0 0.0
        %650 = vmatprep.subr.mxu0 0.0
        %651 = vmatpush1.xpose.msra.mxu0 0.0
        %652 = vmatprep.subr.mxu0 0.0
        %653 = vmatpush1.xpose.msra.mxu0 0.0
        %654 = vmatprep.subr.mxu0 0.0
        %655 = vmatpush1.xpose.msra.mxu0 0.0
        %656 = vmatprep.subr.mxu0 0.0
        %657 = vmatpush1.xpose.msra.mxu0 0.0
        %658 = vmatprep.subr.mxu0 0.0
        %659 = vmatpush1.xpose.msra.mxu0 0.0
        %660 = vmatprep.mubr.f32.mxu0 0.0
        %661 = vmatmul.mubr.f32.gmra.mrb[0].mxu0 %v592
        %v662 = vpop.f32.mrb[0].mxu0
        %v663 = vadd.f32 0.0, %v662
        %v664 = vpop.f32.mrb[0].mxu0
        %665 = vdwg.mxu0
        %v667 = vunpack.c.l.s4 1983009808
        %v668 = vunpack.c.0.s8 %v667
        %v669 = vlaneseq
        %v670 = vshrl.u32 %v669, 7
        %v671 = vsub.s32 %v668, %v670
        %v672 = vrot.slane %v393, %v671
        %673 = vrot.lane.b32.xlu0 %v672, 96
        %v674 = vpop.permute.xlu0 %673
        %v676 = vsel %vm422, %v408, 0
        %v678 = vsel %vm422, %v674, 0
        %680 = vmatprep.subr.mxu0 0.0
        %681 = vmatpush1.xpose.msra.mxu0 %v678
        %682 = vmatprep.subr.mxu0 0.0
        %683 = vmatpush1.xpose.msra.mxu0 0.0
        %684 = vmatprep.subr.mxu0 0.0
        %685 = vmatpush1.xpose.msra.mxu0 0.0
        %686 = vmatprep.subr.mxu0 0.0
        %687 = vmatpush1.xpose.msra.mxu0 0.0
        %688 = vmatprep.subr.mxu0 0.0
        %689 = vmatpush1.xpose.msra.mxu0 0.0
        %690 = vmatprep.subr.mxu0 0.0
        %691 = vmatpush1.xpose.msra.mxu0 0.0
        %692 = vmatprep.subr.mxu0 0.0
        %693 = vmatpush1.xpose.msra.mxu0 0.0
        %694 = vmatprep.subr.mxu0 0.0
        %695 = vmatpush1.xpose.msra.mxu0 0.0
        %696 = vmatprep.subr.mxu0 0.0
        %697 = vmatpush1.xpose.msra.mxu0 0.0
        %698 = vmatprep.subr.mxu0 0.0
        %699 = vmatpush1.xpose.msra.mxu0 0.0
        %700 = vmatprep.subr.mxu0 0.0
        %701 = vmatpush1.xpose.msra.mxu0 0.0
        %702 = vmatprep.subr.mxu0 0.0
        %703 = vmatpush1.xpose.msra.mxu0 0.0
        %704 = vmatprep.subr.mxu0 0.0
        %705 = vmatpush1.xpose.msra.mxu0 0.0
        %706 = vmatprep.subr.mxu0 0.0
        %707 = vmatpush1.xpose.msra.mxu0 0.0
        %708 = vmatprep.subr.mxu0 0.0
        %709 = vmatpush1.xpose.msra.mxu0 0.0
        %710 = vmatprep.subr.mxu0 0.0
        %711 = vmatpush1.xpose.msra.mxu0 0.0
        %712 = vmatprep.subr.mxu0 0.0
        %713 = vmatpush1.xpose.msra.mxu0 0.0
        %714 = vmatprep.subr.mxu0 0.0
        %715 = vmatpush1.xpose.msra.mxu0 0.0
        %716 = vmatprep.subr.mxu0 0.0
        %717 = vmatpush1.xpose.msra.mxu0 0.0
        %718 = vmatprep.subr.mxu0 0.0
        %719 = vmatpush1.xpose.msra.mxu0 0.0
        %720 = vmatprep.subr.mxu0 0.0
        %721 = vmatpush1.xpose.msra.mxu0 0.0
        %722 = vmatprep.subr.mxu0 0.0
        %723 = vmatpush1.xpose.msra.mxu0 0.0
        %724 = vmatprep.subr.mxu0 0.0
        %725 = vmatpush1.xpose.msra.mxu0 0.0
        %726 = vmatprep.subr.mxu0 0.0
        %727 = vmatpush1.xpose.msra.mxu0 0.0
        %728 = vmatprep.subr.mxu0 0.0
        %729 = vmatpush1.xpose.msra.mxu0 0.0
        %730 = vmatprep.subr.mxu0 0.0
        %731 = vmatpush1.xpose.msra.mxu0 0.0
        %732 = vmatprep.subr.mxu0 0.0
        %733 = vmatpush1.xpose.msra.mxu0 0.0
        %734 = vmatprep.subr.mxu0 0.0
        %735 = vmatpush1.xpose.msra.mxu0 0.0
        %736 = vmatprep.subr.mxu0 0.0
        %737 = vmatpush1.xpose.msra.mxu0 0.0
        %738 = vmatprep.subr.mxu0 0.0
        %739 = vmatpush1.xpose.msra.mxu0 0.0
        %740 = vmatprep.subr.mxu0 0.0
        %741 = vmatpush1.xpose.msra.mxu0 0.0
        %742 = vmatprep.subr.mxu0 0.0
        %743 = vmatpush1.xpose.msra.mxu0 0.0
        %744 = vmatprep.mubr.f32.mxu0 0.0
        %745 = vmatmul.mubr.f32.gmra.mrb[0].mxu0 %v676
        %v746 = vpop.f32.mrb[0].mxu0
        %v747 = vadd.f32 0.0, %v746
        %v748 = vpop.f32.mrb[0].mxu0
        %749 = vdwg.mxu0
        %vm750 = vcmask 9216
        %v751 = vsel %vm750, %v495, -inf
        %752 = vmax.xlane.f32.xlu0 %v751
        %v753 = vpop.xlane.xlu0 %752
        %v754 = vsel %vm750, %v579, -inf
        %755 = vmax.xlane.f32.xlu0 %v754
        %v756 = vpop.xlane.xlu0 %755
        %v757 = vsel %vm750, %v663, -inf
        %758 = vmax.xlane.f32.xlu0 %v757
        %v759 = vpop.xlane.xlu0 %758
        %v760 = vsel %vm750, %v747, -inf
        %761 = vmax.xlane.f32.xlu0 %v760
        %v762 = vpop.xlane.xlu0 %761
        %v763 = vsub.f32 %v495, %v753
        %v764 = vsub.f32 %v579, %v756
        %v765 = vsub.f32 %v663, %v759
        %v766 = vsub.f32 %v747, %v762
        %v767 = vmul.f32 %v763, 1.442695
        %v768 = vpow.pop %v767
        %v769 = vmul.f32 %v764, 1.442695
        %v770 = vpow.pop %v769
        %v771 = vmul.f32 %v765, 1.442695
        %v772 = vpow.pop %v771
        %v773 = vmul.f32 %v766, 1.442695
        %v774 = vpow.pop %v773
        %v775 = vsel %vm750, %v768, 0.0
        %776 = vadd.xlane.f32.xlu0 %v775
        %v777 = vpop.xlane.xlu0 %776
        %v778 = vsel %vm750, %v770, 0.0
        %779 = vadd.xlane.f32.xlu0 %v778
        %v780 = vpop.xlane.xlu0 %779
        %v781 = vsel %vm750, %v772, 0.0
        %782 = vadd.xlane.f32.xlu0 %v781
        %v783 = vpop.xlane.xlu0 %782
        %v784 = vsel %vm750, %v774, 0.0
        %785 = vadd.xlane.f32.xlu0 %v784
        %v786 = vpop.xlane.xlu0 %785
        %v787 = vrcp.pop %v777
        %v788 = vrcp.pop %v780
        %v789 = vrcp.pop %v783
        %v790 = vrcp.pop %v786
        %v791 = vmul.f32 %v768, %v787
        %v792 = vmul.f32 %v770, %v788
        %v793 = vmul.f32 %v772, %v789
        %v794 = vmul.f32 %v774, %v790
        %795 = vrot.lane.b32.xlu0 %v419, 64
        %v796 = vpop.permute.xlu0 %795
        %vm797 = vcmask 15360
        %v799 = vsel %vm797, %v791, 0
        %vm801 = vcmask 1041408
        %v802 = vsel %vm801, %v796, 0
        %804 = vmatprep.subr.mxu0 0.0
        %805 = vmatpush1.msra.mxu0 %v802
        %806 = vmatprep.subr.mxu0 0.0
        %807 = vmatpush1.msra.mxu0 0.0
        %808 = vmatprep.subr.mxu0 0.0
        %809 = vmatpush1.msra.mxu0 0.0
        %810 = vmatprep.subr.mxu0 0.0
        %811 = vmatpush1.msra.mxu0 0.0
        %812 = vmatprep.subr.mxu0 0.0
        %813 = vmatpush1.msra.mxu0 0.0
        %814 = vmatprep.subr.mxu0 0.0
        %815 = vmatpush1.msra.mxu0 0.0
        %816 = vmatprep.subr.mxu0 0.0
        %817 = vmatpush1.msra.mxu0 0.0
        %818 = vmatprep.subr.mxu0 0.0
        %819 = vmatpush1.msra.mxu0 0.0
        %820 = vmatprep.subr.mxu0 0.0
        %821 = vmatpush1.msra.mxu0 0.0
        %822 = vmatprep.subr.mxu0 0.0
        %823 = vmatpush1.msra.mxu0 0.0
        %824 = vmatprep.subr.mxu0 0.0
        %825 = vmatpush1.msra.mxu0 0.0
        %826 = vmatprep.subr.mxu0 0.0
        %827 = vmatpush1.msra.mxu0 0.0
        %828 = vmatprep.subr.mxu0 0.0
        %829 = vmatpush1.msra.mxu0 0.0
        %830 = vmatprep.subr.mxu0 0.0
        %831 = vmatpush1.msra.mxu0 0.0
        %832 = vmatprep.subr.mxu0 0.0
        %833 = vmatpush1.msra.mxu0 0.0
        %834 = vmatprep.subr.mxu0 0.0
        %835 = vmatpush1.msra.mxu0 0.0
        %836 = vmatprep.subr.mxu0 0.0
        %837 = vmatpush1.msra.mxu0 0.0
        %838 = vmatprep.subr.mxu0 0.0
        %839 = vmatpush1.msra.mxu0 0.0
        %840 = vmatprep.subr.mxu0 0.0
        %841 = vmatpush1.msra.mxu0 0.0
        %842 = vmatprep.subr.mxu0 0.0
        %843 = vmatpush1.msra.mxu0 0.0
        %844 = vmatprep.subr.mxu0 0.0
        %845 = vmatpush1.msra.mxu0 0.0
        %846 = vmatprep.subr.mxu0 0.0
        %847 = vmatpush1.msra.mxu0 0.0
        %848 = vmatprep.subr.mxu0 0.0
        %849 = vmatpush1.msra.mxu0 0.0
        %850 = vmatprep.subr.mxu0 0.0
        %851 = vmatpush1.msra.mxu0 0.0
        %852 = vmatprep.subr.mxu0 0.0
        %853 = vmatpush1.msra.mxu0 0.0
        %854 = vmatprep.subr.mxu0 0.0
        %855 = vmatpush1.msra.mxu0 0.0
        %856 = vmatprep.subr.mxu0 0.0
        %857 = vmatpush1.msra.mxu0 0.0
        %858 = vmatprep.subr.mxu0 0.0
        %859 = vmatpush1.msra.mxu0 0.0
        %860 = vmatprep.subr.mxu0 0.0
        %861 = vmatpush1.msra.mxu0 0.0
        %862 = vmatprep.subr.mxu0 0.0
        %863 = vmatpush1.msra.mxu0 0.0
        %864 = vmatprep.subr.mxu0 0.0
        %865 = vmatpush1.msra.mxu0 0.0
        %866 = vmatprep.subr.mxu0 0.0
        %867 = vmatpush1.msra.mxu0 0.0
        %868 = vmatprep.mubr.f32.mxu0 0.0
        %869 = vmatmul.mubr.f32.gmra.mrb[0].mxu0 %v799
        %v870 = vpop.f32.mrb[0].mxu0
        %v871 = vadd.f32 0.0, %v870
        %v872 = vpop.f32.mrb[0].mxu0
        %873 = vdwg.mxu0
        %874 = vrot.lane.b32.xlu0 %v504, 64
        %v875 = vpop.permute.xlu0 %874
        %v877 = vsel %vm797, %v792, 0
        %v879 = vsel %vm801, %v875, 0
        %881 = vmatprep.subr.mxu0 0.0
        %882 = vmatpush1.msra.mxu0 %v879
        %883 = vmatprep.subr.mxu0 0.0
        %884 = vmatpush1.msra.mxu0 0.0
        %885 = vmatprep.subr.mxu0 0.0
        %886 = vmatpush1.msra.mxu0 0.0
        %887 = vmatprep.subr.mxu0 0.0
        %888 = vmatpush1.msra.mxu0 0.0
        %889 = vmatprep.subr.mxu0 0.0
        %890 = vmatpush1.msra.mxu0 0.0
        %891 = vmatprep.subr.mxu0 0.0
        %892 = vmatpush1.msra.mxu0 0.0
        %893 = vmatprep.subr.mxu0 0.0
        %894 = vmatpush1.msra.mxu0 0.0
        %895 = vmatprep.subr.mxu0 0.0
        %896 = vmatpush1.msra.mxu0 0.0
        %897 = vmatprep.subr.mxu0 0.0
        %898 = vmatpush1.msra.mxu0 0.0
        %899 = vmatprep.subr.mxu0 0.0
        %900 = vmatpush1.msra.mxu0 0.0
        %901 = vmatprep.subr.mxu0 0.0
        %902 = vmatpush1.msra.mxu0 0.0
        %903 = vmatprep.subr.mxu0 0.0
        %904 = vmatpush1.msra.mxu0 0.0
        %905 = vmatprep.subr.mxu0 0.0
        %906 = vmatpush1.msra.mxu0 0.0
        %907 = vmatprep.subr.mxu0 0.0
        %908 = vmatpush1.msra.mxu0 0.0
        %909 = vmatprep.subr.mxu0 0.0
        %910 = vmatpush1.msra.mxu0 0.0
        %911 = vmatprep.subr.mxu0 0.0
        %912 = vmatpush1.msra.mxu0 0.0
        %913 = vmatprep.subr.mxu0 0.0
        %914 = vmatpush1.msra.mxu0 0.0
        %915 = vmatprep.subr.mxu0 0.0
        %916 = vmatpush1.msra.mxu0 0.0
        %917 = vmatprep.subr.mxu0 0.0
        %918 = vmatpush1.msra.mxu0 0.0
        %919 = vmatprep.subr.mxu0 0.0
        %920 = vmatpush1.msra.mxu0 0.0
        %921 = vmatprep.subr.mxu0 0.0
        %922 = vmatpush1.msra.mxu0 0.0
        %923 = vmatprep.subr.mxu0 0.0
        %924 = vmatpush1.msra.mxu0 0.0
        %925 = vmatprep.subr.mxu0 0.0
        %926 = vmatpush1.msra.mxu0 0.0
        %927 = vmatprep.subr.mxu0 0.0
        %928 = vmatpush1.msra.mxu0 0.0
        %929 = vmatprep.subr.mxu0 0.0
        %930 = vmatpush1.msra.mxu0 0.0
        %931 = vmatprep.subr.mxu0 0.0
        %932 = vmatpush1.msra.mxu0 0.0
        %933 = vmatprep.subr.mxu0 0.0
        %934 = vmatpush1.msra.mxu0 0.0
        %935 = vmatprep.subr.mxu0 0.0
        %936 = vmatpush1.msra.mxu0 0.0
        %937 = vmatprep.subr.mxu0 0.0
        %938 = vmatpush1.msra.mxu0 0.0
        %939 = vmatprep.subr.mxu0 0.0
        %940 = vmatpush1.msra.mxu0 0.0
        %941 = vmatprep.subr.mxu0 0.0
        %942 = vmatpush1.msra.mxu0 0.0
        %943 = vmatprep.subr.mxu0 0.0
        %944 = vmatpush1.msra.mxu0 0.0
        %945 = vmatprep.mubr.f32.mxu0 0.0
        %946 = vmatmul.mubr.f32.gmra.mrb[0].mxu0 %v877
        %v947 = vpop.f32.mrb[0].mxu0
        %v948 = vadd.f32 0.0, %v947
        %v949 = vpop.f32.mrb[0].mxu0
        %950 = vdwg.mxu0
        %951 = vrot.lane.b32.xlu0 %v588, 64
        %v952 = vpop.permute.xlu0 %951
        %v954 = vsel %vm797, %v793, 0
        %v956 = vsel %vm801, %v952, 0
        %958 = vmatprep.subr.mxu0 0.0
        %959 = vmatpush1.msra.mxu0 %v956
        %960 = vmatprep.subr.mxu0 0.0
        %961 = vmatpush1.msra.mxu0 0.0
        %962 = vmatprep.subr.mxu0 0.0
        %963 = vmatpush1.msra.mxu0 0.0
        %964 = vmatprep.subr.mxu0 0.0
        %965 = vmatpush1.msra.mxu0 0.0
        %966 = vmatprep.subr.mxu0 0.0
        %967 = vmatpush1.msra.mxu0 0.0
        %968 = vmatprep.subr.mxu0 0.0
        %969 = vmatpush1.msra.mxu0 0.0
        %970 = vmatprep.subr.mxu0 0.0
        %971 = vmatpush1.msra.mxu0 0.0
        %972 = vmatprep.subr.mxu0 0.0
        %973 = vmatpush1.msra.mxu0 0.0
        %974 = vmatprep.subr.mxu0 0.0
        %975 = vmatpush1.msra.mxu0 0.0
        %976 = vmatprep.subr.mxu0 0.0
        %977 = vmatpush1.msra.mxu0 0.0
        %978 = vmatprep.subr.mxu0 0.0
        %979 = vmatpush1.msra.mxu0 0.0
        %980 = vmatprep.subr.mxu0 0.0
        %981 = vmatpush1.msra.mxu0 0.0
        %982 = vmatprep.subr.mxu0 0.0
        %983 = vmatpush1.msra.mxu0 0.0
        %984 = vmatprep.subr.mxu0 0.0
        %985 = vmatpush1.msra.mxu0 0.0
        %986 = vmatprep.subr.mxu0 0.0
        %987 = vmatpush1.msra.mxu0 0.0
        %988 = vmatprep.subr.mxu0 0.0
        %989 = vmatpush1.msra.mxu0 0.0
        %990 = vmatprep.subr.mxu0 0.0
        %991 = vmatpush1.msra.mxu0 0.0
        %992 = vmatprep.subr.mxu0 0.0
        %993 = vmatpush1.msra.mxu0 0.0
        %994 = vmatprep.subr.mxu0 0.0
        %995 = vmatpush1.msra.mxu0 0.0
        %996 = vmatprep.subr.mxu0 0.0
        %997 = vmatpush1.msra.mxu0 0.0
        %998 = vmatprep.subr.mxu0 0.0
        %999 = vmatpush1.msra.mxu0 0.0
        %1000 = vmatprep.subr.mxu0 0.0
        %1001 = vmatpush1.msra.mxu0 0.0
        %1002 = vmatprep.subr.mxu0 0.0
        %1003 = vmatpush1.msra.mxu0 0.0
        %1004 = vmatprep.subr.mxu0 0.0
        %1005 = vmatpush1.msra.mxu0 0.0
        %1006 = vmatprep.subr.mxu0 0.0
        %1007 = vmatpush1.msra.mxu0 0.0
        %1008 = vmatprep.subr.mxu0 0.0
        %1009 = vmatpush1.msra.mxu0 0.0
        %1010 = vmatprep.subr.mxu0 0.0
        %1011 = vmatpush1.msra.mxu0 0.0
        %1012 = vmatprep.subr.mxu0 0.0
        %1013 = vmatpush1.msra.mxu0 0.0
        %1014 = vmatprep.subr.mxu0 0.0
        %1015 = vmatpush1.msra.mxu0 0.0
        %1016 = vmatprep.subr.mxu0 0.0
        %1017 = vmatpush1.msra.mxu0 0.0
        %1018 = vmatprep.subr.mxu0 0.0
        %1019 = vmatpush1.msra.mxu0 0.0
        %1020 = vmatprep.subr.mxu0 0.0
        %1021 = vmatpush1.msra.mxu0 0.0
        %1022 = vmatprep.mubr.f32.mxu0 0.0
        %1023 = vmatmul.mubr.f32.gmra.mrb[0].mxu0 %v954
        %v1024 = vpop.f32.mrb[0].mxu0
        %v1025 = vadd.f32 0.0, %v1024
        %v1026 = vpop.f32.mrb[0].mxu0
        %1027 = vdwg.mxu0
        %1028 = vrot.lane.b32.xlu0 %v672, 64
        %v1029 = vpop.permute.xlu0 %1028
        %v1031 = vsel %vm797, %v794, 0
        %v1033 = vsel %vm801, %v1029, 0
        %1035 = vmatprep.subr.mxu0 0.0
        %1036 = vmatpush1.msra.mxu0 %v1033
        %1037 = vmatprep.subr.mxu0 0.0
        %1038 = vmatpush1.msra.mxu0 0.0
        %1039 = vmatprep.subr.mxu0 0.0
        %1040 = vmatpush1.msra.mxu0 0.0
        %1041 = vmatprep.subr.mxu0 0.0
        %1042 = vmatpush1.msra.mxu0 0.0
        %1043 = vmatprep.subr.mxu0 0.0
        %1044 = vmatpush1.msra.mxu0 0.0
        %1045 = vmatprep.subr.mxu0 0.0
        %1046 = vmatpush1.msra.mxu0 0.0
        %1047 = vmatprep.subr.mxu0 0.0
        %1048 = vmatpush1.msra.mxu0 0.0
        %1049 = vmatprep.subr.mxu0 0.0
        %1050 = vmatpush1.msra.mxu0 0.0
        %1051 = vmatprep.subr.mxu0 0.0
        %1052 = vmatpush1.msra.mxu0 0.0
        %1053 = vmatprep.subr.mxu0 0.0
        %1054 = vmatpush1.msra.mxu0 0.0
        %1055 = vmatprep.subr.mxu0 0.0
        %1056 = vmatpush1.msra.mxu0 0.0
        %1057 = vmatprep.subr.mxu0 0.0
        %1058 = vmatpush1.msra.mxu0 0.0
        %1059 = vmatprep.subr.mxu0 0.0
        %1060 = vmatpush1.msra.mxu0 0.0
        %1061 = vmatprep.subr.mxu0 0.0
        %1062 = vmatpush1.msra.mxu0 0.0
        %1063 = vmatprep.subr.mxu0 0.0
        %1064 = vmatpush1.msra.mxu0 0.0
        %1065 = vmatprep.subr.mxu0 0.0
        %1066 = vmatpush1.msra.mxu0 0.0
        %1067 = vmatprep.subr.mxu0 0.0
        %1068 = vmatpush1.msra.mxu0 0.0
        %1069 = vmatprep.subr.mxu0 0.0
        %1070 = vmatpush1.msra.mxu0 0.0
        %1071 = vmatprep.subr.mxu0 0.0
        %1072 = vmatpush1.msra.mxu0 0.0
        %1073 = vmatprep.subr.mxu0 0.0
        %1074 = vmatpush1.msra.mxu0 0.0
        %1075 = vmatprep.subr.mxu0 0.0
        %1076 = vmatpush1.msra.mxu0 0.0
        %1077 = vmatprep.subr.mxu0 0.0
        %1078 = vmatpush1.msra.mxu0 0.0
        %1079 = vmatprep.subr.mxu0 0.0
        %1080 = vmatpush1.msra.mxu0 0.0
        %1081 = vmatprep.subr.mxu0 0.0
        %1082 = vmatpush1.msra.mxu0 0.0
        %1083 = vmatprep.subr.mxu0 0.0
        %1084 = vmatpush1.msra.mxu0 0.0
        %1085 = vmatprep.subr.mxu0 0.0
        %1086 = vmatpush1.msra.mxu0 0.0
        %1087 = vmatprep.subr.mxu0 0.0
        %1088 = vmatpush1.msra.mxu0 0.0
        %1089 = vmatprep.subr.mxu0 0.0
        %1090 = vmatpush1.msra.mxu0 0.0
        %1091 = vmatprep.subr.mxu0 0.0
        %1092 = vmatpush1.msra.mxu0 0.0
        %1093 = vmatprep.subr.mxu0 0.0
        %1094 = vmatpush1.msra.mxu0 0.0
        %1095 = vmatprep.subr.mxu0 0.0
        %1096 = vmatpush1.msra.mxu0 0.0
        %1097 = vmatprep.subr.mxu0 0.0
        %1098 = vmatpush1.msra.mxu0 0.0
        %1099 = vmatprep.mubr.f32.mxu0 0.0
        %1100 = vmatmul.mubr.f32.gmra.mrb[0].mxu0 %v1031
        %v1101 = vpop.f32.mrb[0].mxu0
        %v1102 = vadd.f32 0.0, %v1101
        %v1103 = vpop.f32.mrb[0].mxu0
        %1104 = vdwg.mxu0
        %v1106 = vunpack.c.l.s4 1983009808
        %v1107 = vunpack.c.0.s8 %v1106
        %v1108 = vlaneseq
        %v1109 = vshrl.u32 %v1108, 7
        %v1110 = vsub.s32 %v1107, %v1109
        %v1111 = vrot.slane %v405, %v1110
        %1112 = vrot.lane.b32.xlu0 %v1111, 120
        %v1113 = vpop.permute.xlu0 %1112
        %1114 = vrot.lane.b32.xlu0 %v419, 88
        %v1115 = vpop.permute.xlu0 %1114
        %v1116 = vsel %vm422, %v1113, 0
        %v1118 = vsel %vm422, %v1115, 0
        %1120 = vmatprep.subr.mxu0 0.0
        %1121 = vmatpush1.xpose.msra.mxu0 %v1118
        %1122 = vmatprep.subr.mxu0 0.0
        %1123 = vmatpush1.xpose.msra.mxu0 0.0
        %1124 = vmatprep.subr.mxu0 0.0
        %1125 = vmatpush1.xpose.msra.mxu0 0.0
        %1126 = vmatprep.subr.mxu0 0.0
        %1127 = vmatpush1.xpose.msra.mxu0 0.0
        %1128 = vmatprep.subr.mxu0 0.0
        %1129 = vmatpush1.xpose.msra.mxu0 0.0
        %1130 = vmatprep.subr.mxu0 0.0
        %1131 = vmatpush1.xpose.msra.mxu0 0.0
        %1132 = vmatprep.subr.mxu0 0.0
        %1133 = vmatpush1.xpose.msra.mxu0 0.0
        %1134 = vmatprep.subr.mxu0 0.0
        %1135 = vmatpush1.xpose.msra.mxu0 0.0
        %1136 = vmatprep.subr.mxu0 0.0
        %1137 = vmatpush1.xpose.msra.mxu0 0.0
        %1138 = vmatprep.subr.mxu0 0.0
        %1139 = vmatpush1.xpose.msra.mxu0 0.0
        %1140 = vmatprep.subr.mxu0 0.0
        %1141 = vmatpush1.xpose.msra.mxu0 0.0
        %1142 = vmatprep.subr.mxu0 0.0
        %1143 = vmatpush1.xpose.msra.mxu0 0.0
        %1144 = vmatprep.subr.mxu0 0.0
        %1145 = vmatpush1.xpose.msra.mxu0 0.0
        %1146 = vmatprep.subr.mxu0 0.0
        %1147 = vmatpush1.xpose.msra.mxu0 0.0
        %1148 = vmatprep.subr.mxu0 0.0
        %1149 = vmatpush1.xpose.msra.mxu0 0.0
        %1150 = vmatprep.subr.mxu0 0.0
        %1151 = vmatpush1.xpose.msra.mxu0 0.0
        %1152 = vmatprep.subr.mxu0 0.0
        %1153 = vmatpush1.xpose.msra.mxu0 0.0
        %1154 = vmatprep.subr.mxu0 0.0
        %1155 = vmatpush1.xpose.msra.mxu0 0.0
        %1156 = vmatprep.subr.mxu0 0.0
        %1157 = vmatpush1.xpose.msra.mxu0 0.0
        %1158 = vmatprep.subr.mxu0 0.0
        %1159 = vmatpush1.xpose.msra.mxu0 0.0
        %1160 = vmatprep.subr.mxu0 0.0
        %1161 = vmatpush1.xpose.msra.mxu0 0.0
        %1162 = vmatprep.subr.mxu0 0.0
        %1163 = vmatpush1.xpose.msra.mxu0 0.0
        %1164 = vmatprep.subr.mxu0 0.0
        %1165 = vmatpush1.xpose.msra.mxu0 0.0
        %1166 = vmatprep.subr.mxu0 0.0
        %1167 = vmatpush1.xpose.msra.mxu0 0.0
        %1168 = vmatprep.subr.mxu0 0.0
        %1169 = vmatpush1.xpose.msra.mxu0 0.0
        %1170 = vmatprep.subr.mxu0 0.0
        %1171 = vmatpush1.xpose.msra.mxu0 0.0
        %1172 = vmatprep.subr.mxu0 0.0
        %1173 = vmatpush1.xpose.msra.mxu0 0.0
        %1174 = vmatprep.subr.mxu0 0.0
        %1175 = vmatpush1.xpose.msra.mxu0 0.0
        %1176 = vmatprep.subr.mxu0 0.0
        %1177 = vmatpush1.xpose.msra.mxu0 0.0
        %1178 = vmatprep.subr.mxu0 0.0
        %1179 = vmatpush1.xpose.msra.mxu0 0.0
        %1180 = vmatprep.subr.mxu0 0.0
        %1181 = vmatpush1.xpose.msra.mxu0 0.0
        %1182 = vmatprep.subr.mxu0 0.0
        %1183 = vmatpush1.xpose.msra.mxu0 0.0
        %1184 = vmatprep.mubr.f32.mxu0 0.0
        %1185 = vmatmul.mubr.f32.gmra.mrb[0].mxu0 %v1116
        %v1186 = vpop.f32.mrb[0].mxu0
        %v1187 = vadd.f32 0.0, %v1186
        %v1188 = vpop.f32.mrb[0].mxu0
        %1189 = vdwg.mxu0
        %v1191 = vunpack.c.l.s4 1983009808
        %v1192 = vunpack.c.0.s8 %v1191
        %v1193 = vlaneseq
        %v1194 = vshrl.u32 %v1193, 7
        %v1195 = vsub.s32 %v1192, %v1194
        %v1196 = vrot.slane %v406, %v1195
        %1197 = vrot.lane.b32.xlu0 %v1196, 120
        %v1198 = vpop.permute.xlu0 %1197
        %1199 = vrot.lane.b32.xlu0 %v504, 88
        %v1200 = vpop.permute.xlu0 %1199
        %v1201 = vsel %vm422, %v1198, 0
        %v1203 = vsel %vm422, %v1200, 0
        %1205 = vmatprep.subr.mxu0 0.0
        %1206 = vmatpush1.xpose.msra.mxu0 %v1203
        %1207 = vmatprep.subr.mxu0 0.0
        %1208 = vmatpush1.xpose.msra.mxu0 0.0
        %1209 = vmatprep.subr.mxu0 0.0
        %1210 = vmatpush1.xpose.msra.mxu0 0.0
        %1211 = vmatprep.subr.mxu0 0.0
        %1212 = vmatpush1.xpose.msra.mxu0 0.0
        %1213 = vmatprep.subr.mxu0 0.0
        %1214 = vmatpush1.xpose.msra.mxu0 0.0
        %1215 = vmatprep.subr.mxu0 0.0
        %1216 = vmatpush1.xpose.msra.mxu0 0.0
        %1217 = vmatprep.subr.mxu0 0.0
        %1218 = vmatpush1.xpose.msra.mxu0 0.0
        %1219 = vmatprep.subr.mxu0 0.0
        %1220 = vmatpush1.xpose.msra.mxu0 0.0
        %1221 = vmatprep.subr.mxu0 0.0
        %1222 = vmatpush1.xpose.msra.mxu0 0.0
        %1223 = vmatprep.subr.mxu0 0.0
        %1224 = vmatpush1.xpose.msra.mxu0 0.0
        %1225 = vmatprep.subr.mxu0 0.0
        %1226 = vmatpush1.xpose.msra.mxu0 0.0
        %1227 = vmatprep.subr.mxu0 0.0
        %1228 = vmatpush1.xpose.msra.mxu0 0.0
        %1229 = vmatprep.subr.mxu0 0.0
        %1230 = vmatpush1.xpose.msra.mxu0 0.0
        %1231 = vmatprep.subr.mxu0 0.0
        %1232 = vmatpush1.xpose.msra.mxu0 0.0
        %1233 = vmatprep.subr.mxu0 0.0
        %1234 = vmatpush1.xpose.msra.mxu0 0.0
        %1235 = vmatprep.subr.mxu0 0.0
        %1236 = vmatpush1.xpose.msra.mxu0 0.0
        %1237 = vmatprep.subr.mxu0 0.0
        %1238 = vmatpush1.xpose.msra.mxu0 0.0
        %1239 = vmatprep.subr.mxu0 0.0
        %1240 = vmatpush1.xpose.msra.mxu0 0.0
        %1241 = vmatprep.subr.mxu0 0.0
        %1242 = vmatpush1.xpose.msra.mxu0 0.0
        %1243 = vmatprep.subr.mxu0 0.0
        %1244 = vmatpush1.xpose.msra.mxu0 0.0
        %1245 = vmatprep.subr.mxu0 0.0
        %1246 = vmatpush1.xpose.msra.mxu0 0.0
        %1247 = vmatprep.subr.mxu0 0.0
        %1248 = vmatpush1.xpose.msra.mxu0 0.0
        %1249 = vmatprep.subr.mxu0 0.0
        %1250 = vmatpush1.xpose.msra.mxu0 0.0
        %1251 = vmatprep.subr.mxu0 0.0
        %1252 = vmatpush1.xpose.msra.mxu0 0.0
        %1253 = vmatprep.subr.mxu0 0.0
        %1254 = vmatpush1.xpose.msra.mxu0 0.0
        %1255 = vmatprep.subr.mxu0 0.0
        %1256 = vmatpush1.xpose.msra.mxu0 0.0
        %1257 = vmatprep.subr.mxu0 0.0
        %1258 = vmatpush1.xpose.msra.mxu0 0.0
        %1259 = vmatprep.subr.mxu0 0.0
        %1260 = vmatpush1.xpose.msra.mxu0 0.0
        %1261 = vmatprep.subr.mxu0 0.0
        %1262 = vmatpush1.xpose.msra.mxu0 0.0
        %1263 = vmatprep.subr.mxu0 0.0
        %1264 = vmatpush1.xpose.msra.mxu0 0.0
        %1265 = vmatprep.subr.mxu0 0.0
        %1266 = vmatpush1.xpose.msra.mxu0 0.0
        %1267 = vmatprep.subr.mxu0 0.0
        %1268 = vmatpush1.xpose.msra.mxu0 0.0
        %1269 = vmatprep.mubr.f32.mxu0 0.0
        %1270 = vmatmul.mubr.f32.gmra.mrb[0].mxu0 %v1201
        %v1271 = vpop.f32.mrb[0].mxu0
        %v1272 = vadd.f32 0.0, %v1271
        %v1273 = vpop.f32.mrb[0].mxu0
        %1274 = vdwg.mxu0
        %v1276 = vunpack.c.l.s4 1983009808
        %v1277 = vunpack.c.0.s8 %v1276
        %v1278 = vlaneseq
        %v1279 = vshrl.u32 %v1278, 7
        %v1280 = vsub.s32 %v1277, %v1279
        %v1281 = vrot.slane %v407, %v1280
        %1282 = vrot.lane.b32.xlu0 %v1281, 120
        %v1283 = vpop.permute.xlu0 %1282
        %1284 = vrot.lane.b32.xlu0 %v588, 88
        %v1285 = vpop.permute.xlu0 %1284
        %v1286 = vsel %vm422, %v1283, 0
        %v1288 = vsel %vm422, %v1285, 0
        %1290 = vmatprep.subr.mxu0 0.0
        %1291 = vmatpush1.xpose.msra.mxu0 %v1288
        %1292 = vmatprep.subr.mxu0 0.0
        %1293 = vmatpush1.xpose.msra.mxu0 0.0
        %1294 = vmatprep.subr.mxu0 0.0
        %1295 = vmatpush1.xpose.msra.mxu0 0.0
        %1296 = vmatprep.subr.mxu0 0.0
        %1297 = vmatpush1.xpose.msra.mxu0 0.0
        %1298 = vmatprep.subr.mxu0 0.0
        %1299 = vmatpush1.xpose.msra.mxu0 0.0
        %1300 = vmatprep.subr.mxu0 0.0
        %1301 = vmatpush1.xpose.msra.mxu0 0.0
        %1302 = vmatprep.subr.mxu0 0.0
        %1303 = vmatpush1.xpose.msra.mxu0 0.0
        %1304 = vmatprep.subr.mxu0 0.0
        %1305 = vmatpush1.xpose.msra.mxu0 0.0
        %1306 = vmatprep.subr.mxu0 0.0
        %1307 = vmatpush1.xpose.msra.mxu0 0.0
        %1308 = vmatprep.subr.mxu0 0.0
        %1309 = vmatpush1.xpose.msra.mxu0 0.0
        %1310 = vmatprep.subr.mxu0 0.0
        %1311 = vmatpush1.xpose.msra.mxu0 0.0
        %1312 = vmatprep.subr.mxu0 0.0
        %1313 = vmatpush1.xpose.msra.mxu0 0.0
        %1314 = vmatprep.subr.mxu0 0.0
        %1315 = vmatpush1.xpose.msra.mxu0 0.0
        %1316 = vmatprep.subr.mxu0 0.0
        %1317 = vmatpush1.xpose.msra.mxu0 0.0
        %1318 = vmatprep.subr.mxu0 0.0
        %1319 = vmatpush1.xpose.msra.mxu0 0.0
        %1320 = vmatprep.subr.mxu0 0.0
        %1321 = vmatpush1.xpose.msra.mxu0 0.0
        %1322 = vmatprep.subr.mxu0 0.0
        %1323 = vmatpush1.xpose.msra.mxu0 0.0
        %1324 = vmatprep.subr.mxu0 0.0
        %1325 = vmatpush1.xpose.msra.mxu0 0.0
        %1326 = vmatprep.subr.mxu0 0.0
        %1327 = vmatpush1.xpose.msra.mxu0 0.0
        %1328 = vmatprep.subr.mxu0 0.0
        %1329 = vmatpush1.xpose.msra.mxu0 0.0
        %1330 = vmatprep.subr.mxu0 0.0
        %1331 = vmatpush1.xpose.msra.mxu0 0.0
        %1332 = vmatprep.subr.mxu0 0.0
        %1333 = vmatpush1.xpose.msra.mxu0 0.0
        %1334 = vmatprep.subr.mxu0 0.0
        %1335 = vmatpush1.xpose.msra.mxu0 0.0
        %1336 = vmatprep.subr.mxu0 0.0
        %1337 = vmatpush1.xpose.msra.mxu0 0.0
        %1338 = vmatprep.subr.mxu0 0.0
        %1339 = vmatpush1.xpose.msra.mxu0 0.0
        %1340 = vmatprep.subr.mxu0 0.0
        %1341 = vmatpush1.xpose.msra.mxu0 0.0
        %1342 = vmatprep.subr.mxu0 0.0
        %1343 = vmatpush1.xpose.msra.mxu0 0.0
        %1344 = vmatprep.subr.mxu0 0.0
        %1345 = vmatpush1.xpose.msra.mxu0 0.0
        %1346 = vmatprep.subr.mxu0 0.0
        %1347 = vmatpush1.xpose.msra.mxu0 0.0
        %1348 = vmatprep.subr.mxu0 0.0
        %1349 = vmatpush1.xpose.msra.mxu0 0.0
        %1350 = vmatprep.subr.mxu0 0.0
        %1351 = vmatpush1.xpose.msra.mxu0 0.0
        %1352 = vmatprep.subr.mxu0 0.0
        %1353 = vmatpush1.xpose.msra.mxu0 0.0
        %1354 = vmatprep.mubr.f32.mxu0 0.0
        %1355 = vmatmul.mubr.f32.gmra.mrb[0].mxu0 %v1286
        %v1356 = vpop.f32.mrb[0].mxu0
        %v1357 = vadd.f32 0.0, %v1356
        %v1358 = vpop.f32.mrb[0].mxu0
        %1359 = vdwg.mxu0
        %v1361 = vunpack.c.l.s4 1983009808
        %v1362 = vunpack.c.0.s8 %v1361
        %v1363 = vlaneseq
        %v1364 = vshrl.u32 %v1363, 7
        %v1365 = vsub.s32 %v1362, %v1364
        %v1366 = vrot.slane %v408, %v1365
        %1367 = vrot.lane.b32.xlu0 %v1366, 120
        %v1368 = vpop.permute.xlu0 %1367
        %1369 = vrot.lane.b32.xlu0 %v672, 88
        %v1370 = vpop.permute.xlu0 %1369
        %v1371 = vsel %vm422, %v1368, 0
        %v1373 = vsel %vm422, %v1370, 0
        %1375 = vmatprep.subr.mxu0 0.0
        %1376 = vmatpush1.xpose.msra.mxu0 %v1373
        %1377 = vmatprep.subr.mxu0 0.0
        %1378 = vmatpush1.xpose.msra.mxu0 0.0
        %1379 = vmatprep.subr.mxu0 0.0
        %1380 = vmatpush1.xpose.msra.mxu0 0.0
        %1381 = vmatprep.subr.mxu0 0.0
        %1382 = vmatpush1.xpose.msra.mxu0 0.0
        %1383 = vmatprep.subr.mxu0 0.0
        %1384 = vmatpush1.xpose.msra.mxu0 0.0
        %1385 = vmatprep.subr.mxu0 0.0
        %1386 = vmatpush1.xpose.msra.mxu0 0.0
        %1387 = vmatprep.subr.mxu0 0.0
        %1388 = vmatpush1.xpose.msra.mxu0 0.0
        %1389 = vmatprep.subr.mxu0 0.0
        %1390 = vmatpush1.xpose.msra.mxu0 0.0
        %1391 = vmatprep.subr.mxu0 0.0
        %1392 = vmatpush1.xpose.msra.mxu0 0.0
        %1393 = vmatprep.subr.mxu0 0.0
        %1394 = vmatpush1.xpose.msra.mxu0 0.0
        %1395 = vmatprep.subr.mxu0 0.0
        %1396 = vmatpush1.xpose.msra.mxu0 0.0
        %1397 = vmatprep.subr.mxu0 0.0
        %1398 = vmatpush1.xpose.msra.mxu0 0.0
        %1399 = vmatprep.subr.mxu0 0.0
        %1400 = vmatpush1.xpose.msra.mxu0 0.0
        %1401 = vmatprep.subr.mxu0 0.0
        %1402 = vmatpush1.xpose.msra.mxu0 0.0
        %1403 = vmatprep.subr.mxu0 0.0
        %1404 = vmatpush1.xpose.msra.mxu0 0.0
        %1405 = vmatprep.subr.mxu0 0.0
        %1406 = vmatpush1.xpose.msra.mxu0 0.0
        %1407 = vmatprep.subr.mxu0 0.0
        %1408 = vmatpush1.xpose.msra.mxu0 0.0
        %1409 = vmatprep.subr.mxu0 0.0
        %1410 = vmatpush1.xpose.msra.mxu0 0.0
        %1411 = vmatprep.subr.mxu0 0.0
        %1412 = vmatpush1.xpose.msra.mxu0 0.0
        %1413 = vmatprep.subr.mxu0 0.0
        %1414 = vmatpush1.xpose.msra.mxu0 0.0
        %1415 = vmatprep.subr.mxu0 0.0
        %1416 = vmatpush1.xpose.msra.mxu0 0.0
        %1417 = vmatprep.subr.mxu0 0.0
        %1418 = vmatpush1.xpose.msra.mxu0 0.0
        %1419 = vmatprep.subr.mxu0 0.0
        %1420 = vmatpush1.xpose.msra.mxu0 0.0
        %1421 = vmatprep.subr.mxu0 0.0
        %1422 = vmatpush1.xpose.msra.mxu0 0.0
        %1423 = vmatprep.subr.mxu0 0.0
        %1424 = vmatpush1.xpose.msra.mxu0 0.0
        %1425 = vmatprep.subr.mxu0 0.0
        %1426 = vmatpush1.xpose.msra.mxu0 0.0
        %1427 = vmatprep.subr.mxu0 0.0
        %1428 = vmatpush1.xpose.msra.mxu0 0.0
        %1429 = vmatprep.subr.mxu0 0.0
        %1430 = vmatpush1.xpose.msra.mxu0 0.0
        %1431 = vmatprep.subr.mxu0 0.0
        %1432 = vmatpush1.xpose.msra.mxu0 0.0
        %1433 = vmatprep.subr.mxu0 0.0
        %1434 = vmatpush1.xpose.msra.mxu0 0.0
        %1435 = vmatprep.subr.mxu0 0.0
        %1436 = vmatpush1.xpose.msra.mxu0 0.0
        %1437 = vmatprep.subr.mxu0 0.0
        %1438 = vmatpush1.xpose.msra.mxu0 0.0
        %1439 = vmatprep.mubr.f32.mxu0 0.0
        %1440 = vmatmul.mubr.f32.gmra.mrb[0].mxu0 %v1371
        %v1441 = vpop.f32.mrb[0].mxu0
        %v1442 = vadd.f32 0.0, %v1441
        %v1443 = vpop.f32.mrb[0].mxu0
        %1444 = vdwg.mxu0
        %v1445 = vsel %vm750, %v1187, -inf
        %1446 = vmax.xlane.f32.xlu0 %v1445
        %v1447 = vpop.xlane.xlu0 %1446
        %v1448 = vsel %vm750, %v1272, -inf
        %1449 = vmax.xlane.f32.xlu0 %v1448
        %v1450 = vpop.xlane.xlu0 %1449
        %v1451 = vsel %vm750, %v1357, -inf
        %1452 = vmax.xlane.f32.xlu0 %v1451
        %v1453 = vpop.xlane.xlu0 %1452
        %v1454 = vsel %vm750, %v1442, -inf
        %1455 = vmax.xlane.f32.xlu0 %v1454
        %v1456 = vpop.xlane.xlu0 %1455
        %v1457 = vsub.f32 %v1187, %v1447
        %v1458 = vsub.f32 %v1272, %v1450
        %v1459 = vsub.f32 %v1357, %v1453
        %v1460 = vsub.f32 %v1442, %v1456
        %v1461 = vmul.f32 %v1457, 1.442695
        %v1462 = vpow.pop %v1461
        %v1463 = vmul.f32 %v1458, 1.442695
        %v1464 = vpow.pop %v1463
        %v1465 = vmul.f32 %v1459, 1.442695
        %v1466 = vpow.pop %v1465
        %v1467 = vmul.f32 %v1460, 1.442695
        %v1468 = vpow.pop %v1467
        %v1469 = vsel %vm750, %v1462, 0.0
        %1470 = vadd.xlane.f32.xlu0 %v1469
        %v1471 = vpop.xlane.xlu0 %1470
        %v1472 = vsel %vm750, %v1464, 0.0
        %1473 = vadd.xlane.f32.xlu0 %v1472
        %v1474 = vpop.xlane.xlu0 %1473
        %v1475 = vsel %vm750, %v1466, 0.0
        %1476 = vadd.xlane.f32.xlu0 %v1475
        %v1477 = vpop.xlane.xlu0 %1476
        %v1478 = vsel %vm750, %v1468, 0.0
        %1479 = vadd.xlane.f32.xlu0 %v1478
        %v1480 = vpop.xlane.xlu0 %1479
        %v1481 = vrcp.pop %v1471
        %v1482 = vrcp.pop %v1474
        %v1483 = vrcp.pop %v1477
        %v1484 = vrcp.pop %v1480
        %v1485 = vmul.f32 %v1462, %v1481
        %v1486 = vmul.f32 %v1464, %v1482
        %v1487 = vmul.f32 %v1466, %v1483
        %v1488 = vmul.f32 %v1468, %v1484
        %1489 = vrot.lane.b32.xlu0 %v419, 56
        %v1490 = vpop.permute.xlu0 %1489
        %v1492 = vsel %vm797, %v1485, 0
        %v1494 = vsel %vm801, %v1490, 0
        %1496 = vmatprep.subr.mxu0 0.0
        %1497 = vmatpush1.msra.mxu0 %v1494
        %1498 = vmatprep.subr.mxu0 0.0
        %1499 = vmatpush1.msra.mxu0 0.0
        %1500 = vmatprep.subr.mxu0 0.0
        %1501 = vmatpush1.msra.mxu0 0.0
        %1502 = vmatprep.subr.mxu0 0.0
        %1503 = vmatpush1.msra.mxu0 0.0
        %1504 = vmatprep.subr.mxu0 0.0
        %1505 = vmatpush1.msra.mxu0 0.0
        %1506 = vmatprep.subr.mxu0 0.0
        %1507 = vmatpush1.msra.mxu0 0.0
        %1508 = vmatprep.subr.mxu0 0.0
        %1509 = vmatpush1.msra.mxu0 0.0
        %1510 = vmatprep.subr.mxu0 0.0
        %1511 = vmatpush1.msra.mxu0 0.0
        %1512 = vmatprep.subr.mxu0 0.0
        %1513 = vmatpush1.msra.mxu0 0.0
        %1514 = vmatprep.subr.mxu0 0.0
        %1515 = vmatpush1.msra.mxu0 0.0
        %1516 = vmatprep.subr.mxu0 0.0
        %1517 = vmatpush1.msra.mxu0 0.0
        %1518 = vmatprep.subr.mxu0 0.0
        %1519 = vmatpush1.msra.mxu0 0.0
        %1520 = vmatprep.subr.mxu0 0.0
        %1521 = vmatpush1.msra.mxu0 0.0
        %1522 = vmatprep.subr.mxu0 0.0
        %1523 = vmatpush1.msra.mxu0 0.0
        %1524 = vmatprep.subr.mxu0 0.0
        %1525 = vmatpush1.msra.mxu0 0.0
        %1526 = vmatprep.subr.mxu0 0.0
        %1527 = vmatpush1.msra.mxu0 0.0
        %1528 = vmatprep.subr.mxu0 0.0
        %1529 = vmatpush1.msra.mxu0 0.0
        %1530 = vmatprep.subr.mxu0 0.0
        %1531 = vmatpush1.msra.mxu0 0.0
        %1532 = vmatprep.subr.mxu0 0.0
        %1533 = vmatpush1.msra.mxu0 0.0
        %1534 = vmatprep.subr.mxu0 0.0
        %1535 = vmatpush1.msra.mxu0 0.0
        %1536 = vmatprep.subr.mxu0 0.0
        %1537 = vmatpush1.msra.mxu0 0.0
        %1538 = vmatprep.subr.mxu0 0.0
        %1539 = vmatpush1.msra.mxu0 0.0
        %1540 = vmatprep.subr.mxu0 0.0
        %1541 = vmatpush1.msra.mxu0 0.0
        %1542 = vmatprep.subr.mxu0 0.0
        %1543 = vmatpush1.msra.mxu0 0.0
        %1544 = vmatprep.subr.mxu0 0.0
        %1545 = vmatpush1.msra.mxu0 0.0
        %1546 = vmatprep.subr.mxu0 0.0
        %1547 = vmatpush1.msra.mxu0 0.0
        %1548 = vmatprep.subr.mxu0 0.0
        %1549 = vmatpush1.msra.mxu0 0.0
        %1550 = vmatprep.subr.mxu0 0.0
        %1551 = vmatpush1.msra.mxu0 0.0
        %1552 = vmatprep.subr.mxu0 0.0
        %1553 = vmatpush1.msra.mxu0 0.0
        %1554 = vmatprep.subr.mxu0 0.0
        %1555 = vmatpush1.msra.mxu0 0.0
        %1556 = vmatprep.subr.mxu0 0.0
        %1557 = vmatpush1.msra.mxu0 0.0
        %1558 = vmatprep.subr.mxu0 0.0
        %1559 = vmatpush1.msra.mxu0 0.0
        %1560 = vmatprep.mubr.f32.mxu0 0.0
        %1561 = vmatmul.mubr.f32.gmra.mrb[0].mxu0 %v1492
        %v1562 = vpop.f32.mrb[0].mxu0
        %v1563 = vadd.f32 0.0, %v1562
        %v1564 = vpop.f32.mrb[0].mxu0
        %1565 = vdwg.mxu0
        %1566 = vrot.lane.b32.xlu0 %v504, 56
        %v1567 = vpop.permute.xlu0 %1566
        %v1569 = vsel %vm797, %v1486, 0
        %v1571 = vsel %vm801, %v1567, 0
        %1573 = vmatprep.subr.mxu0 0.0
        %1574 = vmatpush1.msra.mxu0 %v1571
        %1575 = vmatprep.subr.mxu0 0.0
        %1576 = vmatpush1.msra.mxu0 0.0
        %1577 = vmatprep.subr.mxu0 0.0
        %1578 = vmatpush1.msra.mxu0 0.0
        %1579 = vmatprep.subr.mxu0 0.0
        %1580 = vmatpush1.msra.mxu0 0.0
        %1581 = vmatprep.subr.mxu0 0.0
        %1582 = vmatpush1.msra.mxu0 0.0
        %1583 = vmatprep.subr.mxu0 0.0
        %1584 = vmatpush1.msra.mxu0 0.0
        %1585 = vmatprep.subr.mxu0 0.0
        %1586 = vmatpush1.msra.mxu0 0.0
        %1587 = vmatprep.subr.mxu0 0.0
        %1588 = vmatpush1.msra.mxu0 0.0
        %1589 = vmatprep.subr.mxu0 0.0
        %1590 = vmatpush1.msra.mxu0 0.0
        %1591 = vmatprep.subr.mxu0 0.0
        %1592 = vmatpush1.msra.mxu0 0.0
        %1593 = vmatprep.subr.mxu0 0.0
        %1594 = vmatpush1.msra.mxu0 0.0
        %1595 = vmatprep.subr.mxu0 0.0
        %1596 = vmatpush1.msra.mxu0 0.0
        %1597 = vmatprep.subr.mxu0 0.0
        %1598 = vmatpush1.msra.mxu0 0.0
        %1599 = vmatprep.subr.mxu0 0.0
        %1600 = vmatpush1.msra.mxu0 0.0
        %1601 = vmatprep.subr.mxu0 0.0
        %1602 = vmatpush1.msra.mxu0 0.0
        %1603 = vmatprep.subr.mxu0 0.0
        %1604 = vmatpush1.msra.mxu0 0.0
        %1605 = vmatprep.subr.mxu0 0.0
        %1606 = vmatpush1.msra.mxu0 0.0
        %1607 = vmatprep.subr.mxu0 0.0
        %1608 = vmatpush1.msra.mxu0 0.0
        %1609 = vmatprep.subr.mxu0 0.0
        %1610 = vmatpush1.msra.mxu0 0.0
        %1611 = vmatprep.subr.mxu0 0.0
        %1612 = vmatpush1.msra.mxu0 0.0
        %1613 = vmatprep.subr.mxu0 0.0
        %1614 = vmatpush1.msra.mxu0 0.0
        %1615 = vmatprep.subr.mxu0 0.0
        %1616 = vmatpush1.msra.mxu0 0.0
        %1617 = vmatprep.subr.mxu0 0.0
        %1618 = vmatpush1.msra.mxu0 0.0
        %1619 = vmatprep.subr.mxu0 0.0
        %1620 = vmatpush1.msra.mxu0 0.0
        %1621 = vmatprep.subr.mxu0 0.0
        %1622 = vmatpush1.msra.mxu0 0.0
        %1623 = vmatprep.subr.mxu0 0.0
        %1624 = vmatpush1.msra.mxu0 0.0
        %1625 = vmatprep.subr.mxu0 0.0
        %1626 = vmatpush1.msra.mxu0 0.0
        %1627 = vmatprep.subr.mxu0 0.0
        %1628 = vmatpush1.msra.mxu0 0.0
        %1629 = vmatprep.subr.mxu0 0.0
        %1630 = vmatpush1.msra.mxu0 0.0
        %1631 = vmatprep.subr.mxu0 0.0
        %1632 = vmatpush1.msra.mxu0 0.0
        %1633 = vmatprep.subr.mxu0 0.0
        %1634 = vmatpush1.msra.mxu0 0.0
        %1635 = vmatprep.subr.mxu0 0.0
        %1636 = vmatpush1.msra.mxu0 0.0
        %1637 = vmatprep.mubr.f32.mxu0 0.0
        %1638 = vmatmul.mubr.f32.gmra.mrb[0].mxu0 %v1569
        %v1639 = vpop.f32.mrb[0].mxu0
        %v1640 = vadd.f32 0.0, %v1639
        %v1641 = vpop.f32.mrb[0].mxu0
        %1642 = vdwg.mxu0
        %1643 = vrot.lane.b32.xlu0 %v588, 56
        %v1644 = vpop.permute.xlu0 %1643
        %v1646 = vsel %vm797, %v1487, 0
        %v1648 = vsel %vm801, %v1644, 0
        %1650 = vmatprep.subr.mxu0 0.0
        %1651 = vmatpush1.msra.mxu0 %v1648
        %1652 = vmatprep.subr.mxu0 0.0
        %1653 = vmatpush1.msra.mxu0 0.0
        %1654 = vmatprep.subr.mxu0 0.0
        %1655 = vmatpush1.msra.mxu0 0.0
        %1656 = vmatprep.subr.mxu0 0.0
        %1657 = vmatpush1.msra.mxu0 0.0
        %1658 = vmatprep.subr.mxu0 0.0
        %1659 = vmatpush1.msra.mxu0 0.0
        %1660 = vmatprep.subr.mxu0 0.0
        %1661 = vmatpush1.msra.mxu0 0.0
        %1662 = vmatprep.subr.mxu0 0.0
        %1663 = vmatpush1.msra.mxu0 0.0
        %1664 = vmatprep.subr.mxu0 0.0
        %1665 = vmatpush1.msra.mxu0 0.0
        %1666 = vmatprep.subr.mxu0 0.0
        %1667 = vmatpush1.msra.mxu0 0.0
        %1668 = vmatprep.subr.mxu0 0.0
        %1669 = vmatpush1.msra.mxu0 0.0
        %1670 = vmatprep.subr.mxu0 0.0
        %1671 = vmatpush1.msra.mxu0 0.0
        %1672 = vmatprep.subr.mxu0 0.0
        %1673 = vmatpush1.msra.mxu0 0.0
        %1674 = vmatprep.subr.mxu0 0.0
        %1675 = vmatpush1.msra.mxu0 0.0
        %1676 = vmatprep.subr.mxu0 0.0
        %1677 = vmatpush1.msra.mxu0 0.0
        %1678 = vmatprep.subr.mxu0 0.0
        %1679 = vmatpush1.msra.mxu0 0.0
        %1680 = vmatprep.subr.mxu0 0.0
        %1681 = vmatpush1.msra.mxu0 0.0
        %1682 = vmatprep.subr.mxu0 0.0
        %1683 = vmatpush1.msra.mxu0 0.0
        %1684 = vmatprep.subr.mxu0 0.0
        %1685 = vmatpush1.msra.mxu0 0.0
        %1686 = vmatprep.subr.mxu0 0.0
        %1687 = vmatpush1.msra.mxu0 0.0
        %1688 = vmatprep.subr.mxu0 0.0
        %1689 = vmatpush1.msra.mxu0 0.0
        %1690 = vmatprep.subr.mxu0 0.0
        %1691 = vmatpush1.msra.mxu0 0.0
        %1692 = vmatprep.subr.mxu0 0.0
        %1693 = vmatpush1.msra.mxu0 0.0
        %1694 = vmatprep.subr.mxu0 0.0
        %1695 = vmatpush1.msra.mxu0 0.0
        %1696 = vmatprep.subr.mxu0 0.0
        %1697 = vmatpush1.msra.mxu0 0.0
        %1698 = vmatprep.subr.mxu0 0.0
        %1699 = vmatpush1.msra.mxu0 0.0
        %1700 = vmatprep.subr.mxu0 0.0
        %1701 = vmatpush1.msra.mxu0 0.0
        %1702 = vmatprep.subr.mxu0 0.0
        %1703 = vmatpush1.msra.mxu0 0.0
        %1704 = vmatprep.subr.mxu0 0.0
        %1705 = vmatpush1.msra.mxu0 0.0
        %1706 = vmatprep.subr.mxu0 0.0
        %1707 = vmatpush1.msra.mxu0 0.0
        %1708 = vmatprep.subr.mxu0 0.0
        %1709 = vmatpush1.msra.mxu0 0.0
        %1710 = vmatprep.subr.mxu0 0.0
        %1711 = vmatpush1.msra.mxu0 0.0
        %1712 = vmatprep.subr.mxu0 0.0
        %1713 = vmatpush1.msra.mxu0 0.0
        %1714 = vmatprep.mubr.f32.mxu0 0.0
        %1715 = vmatmul.mubr.f32.gmra.mrb[0].mxu0 %v1646
        %v1716 = vpop.f32.mrb[0].mxu0
        %v1717 = vadd.f32 0.0, %v1716
        %v1718 = vpop.f32.mrb[0].mxu0
        %1719 = vdwg.mxu0
        %1720 = vrot.lane.b32.xlu0 %v672, 56
        %v1721 = vpop.permute.xlu0 %1720
        %v1723 = vsel %vm797, %v1488, 0
        %v1725 = vsel %vm801, %v1721, 0
        %1727 = vmatprep.subr.mxu0 0.0
        %1728 = vmatpush1.msra.mxu0 %v1725
        %1729 = vmatprep.subr.mxu0 0.0
        %1730 = vmatpush1.msra.mxu0 0.0
        %1731 = vmatprep.subr.mxu0 0.0
        %1732 = vmatpush1.msra.mxu0 0.0
        %1733 = vmatprep.subr.mxu0 0.0
        %1734 = vmatpush1.msra.mxu0 0.0
        %1735 = vmatprep.subr.mxu0 0.0
        %1736 = vmatpush1.msra.mxu0 0.0
        %1737 = vmatprep.subr.mxu0 0.0
        %1738 = vmatpush1.msra.mxu0 0.0
        %1739 = vmatprep.subr.mxu0 0.0
        %1740 = vmatpush1.msra.mxu0 0.0
        %1741 = vmatprep.subr.mxu0 0.0
        %1742 = vmatpush1.msra.mxu0 0.0
        %1743 = vmatprep.subr.mxu0 0.0
        %1744 = vmatpush1.msra.mxu0 0.0
        %1745 = vmatprep.subr.mxu0 0.0
        %1746 = vmatpush1.msra.mxu0 0.0
        %1747 = vmatprep.subr.mxu0 0.0
        %1748 = vmatpush1.msra.mxu0 0.0
        %1749 = vmatprep.subr.mxu0 0.0
        %1750 = vmatpush1.msra.mxu0 0.0
        %1751 = vmatprep.subr.mxu0 0.0
        %1752 = vmatpush1.msra.mxu0 0.0
        %1753 = vmatprep.subr.mxu0 0.0
        %1754 = vmatpush1.msra.mxu0 0.0
        %1755 = vmatprep.subr.mxu0 0.0
        %1756 = vmatpush1.msra.mxu0 0.0
        %1757 = vmatprep.subr.mxu0 0.0
        %1758 = vmatpush1.msra.mxu0 0.0
        %1759 = vmatprep.subr.mxu0 0.0
        %1760 = vmatpush1.msra.mxu0 0.0
        %1761 = vmatprep.subr.mxu0 0.0
        %1762 = vmatpush1.msra.mxu0 0.0
        %1763 = vmatprep.subr.mxu0 0.0
        %1764 = vmatpush1.msra.mxu0 0.0
        %1765 = vmatprep.subr.mxu0 0.0
        %1766 = vmatpush1.msra.mxu0 0.0
        %1767 = vmatprep.subr.mxu0 0.0
        %1768 = vmatpush1.msra.mxu0 0.0
        %1769 = vmatprep.subr.mxu0 0.0
        %1770 = vmatpush1.msra.mxu0 0.0
        %1771 = vmatprep.subr.mxu0 0.0
        %1772 = vmatpush1.msra.mxu0 0.0
        %1773 = vmatprep.subr.mxu0 0.0
        %1774 = vmatpush1.msra.mxu0 0.0
        %1775 = vmatprep.subr.mxu0 0.0
        %1776 = vmatpush1.msra.mxu0 0.0
        %1777 = vmatprep.subr.mxu0 0.0
        %1778 = vmatpush1.msra.mxu0 0.0
        %1779 = vmatprep.subr.mxu0 0.0
        %1780 = vmatpush1.msra.mxu0 0.0
        %1781 = vmatprep.subr.mxu0 0.0
        %1782 = vmatpush1.msra.mxu0 0.0
        %1783 = vmatprep.subr.mxu0 0.0
        %1784 = vmatpush1.msra.mxu0 0.0
        %1785 = vmatprep.subr.mxu0 0.0
        %1786 = vmatpush1.msra.mxu0 0.0
        %1787 = vmatprep.subr.mxu0 0.0
        %1788 = vmatpush1.msra.mxu0 0.0
        %1789 = vmatprep.subr.mxu0 0.0
        %1790 = vmatpush1.msra.mxu0 0.0
        %1791 = vmatprep.mubr.f32.mxu0 0.0
        %1792 = vmatmul.mubr.f32.gmra.mrb[0].mxu0 %v1723
        %v1793 = vpop.f32.mrb[0].mxu0
        %v1794 = vadd.f32 0.0, %v1793
        %v1795 = vpop.f32.mrb[0].mxu0
        %1796 = vdwg.mxu0
        %v1801 = vcombine.low %v1563, %v1640
        %v1802 = vcombine.low %v1717, %v1794
        %v1804 = vunpack.c.l.s4 1983009808
        %v1805 = vunpack.c.0.s8 %v1804
        %v1806 = vlaneseq
        %v1807 = vshrl.u32 %v1806, 7
        %v1808 = vsub.s32 %v1805, %v1807
        %v1809 = vrot.slane %v1801, %v1808
        %v1811 = vunpack.c.l.s4 1983009808
        %v1812 = vunpack.c.0.s8 %v1811
        %v1813 = vlaneseq
        %v1814 = vshrl.u32 %v1813, 7
        %v1815 = vsub.s32 %v1812, %v1814
        %v1816 = vrot.slane %v1802, %v1815
        %v1817 = vcombine.low %v1809, %v1816
        %v1818 = vsel %vm422, %v1817, 0
        %1820 = vmatprep.subr.mxu0 0.0
        %1821 = vmatpush1.msra.mxu0 %v410
        %1822 = vmatprep.subr.mxu0 0.0
        %1823 = vmatpush1.msra.mxu0 0.0
        %1824 = vmatprep.subr.mxu0 0.0
        %1825 = vmatpush1.msra.mxu0 0.0
        %1826 = vmatprep.subr.mxu0 0.0
        %1827 = vmatpush1.msra.mxu0 0.0
        %1828 = vmatprep.subr.mxu0 0.0
        %1829 = vmatpush1.msra.mxu0 0.0
        %1830 = vmatprep.subr.mxu0 0.0
        %1831 = vmatpush1.msra.mxu0 0.0
        %1832 = vmatprep.subr.mxu0 0.0
        %1833 = vmatpush1.msra.mxu0 0.0
        %1834 = vmatprep.subr.mxu0 0.0
        %1835 = vmatpush1.msra.mxu0 0.0
        %1836 = vmatprep.subr.mxu0 0.0
        %1837 = vmatpush1.msra.mxu0 0.0
        %1838 = vmatprep.subr.mxu0 0.0
        %1839 = vmatpush1.msra.mxu0 0.0
        %1840 = vmatprep.subr.mxu0 0.0
        %1841 = vmatpush1.msra.mxu0 0.0
        %1842 = vmatprep.subr.mxu0 0.0
        %1843 = vmatpush1.msra.mxu0 0.0
        %1844 = vmatprep.subr.mxu0 0.0
        %1845 = vmatpush1.msra.mxu0 0.0
        %1846 = vmatprep.subr.mxu0 0.0
        %1847 = vmatpush1.msra.mxu0 0.0
        %1848 = vmatprep.subr.mxu0 0.0
        %1849 = vmatpush1.msra.mxu0 0.0
        %1850 = vmatprep.subr.mxu0 0.0
        %1851 = vmatpush1.msra.mxu0 0.0
        %1852 = vmatprep.subr.mxu0 0.0
        %1853 = vmatpush1.msra.mxu0 0.0
        %1854 = vmatprep.subr.mxu0 0.0
        %1855 = vmatpush1.msra.mxu0 0.0
        %1856 = vmatprep.subr.mxu0 0.0
        %1857 = vmatpush1.msra.mxu0 0.0
        %1858 = vmatprep.subr.mxu0 0.0
        %1859 = vmatpush1.msra.mxu0 0.0
        %1860 = vmatprep.subr.mxu0 0.0
        %1861 = vmatpush1.msra.mxu0 0.0
        %1862 = vmatprep.subr.mxu0 0.0
        %1863 = vmatpush1.msra.mxu0 0.0
        %1864 = vmatprep.subr.mxu0 0.0
        %1865 = vmatpush1.msra.mxu0 0.0
        %1866 = vmatprep.subr.mxu0 0.0
        %1867 = vmatpush1.msra.mxu0 0.0
        %1868 = vmatprep.subr.mxu0 0.0
        %1869 = vmatpush1.msra.mxu0 0.0
        %1870 = vmatprep.subr.mxu0 0.0
        %1871 = vmatpush1.msra.mxu0 0.0
        %1872 = vmatprep.subr.mxu0 0.0
        %1873 = vmatpush1.msra.mxu0 0.0
        %1874 = vmatprep.subr.mxu0 0.0
        %1875 = vmatpush1.msra.mxu0 0.0
        %1876 = vmatprep.subr.mxu0 0.0
        %1877 = vmatpush1.msra.mxu0 0.0
        %1878 = vmatprep.subr.mxu0 0.0
        %1879 = vmatpush1.msra.mxu0 0.0
        %1880 = vmatprep.subr.mxu0 0.0
        %1881 = vmatpush1.msra.mxu0 0.0
        %1882 = vmatprep.subr.mxu0 0.0
        %1883 = vmatpush1.msra.mxu0 0.0
        %1884 = vmatprep.mubr.f32.mxu0 0.0
        %1885 = vmatmul.mubr.f32.gmra.mrb[0].mxu0 %v1818
        %v1886 = vpop.f32.mrb[0].mxu0
        %v1887 = vadd.f32 0.0, %v1886
        %v1888 = vpop.f32.mrb[0].mxu0
        %1889 = vdwg.mxu0
        %v1894 = vcombine.low %v871, %v948
        %v1895 = vcombine.low %v1025, %v1102
        %v1897 = vunpack.c.l.s4 1983009808
        %v1898 = vunpack.c.0.s8 %v1897
        %v1899 = vlaneseq
        %v1900 = vshrl.u32 %v1899, 7
        %v1901 = vsub.s32 %v1898, %v1900
        %v1902 = vrot.slane %v1894, %v1901
        %v1904 = vunpack.c.l.s4 1983009808
        %v1905 = vunpack.c.0.s8 %v1904
        %v1906 = vlaneseq
        %v1907 = vshrl.u32 %v1906, 7
        %v1908 = vsub.s32 %v1905, %v1907
        %v1909 = vrot.slane %v1895, %v1908
        %v1910 = vcombine.low %v1902, %v1909
        %v1911 = vsel %vm422, %v1910, 0
        %1913 = vmatprep.subr.mxu0 0.0
        %1914 = vmatpush1.msra.mxu0 %v409
        %1915 = vmatprep.subr.mxu0 0.0
        %1916 = vmatpush1.msra.mxu0 0.0
        %1917 = vmatprep.subr.mxu0 0.0
        %1918 = vmatpush1.msra.mxu0 0.0
        %1919 = vmatprep.subr.mxu0 0.0
        %1920 = vmatpush1.msra.mxu0 0.0
        %1921 = vmatprep.subr.mxu0 0.0
        %1922 = vmatpush1.msra.mxu0 0.0
        %1923 = vmatprep.subr.mxu0 0.0
        %1924 = vmatpush1.msra.mxu0 0.0
        %1925 = vmatprep.subr.mxu0 0.0
        %1926 = vmatpush1.msra.mxu0 0.0
        %1927 = vmatprep.subr.mxu0 0.0
        %1928 = vmatpush1.msra.mxu0 0.0
        %1929 = vmatprep.subr.mxu0 0.0
        %1930 = vmatpush1.msra.mxu0 0.0
        %1931 = vmatprep.subr.mxu0 0.0
        %1932 = vmatpush1.msra.mxu0 0.0
        %1933 = vmatprep.subr.mxu0 0.0
        %1934 = vmatpush1.msra.mxu0 0.0
        %1935 = vmatprep.subr.mxu0 0.0
        %1936 = vmatpush1.msra.mxu0 0.0
        %1937 = vmatprep.subr.mxu0 0.0
        %1938 = vmatpush1.msra.mxu0 0.0
        %1939 = vmatprep.subr.mxu0 0.0
        %1940 = vmatpush1.msra.mxu0 0.0
        %1941 = vmatprep.subr.mxu0 0.0
        %1942 = vmatpush1.msra.mxu0 0.0
        %1943 = vmatprep.subr.mxu0 0.0
        %1944 = vmatpush1.msra.mxu0 0.0
        %1945 = vmatprep.subr.mxu0 0.0
        %1946 = vmatpush1.msra.mxu0 0.0
        %1947 = vmatprep.subr.mxu0 0.0
        %1948 = vmatpush1.msra.mxu0 0.0
        %1949 = vmatprep.subr.mxu0 0.0
        %1950 = vmatpush1.msra.mxu0 0.0
        %1951 = vmatprep.subr.mxu0 0.0
        %1952 = vmatpush1.msra.mxu0 0.0
        %1953 = vmatprep.subr.mxu0 0.0
        %1954 = vmatpush1.msra.mxu0 0.0
        %1955 = vmatprep.subr.mxu0 0.0
        %1956 = vmatpush1.msra.mxu0 0.0
        %1957 = vmatprep.subr.mxu0 0.0
        %1958 = vmatpush1.msra.mxu0 0.0
        %1959 = vmatprep.subr.mxu0 0.0
        %1960 = vmatpush1.msra.mxu0 0.0
        %1961 = vmatprep.subr.mxu0 0.0
        %1962 = vmatpush1.msra.mxu0 0.0
        %1963 = vmatprep.subr.mxu0 0.0
        %1964 = vmatpush1.msra.mxu0 0.0
        %1965 = vmatprep.subr.mxu0 0.0
        %1966 = vmatpush1.msra.mxu0 0.0
        %1967 = vmatprep.subr.mxu0 0.0
        %1968 = vmatpush1.msra.mxu0 0.0
        %1969 = vmatprep.subr.mxu0 0.0
        %1970 = vmatpush1.msra.mxu0 0.0
        %1971 = vmatprep.subr.mxu0 0.0
        %1972 = vmatpush1.msra.mxu0 0.0
        %1973 = vmatprep.subr.mxu0 0.0
        %1974 = vmatpush1.msra.mxu0 0.0
        %1975 = vmatprep.subr.mxu0 0.0
        %1976 = vmatpush1.msra.mxu0 0.0
        %1977 = vmatprep.mubr.f32.mxu0 0.0
        %1978 = vmatmul.mubr.f32.gmra.mrb[0].mxu0 %v1911
        %v1979 = vpop.f32.mrb[0].mxu0
        %v1980 = vadd.f32 %v1887, %v1979
        %v1981 = vpop.f32.mrb[0].mxu0
        %1982 = vdwg.mxu0
        %v1984 = vcombine.high %v1980, %v1980
        %v1986 = vunpack.c.l.s4 1983009808
        %v1987 = vunpack.c.0.s8 %v1986
        %v1988 = vlaneseq
        %v1989 = vshrl.u32 %v1988, 7
        %v1990 = vsub.s32 %v1987, %v1989
        %v1991 = vrot.slane %v1980, %v1990
        %v1993 = vunpack.c.l.s4 1983009808
        %v1994 = vunpack.c.0.s8 %v1993
        %v1995 = vlaneseq
        %v1996 = vshrl.u32 %v1995, 7
        %v1997 = vsub.s32 %v1994, %v1996
        %v1998 = vrot.slane %v1984, %v1997
        %v1999 = vcombine.high %v1991, %v1991
        %v2000 = vcombine.high %v1998, %v1998
        %2005 = vrot.lane.b32.xlu0 %v1111, 112
        %v2006 = vpop.permute.xlu0 %2005
        %2007 = vrot.lane.b32.xlu0 %v419, 80
        %v2008 = vpop.permute.xlu0 %2007
        %v2009 = vsel %vm422, %v2006, 0
        %v2011 = vsel %vm422, %v2008, 0
        %2013 = vmatprep.subr.mxu0 0.0
        %2014 = vmatpush1.xpose.msra.mxu0 %v2011
        %2015 = vmatprep.subr.mxu0 0.0
        %2016 = vmatpush1.xpose.msra.mxu0 0.0
        %2017 = vmatprep.subr.mxu0 0.0
        %2018 = vmatpush1.xpose.msra.mxu0 0.0
        %2019 = vmatprep.subr.mxu0 0.0
        %2020 = vmatpush1.xpose.msra.mxu0 0.0
        %2021 = vmatprep.subr.mxu0 0.0
        %2022 = vmatpush1.xpose.msra.mxu0 0.0
        %2023 = vmatprep.subr.mxu0 0.0
        %2024 = vmatpush1.xpose.msra.mxu0 0.0
        %2025 = vmatprep.subr.mxu0 0.0
        %2026 = vmatpush1.xpose.msra.mxu0 0.0
        %2027 = vmatprep.subr.mxu0 0.0
        %2028 = vmatpush1.xpose.msra.mxu0 0.0
        %2029 = vmatprep.subr.mxu0 0.0
        %2030 = vmatpush1.xpose.msra.mxu0 0.0
        %2031 = vmatprep.subr.mxu0 0.0
        %2032 = vmatpush1.xpose.msra.mxu0 0.0
        %2033 = vmatprep.subr.mxu0 0.0
        %2034 = vmatpush1.xpose.msra.mxu0 0.0
        %2035 = vmatprep.subr.mxu0 0.0
        %2036 = vmatpush1.xpose.msra.mxu0 0.0
        %2037 = vmatprep.subr.mxu0 0.0
        %2038 = vmatpush1.xpose.msra.mxu0 0.0
        %2039 = vmatprep.subr.mxu0 0.0
        %2040 = vmatpush1.xpose.msra.mxu0 0.0
        %2041 = vmatprep.subr.mxu0 0.0
        %2042 = vmatpush1.xpose.msra.mxu0 0.0
        %2043 = vmatprep.subr.mxu0 0.0
        %2044 = vmatpush1.xpose.msra.mxu0 0.0
        %2045 = vmatprep.subr.mxu0 0.0
        %2046 = vmatpush1.xpose.msra.mxu0 0.0
        %2047 = vmatprep.subr.mxu0 0.0
        %2048 = vmatpush1.xpose.msra.mxu0 0.0
        %2049 = vmatprep.subr.mxu0 0.0
        %2050 = vmatpush1.xpose.msra.mxu0 0.0
        %2051 = vmatprep.subr.mxu0 0.0
        %2052 = vmatpush1.xpose.msra.mxu0 0.0
        %2053 = vmatprep.subr.mxu0 0.0
        %2054 = vmatpush1.xpose.msra.mxu0 0.0
        %2055 = vmatprep.subr.mxu0 0.0
        %2056 = vmatpush1.xpose.msra.mxu0 0.0
        %2057 = vmatprep.subr.mxu0 0.0
        %2058 = vmatpush1.xpose.msra.mxu0 0.0
        %2059 = vmatprep.subr.mxu0 0.0
        %2060 = vmatpush1.xpose.msra.mxu0 0.0
        %2061 = vmatprep.subr.mxu0 0.0
        %2062 = vmatpush1.xpose.msra.mxu0 0.0
        %2063 = vmatprep.subr.mxu0 0.0
        %2064 = vmatpush1.xpose.msra.mxu0 0.0
        %2065 = vmatprep.subr.mxu0 0.0
        %2066 = vmatpush1.xpose.msra.mxu0 0.0
        %2067 = vmatprep.subr.mxu0 0.0
        %2068 = vmatpush1.xpose.msra.mxu0 0.0
        %2069 = vmatprep.subr.mxu0 0.0
        %2070 = vmatpush1.xpose.msra.mxu0 0.0
        %2071 = vmatprep.subr.mxu0 0.0
        %2072 = vmatpush1.xpose.msra.mxu0 0.0
        %2073 = vmatprep.subr.mxu0 0.0
        %2074 = vmatpush1.xpose.msra.mxu0 0.0
        %2075 = vmatprep.subr.mxu0 0.0
        %2076 = vmatpush1.xpose.msra.mxu0 0.0
        %2077 = vmatprep.mubr.f32.mxu0 0.0
        %2078 = vmatmul.mubr.f32.gmra.mrb[0].mxu0 %v2009
        %v2079 = vpop.f32.mrb[0].mxu0
        %v2080 = vadd.f32 0.0, %v2079
        %v2081 = vpop.f32.mrb[0].mxu0
        %2082 = vdwg.mxu0
        %2083 = vrot.lane.b32.xlu0 %v1196, 112
        %v2084 = vpop.permute.xlu0 %2083
        %2085 = vrot.lane.b32.xlu0 %v504, 80
        %v2086 = vpop.permute.xlu0 %2085
        %v2087 = vsel %vm422, %v2084, 0
        %v2089 = vsel %vm422, %v2086, 0
        %2091 = vmatprep.subr.mxu0 0.0
        %2092 = vmatpush1.xpose.msra.mxu0 %v2089
        %2093 = vmatprep.subr.mxu0 0.0
        %2094 = vmatpush1.xpose.msra.mxu0 0.0
        %2095 = vmatprep.subr.mxu0 0.0
        %2096 = vmatpush1.xpose.msra.mxu0 0.0
        %2097 = vmatprep.subr.mxu0 0.0
        %2098 = vmatpush1.xpose.msra.mxu0 0.0
        %2099 = vmatprep.subr.mxu0 0.0
        %2100 = vmatpush1.xpose.msra.mxu0 0.0
        %2101 = vmatprep.subr.mxu0 0.0
        %2102 = vmatpush1.xpose.msra.mxu0 0.0
        %2103 = vmatprep.subr.mxu0 0.0
        %2104 = vmatpush1.xpose.msra.mxu0 0.0
        %2105 = vmatprep.subr.mxu0 0.0
        %2106 = vmatpush1.xpose.msra.mxu0 0.0
        %2107 = vmatprep.subr.mxu0 0.0
        %2108 = vmatpush1.xpose.msra.mxu0 0.0
        %2109 = vmatprep.subr.mxu0 0.0
        %2110 = vmatpush1.xpose.msra.mxu0 0.0
        %2111 = vmatprep.subr.mxu0 0.0
        %2112 = vmatpush1.xpose.msra.mxu0 0.0
        %2113 = vmatprep.subr.mxu0 0.0
        %2114 = vmatpush1.xpose.msra.mxu0 0.0
        %2115 = vmatprep.subr.mxu0 0.0
        %2116 = vmatpush1.xpose.msra.mxu0 0.0
        %2117 = vmatprep.subr.mxu0 0.0
        %2118 = vmatpush1.xpose.msra.mxu0 0.0
        %2119 = vmatprep.subr.mxu0 0.0
        %2120 = vmatpush1.xpose.msra.mxu0 0.0
        %2121 = vmatprep.subr.mxu0 0.0
        %2122 = vmatpush1.xpose.msra.mxu0 0.0
        %2123 = vmatprep.subr.mxu0 0.0
        %2124 = vmatpush1.xpose.msra.mxu0 0.0
        %2125 = vmatprep.subr.mxu0 0.0
        %2126 = vmatpush1.xpose.msra.mxu0 0.0
        %2127 = vmatprep.subr.mxu0 0.0
        %2128 = vmatpush1.xpose.msra.mxu0 0.0
        %2129 = vmatprep.subr.mxu0 0.0
        %2130 = vmatpush1.xpose.msra.mxu0 0.0
        %2131 = vmatprep.subr.mxu0 0.0
        %2132 = vmatpush1.xpose.msra.mxu0 0.0
        %2133 = vmatprep.subr.mxu0 0.0
        %2134 = vmatpush1.xpose.msra.mxu0 0.0
        %2135 = vmatprep.subr.mxu0 0.0
        %2136 = vmatpush1.xpose.msra.mxu0 0.0
        %2137 = vmatprep.subr.mxu0 0.0
        %2138 = vmatpush1.xpose.msra.mxu0 0.0
        %2139 = vmatprep.subr.mxu0 0.0
        %2140 = vmatpush1.xpose.msra.mxu0 0.0
        %2141 = vmatprep.subr.mxu0 0.0
        %2142 = vmatpush1.xpose.msra.mxu0 0.0
        %2143 = vmatprep.subr.mxu0 0.0
        %2144 = vmatpush1.xpose.msra.mxu0 0.0
        %2145 = vmatprep.subr.mxu0 0.0
        %2146 = vmatpush1.xpose.msra.mxu0 0.0
        %2147 = vmatprep.subr.mxu0 0.0
        %2148 = vmatpush1.xpose.msra.mxu0 0.0
        %2149 = vmatprep.subr.mxu0 0.0
        %2150 = vmatpush1.xpose.msra.mxu0 0.0
        %2151 = vmatprep.subr.mxu0 0.0
        %2152 = vmatpush1.xpose.msra.mxu0 0.0
        %2153 = vmatprep.subr.mxu0 0.0
        %2154 = vmatpush1.xpose.msra.mxu0 0.0
        %2155 = vmatprep.mubr.f32.mxu0 0.0
        %2156 = vmatmul.mubr.f32.gmra.mrb[0].mxu0 %v2087
        %v2157 = vpop.f32.mrb[0].mxu0
        %v2158 = vadd.f32 0.0, %v2157
        %v2159 = vpop.f32.mrb[0].mxu0
        %2160 = vdwg.mxu0
        %2161 = vrot.lane.b32.xlu0 %v1281, 112
        %v2162 = vpop.permute.xlu0 %2161
        %2163 = vrot.lane.b32.xlu0 %v588, 80
        %v2164 = vpop.permute.xlu0 %2163
        %v2165 = vsel %vm422, %v2162, 0
        %v2167 = vsel %vm422, %v2164, 0
        %2169 = vmatprep.subr.mxu0 0.0
        %2170 = vmatpush1.xpose.msra.mxu0 %v2167
        %2171 = vmatprep.subr.mxu0 0.0
        %2172 = vmatpush1.xpose.msra.mxu0 0.0
        %2173 = vmatprep.subr.mxu0 0.0
        %2174 = vmatpush1.xpose.msra.mxu0 0.0
        %2175 = vmatprep.subr.mxu0 0.0
        %2176 = vmatpush1.xpose.msra.mxu0 0.0
        %2177 = vmatprep.subr.mxu0 0.0
        %2178 = vmatpush1.xpose.msra.mxu0 0.0
        %2179 = vmatprep.subr.mxu0 0.0
        %2180 = vmatpush1.xpose.msra.mxu0 0.0
        %2181 = vmatprep.subr.mxu0 0.0
        %2182 = vmatpush1.xpose.msra.mxu0 0.0
        %2183 = vmatprep.subr.mxu0 0.0
        %2184 = vmatpush1.xpose.msra.mxu0 0.0
        %2185 = vmatprep.subr.mxu0 0.0
        %2186 = vmatpush1.xpose.msra.mxu0 0.0
        %2187 = vmatprep.subr.mxu0 0.0
        %2188 = vmatpush1.xpose.msra.mxu0 0.0
        %2189 = vmatprep.subr.mxu0 0.0
        %2190 = vmatpush1.xpose.msra.mxu0 0.0
        %2191 = vmatprep.subr.mxu0 0.0
        %2192 = vmatpush1.xpose.msra.mxu0 0.0
        %2193 = vmatprep.subr.mxu0 0.0
        %2194 = vmatpush1.xpose.msra.mxu0 0.0
        %2195 = vmatprep.subr.mxu0 0.0
        %2196 = vmatpush1.xpose.msra.mxu0 0.0
        %2197 = vmatprep.subr.mxu0 0.0
        %2198 = vmatpush1.xpose.msra.mxu0 0.0
        %2199 = vmatprep.subr.mxu0 0.0
        %2200 = vmatpush1.xpose.msra.mxu0 0.0
        %2201 = vmatprep.subr.mxu0 0.0
        %2202 = vmatpush1.xpose.msra.mxu0 0.0
        %2203 = vmatprep.subr.mxu0 0.0
        %2204 = vmatpush1.xpose.msra.mxu0 0.0
        %2205 = vmatprep.subr.mxu0 0.0
        %2206 = vmatpush1.xpose.msra.mxu0 0.0
        %2207 = vmatprep.subr.mxu0 0.0
        %2208 = vmatpush1.xpose.msra.mxu0 0.0
        %2209 = vmatprep.subr.mxu0 0.0
        %2210 = vmatpush1.xpose.msra.mxu0 0.0
        %2211 = vmatprep.subr.mxu0 0.0
        %2212 = vmatpush1.xpose.msra.mxu0 0.0
        %2213 = vmatprep.subr.mxu0 0.0
        %2214 = vmatpush1.xpose.msra.mxu0 0.0
        %2215 = vmatprep.subr.mxu0 0.0
        %2216 = vmatpush1.xpose.msra.mxu0 0.0
        %2217 = vmatprep.subr.mxu0 0.0
        %2218 = vmatpush1.xpose.msra.mxu0 0.0
        %2219 = vmatprep.subr.mxu0 0.0
        %2220 = vmatpush1.xpose.msra.mxu0 0.0
        %2221 = vmatprep.subr.mxu0 0.0
        %2222 = vmatpush1.xpose.msra.mxu0 0.0
        %2223 = vmatprep.subr.mxu0 0.0
        %2224 = vmatpush1.xpose.msra.mxu0 0.0
        %2225 = vmatprep.subr.mxu0 0.0
        %2226 = vmatpush1.xpose.msra.mxu0 0.0
        %2227 = vmatprep.subr.mxu0 0.0
        %2228 = vmatpush1.xpose.msra.mxu0 0.0
        %2229 = vmatprep.subr.mxu0 0.0
        %2230 = vmatpush1.xpose.msra.mxu0 0.0
        %2231 = vmatprep.subr.mxu0 0.0
        %2232 = vmatpush1.xpose.msra.mxu0 0.0
        %2233 = vmatprep.mubr.f32.mxu0 0.0
        %2234 = vmatmul.mubr.f32.gmra.mrb[0].mxu0 %v2165
        %v2235 = vpop.f32.mrb[0].mxu0
        %v2236 = vadd.f32 0.0, %v2235
        %v2237 = vpop.f32.mrb[0].mxu0
        %2238 = vdwg.mxu0
        %2239 = vrot.lane.b32.xlu0 %v1366, 112
        %v2240 = vpop.permute.xlu0 %2239
        %2241 = vrot.lane.b32.xlu0 %v672, 80
        %v2242 = vpop.permute.xlu0 %2241
        %v2243 = vsel %vm422, %v2240, 0
        %v2245 = vsel %vm422, %v2242, 0
        %2247 = vmatprep.subr.mxu0 0.0
        %2248 = vmatpush1.xpose.msra.mxu0 %v2245
        %2249 = vmatprep.subr.mxu0 0.0
        %2250 = vmatpush1.xpose.msra.mxu0 0.0
        %2251 = vmatprep.subr.mxu0 0.0
        %2252 = vmatpush1.xpose.msra.mxu0 0.0
        %2253 = vmatprep.subr.mxu0 0.0
        %2254 = vmatpush1.xpose.msra.mxu0 0.0
        %2255 = vmatprep.subr.mxu0 0.0
        %2256 = vmatpush1.xpose.msra.mxu0 0.0
        %2257 = vmatprep.subr.mxu0 0.0
        %2258 = vmatpush1.xpose.msra.mxu0 0.0
        %2259 = vmatprep.subr.mxu0 0.0
        %2260 = vmatpush1.xpose.msra.mxu0 0.0
        %2261 = vmatprep.subr.mxu0 0.0
        %2262 = vmatpush1.xpose.msra.mxu0 0.0
        %2263 = vmatprep.subr.mxu0 0.0
        %2264 = vmatpush1.xpose.msra.mxu0 0.0
        %2265 = vmatprep.subr.mxu0 0.0
        %2266 = vmatpush1.xpose.msra.mxu0 0.0
        %2267 = vmatprep.subr.mxu0 0.0
        %2268 = vmatpush1.xpose.msra.mxu0 0.0
        %2269 = vmatprep.subr.mxu0 0.0
        %2270 = vmatpush1.xpose.msra.mxu0 0.0
        %2271 = vmatprep.subr.mxu0 0.0
        %2272 = vmatpush1.xpose.msra.mxu0 0.0
        %2273 = vmatprep.subr.mxu0 0.0
        %2274 = vmatpush1.xpose.msra.mxu0 0.0
        %2275 = vmatprep.subr.mxu0 0.0
        %2276 = vmatpush1.xpose.msra.mxu0 0.0
        %2277 = vmatprep.subr.mxu0 0.0
        %2278 = vmatpush1.xpose.msra.mxu0 0.0
        %2279 = vmatprep.subr.mxu0 0.0
        %2280 = vmatpush1.xpose.msra.mxu0 0.0
        %2281 = vmatprep.subr.mxu0 0.0
        %2282 = vmatpush1.xpose.msra.mxu0 0.0
        %2283 = vmatprep.subr.mxu0 0.0
        %2284 = vmatpush1.xpose.msra.mxu0 0.0
        %2285 = vmatprep.subr.mxu0 0.0
        %2286 = vmatpush1.xpose.msra.mxu0 0.0
        %2287 = vmatprep.subr.mxu0 0.0
        %2288 = vmatpush1.xpose.msra.mxu0 0.0
        %2289 = vmatprep.subr.mxu0 0.0
        %2290 = vmatpush1.xpose.msra.mxu0 0.0
        %2291 = vmatprep.subr.mxu0 0.0
        %2292 = vmatpush1.xpose.msra.mxu0 0.0
        %2293 = vmatprep.subr.mxu0 0.0
        %2294 = vmatpush1.xpose.msra.mxu0 0.0
        %2295 = vmatprep.subr.mxu0 0.0
        %2296 = vmatpush1.xpose.msra.mxu0 0.0
        %2297 = vmatprep.subr.mxu0 0.0
        %2298 = vmatpush1.xpose.msra.mxu0 0.0
        %2299 = vmatprep.subr.mxu0 0.0
        %2300 = vmatpush1.xpose.msra.mxu0 0.0
        %2301 = vmatprep.subr.mxu0 0.0
        %2302 = vmatpush1.xpose.msra.mxu0 0.0
        %2303 = vmatprep.subr.mxu0 0.0
        %2304 = vmatpush1.xpose.msra.mxu0 0.0
        %2305 = vmatprep.subr.mxu0 0.0
        %2306 = vmatpush1.xpose.msra.mxu0 0.0
        %2307 = vmatprep.subr.mxu0 0.0
        %2308 = vmatpush1.xpose.msra.mxu0 0.0
        %2309 = vmatprep.subr.mxu0 0.0
        %2310 = vmatpush1.xpose.msra.mxu0 0.0
        %2311 = vmatprep.mubr.f32.mxu0 0.0
        %2312 = vmatmul.mubr.f32.gmra.mrb[0].mxu0 %v2243
        %v2313 = vpop.f32.mrb[0].mxu0
        %v2314 = vadd.f32 0.0, %v2313
        %v2315 = vpop.f32.mrb[0].mxu0
        %2316 = vdwg.mxu0
        %v2317 = vsel %vm750, %v2080, -inf
        %2318 = vmax.xlane.f32.xlu0 %v2317
        %v2319 = vpop.xlane.xlu0 %2318
        %v2320 = vsel %vm750, %v2158, -inf
        %2321 = vmax.xlane.f32.xlu0 %v2320
        %v2322 = vpop.xlane.xlu0 %2321
        %v2323 = vsel %vm750, %v2236, -inf
        %2324 = vmax.xlane.f32.xlu0 %v2323
        %v2325 = vpop.xlane.xlu0 %2324
        %v2326 = vsel %vm750, %v2314, -inf
        %2327 = vmax.xlane.f32.xlu0 %v2326
        %v2328 = vpop.xlane.xlu0 %2327
        %v2329 = vsub.f32 %v2080, %v2319
        %v2330 = vsub.f32 %v2158, %v2322
        %v2331 = vsub.f32 %v2236, %v2325
        %v2332 = vsub.f32 %v2314, %v2328
        %v2333 = vmul.f32 %v2329, 1.442695
        %v2334 = vpow.pop %v2333
        %v2335 = vmul.f32 %v2330, 1.442695
        %v2336 = vpow.pop %v2335
        %v2337 = vmul.f32 %v2331, 1.442695
        %v2338 = vpow.pop %v2337
        %v2339 = vmul.f32 %v2332, 1.442695
        %v2340 = vpow.pop %v2339
        %v2341 = vsel %vm750, %v2334, 0.0
        %2342 = vadd.xlane.f32.xlu0 %v2341
        %v2343 = vpop.xlane.xlu0 %2342
        %v2344 = vsel %vm750, %v2336, 0.0
        %2345 = vadd.xlane.f32.xlu0 %v2344
        %v2346 = vpop.xlane.xlu0 %2345
        %v2347 = vsel %vm750, %v2338, 0.0
        %2348 = vadd.xlane.f32.xlu0 %v2347
        %v2349 = vpop.xlane.xlu0 %2348
        %v2350 = vsel %vm750, %v2340, 0.0
        %2351 = vadd.xlane.f32.xlu0 %v2350
        %v2352 = vpop.xlane.xlu0 %2351
        %v2353 = vrcp.pop %v2343
        %v2354 = vrcp.pop %v2346
        %v2355 = vrcp.pop %v2349
        %v2356 = vrcp.pop %v2352
        %v2357 = vmul.f32 %v2334, %v2353
        %v2358 = vmul.f32 %v2336, %v2354
        %v2359 = vmul.f32 %v2338, %v2355
        %v2360 = vmul.f32 %v2340, %v2356
        %2361 = vrot.lane.b32.xlu0 %v419, 48
        %v2362 = vpop.permute.xlu0 %2361
        %v2364 = vsel %vm797, %v2357, 0
        %v2366 = vsel %vm801, %v2362, 0
        %2368 = vmatprep.subr.mxu0 0.0
        %2369 = vmatpush1.msra.mxu0 %v2366
        %2370 = vmatprep.subr.mxu0 0.0
        %2371 = vmatpush1.msra.mxu0 0.0
        %2372 = vmatprep.subr.mxu0 0.0
        %2373 = vmatpush1.msra.mxu0 0.0
        %2374 = vmatprep.subr.mxu0 0.0
        %2375 = vmatpush1.msra.mxu0 0.0
        %2376 = vmatprep.subr.mxu0 0.0
        %2377 = vmatpush1.msra.mxu0 0.0
        %2378 = vmatprep.subr.mxu0 0.0
        %2379 = vmatpush1.msra.mxu0 0.0
        %2380 = vmatprep.subr.mxu0 0.0
        %2381 = vmatpush1.msra.mxu0 0.0
        %2382 = vmatprep.subr.mxu0 0.0
        %2383 = vmatpush1.msra.mxu0 0.0
        %2384 = vmatprep.subr.mxu0 0.0
        %2385 = vmatpush1.msra.mxu0 0.0
        %2386 = vmatprep.subr.mxu0 0.0
        %2387 = vmatpush1.msra.mxu0 0.0
        %2388 = vmatprep.subr.mxu0 0.0
        %2389 = vmatpush1.msra.mxu0 0.0
        %2390 = vmatprep.subr.mxu0 0.0
        %2391 = vmatpush1.msra.mxu0 0.0
        %2392 = vmatprep.subr.mxu0 0.0
        %2393 = vmatpush1.msra.mxu0 0.0
        %2394 = vmatprep.subr.mxu0 0.0
        %2395 = vmatpush1.msra.mxu0 0.0
        %2396 = vmatprep.subr.mxu0 0.0
        %2397 = vmatpush1.msra.mxu0 0.0
        %2398 = vmatprep.subr.mxu0 0.0
        %2399 = vmatpush1.msra.mxu0 0.0
        %2400 = vmatprep.subr.mxu0 0.0
        %2401 = vmatpush1.msra.mxu0 0.0
        %2402 = vmatprep.subr.mxu0 0.0
        %2403 = vmatpush1.msra.mxu0 0.0
        %2404 = vmatprep.subr.mxu0 0.0
        %2405 = vmatpush1.msra.mxu0 0.0
        %2406 = vmatprep.subr.mxu0 0.0
        %2407 = vmatpush1.msra.mxu0 0.0
        %2408 = vmatprep.subr.mxu0 0.0
        %2409 = vmatpush1.msra.mxu0 0.0
        %2410 = vmatprep.subr.mxu0 0.0
        %2411 = vmatpush1.msra.mxu0 0.0
        %2412 = vmatprep.subr.mxu0 0.0
        %2413 = vmatpush1.msra.mxu0 0.0
        %2414 = vmatprep.subr.mxu0 0.0
        %2415 = vmatpush1.msra.mxu0 0.0
        %2416 = vmatprep.subr.mxu0 0.0
        %2417 = vmatpush1.msra.mxu0 0.0
        %2418 = vmatprep.subr.mxu0 0.0
        %2419 = vmatpush1.msra.mxu0 0.0
        %2420 = vmatprep.subr.mxu0 0.0
        %2421 = vmatpush1.msra.mxu0 0.0
        %2422 = vmatprep.subr.mxu0 0.0
        %2423 = vmatpush1.msra.mxu0 0.0
        %2424 = vmatprep.subr.mxu0 0.0
        %2425 = vmatpush1.msra.mxu0 0.0
        %2426 = vmatprep.subr.mxu0 0.0
        %2427 = vmatpush1.msra.mxu0 0.0
        %2428 = vmatprep.subr.mxu0 0.0
        %2429 = vmatpush1.msra.mxu0 0.0
        %2430 = vmatprep.subr.mxu0 0.0
        %2431 = vmatpush1.msra.mxu0 0.0
        %2432 = vmatprep.mubr.f32.mxu0 0.0
        %2433 = vmatmul.mubr.f32.gmra.mrb[0].mxu0 %v2364
        %v2434 = vpop.f32.mrb[0].mxu0
        %v2435 = vadd.f32 0.0, %v2434
        %v2436 = vpop.f32.mrb[0].mxu0
        %2437 = vdwg.mxu0
        %2438 = vrot.lane.b32.xlu0 %v504, 48
        %v2439 = vpop.permute.xlu0 %2438
        %v2441 = vsel %vm797, %v2358, 0
        %v2443 = vsel %vm801, %v2439, 0
        %2445 = vmatprep.subr.mxu0 0.0
        %2446 = vmatpush1.msra.mxu0 %v2443
        %2447 = vmatprep.subr.mxu0 0.0
        %2448 = vmatpush1.msra.mxu0 0.0
        %2449 = vmatprep.subr.mxu0 0.0
        %2450 = vmatpush1.msra.mxu0 0.0
        %2451 = vmatprep.subr.mxu0 0.0
        %2452 = vmatpush1.msra.mxu0 0.0
        %2453 = vmatprep.subr.mxu0 0.0
        %2454 = vmatpush1.msra.mxu0 0.0
        %2455 = vmatprep.subr.mxu0 0.0
        %2456 = vmatpush1.msra.mxu0 0.0
        %2457 = vmatprep.subr.mxu0 0.0
        %2458 = vmatpush1.msra.mxu0 0.0
        %2459 = vmatprep.subr.mxu0 0.0
        %2460 = vmatpush1.msra.mxu0 0.0
        %2461 = vmatprep.subr.mxu0 0.0
        %2462 = vmatpush1.msra.mxu0 0.0
        %2463 = vmatprep.subr.mxu0 0.0
        %2464 = vmatpush1.msra.mxu0 0.0
        %2465 = vmatprep.subr.mxu0 0.0
        %2466 = vmatpush1.msra.mxu0 0.0
        %2467 = vmatprep.subr.mxu0 0.0
        %2468 = vmatpush1.msra.mxu0 0.0
        %2469 = vmatprep.subr.mxu0 0.0
        %2470 = vmatpush1.msra.mxu0 0.0
        %2471 = vmatprep.subr.mxu0 0.0
        %2472 = vmatpush1.msra.mxu0 0.0
        %2473 = vmatprep.subr.mxu0 0.0
        %2474 = vmatpush1.msra.mxu0 0.0
        %2475 = vmatprep.subr.mxu0 0.0
        %2476 = vmatpush1.msra.mxu0 0.0
        %2477 = vmatprep.subr.mxu0 0.0
        %2478 = vmatpush1.msra.mxu0 0.0
        %2479 = vmatprep.subr.mxu0 0.0
        %2480 = vmatpush1.msra.mxu0 0.0
        %2481 = vmatprep.subr.mxu0 0.0
        %2482 = vmatpush1.msra.mxu0 0.0
        %2483 = vmatprep.subr.mxu0 0.0
        %2484 = vmatpush1.msra.mxu0 0.0
        %2485 = vmatprep.subr.mxu0 0.0
        %2486 = vmatpush1.msra.mxu0 0.0
        %2487 = vmatprep.subr.mxu0 0.0
        %2488 = vmatpush1.msra.mxu0 0.0
        %2489 = vmatprep.subr.mxu0 0.0
        %2490 = vmatpush1.msra.mxu0 0.0
        %2491 = vmatprep.subr.mxu0 0.0
        %2492 = vmatpush1.msra.mxu0 0.0
        %2493 = vmatprep.subr.mxu0 0.0
        %2494 = vmatpush1.msra.mxu0 0.0
        %2495 = vmatprep.subr.mxu0 0.0
        %2496 = vmatpush1.msra.mxu0 0.0
        %2497 = vmatprep.subr.mxu0 0.0
        %2498 = vmatpush1.msra.mxu0 0.0
        %2499 = vmatprep.subr.mxu0 0.0
        %2500 = vmatpush1.msra.mxu0 0.0
        %2501 = vmatprep.subr.mxu0 0.0
        %2502 = vmatpush1.msra.mxu0 0.0
        %2503 = vmatprep.subr.mxu0 0.0
        %2504 = vmatpush1.msra.mxu0 0.0
        %2505 = vmatprep.subr.mxu0 0.0
        %2506 = vmatpush1.msra.mxu0 0.0
        %2507 = vmatprep.subr.mxu0 0.0
        %2508 = vmatpush1.msra.mxu0 0.0
        %2509 = vmatprep.mubr.f32.mxu0 0.0
        %2510 = vmatmul.mubr.f32.gmra.mrb[0].mxu0 %v2441
        %v2511 = vpop.f32.mrb[0].mxu0
        %v2512 = vadd.f32 0.0, %v2511
        %v2513 = vpop.f32.mrb[0].mxu0
        %2514 = vdwg.mxu0
        %2515 = vrot.lane.b32.xlu0 %v588, 48
        %v2516 = vpop.permute.xlu0 %2515
        %v2518 = vsel %vm797, %v2359, 0
        %v2520 = vsel %vm801, %v2516, 0
        %2522 = vmatprep.subr.mxu0 0.0
        %2523 = vmatpush1.msra.mxu0 %v2520
        %2524 = vmatprep.subr.mxu0 0.0
        %2525 = vmatpush1.msra.mxu0 0.0
        %2526 = vmatprep.subr.mxu0 0.0
        %2527 = vmatpush1.msra.mxu0 0.0
        %2528 = vmatprep.subr.mxu0 0.0
        %2529 = vmatpush1.msra.mxu0 0.0
        %2530 = vmatprep.subr.mxu0 0.0
        %2531 = vmatpush1.msra.mxu0 0.0
        %2532 = vmatprep.subr.mxu0 0.0
        %2533 = vmatpush1.msra.mxu0 0.0
        %2534 = vmatprep.subr.mxu0 0.0
        %2535 = vmatpush1.msra.mxu0 0.0
        %2536 = vmatprep.subr.mxu0 0.0
        %2537 = vmatpush1.msra.mxu0 0.0
        %2538 = vmatprep.subr.mxu0 0.0
        %2539 = vmatpush1.msra.mxu0 0.0
        %2540 = vmatprep.subr.mxu0 0.0
        %2541 = vmatpush1.msra.mxu0 0.0
        %2542 = vmatprep.subr.mxu0 0.0
        %2543 = vmatpush1.msra.mxu0 0.0
        %2544 = vmatprep.subr.mxu0 0.0
        %2545 = vmatpush1.msra.mxu0 0.0
        %2546 = vmatprep.subr.mxu0 0.0
        %2547 = vmatpush1.msra.mxu0 0.0
        %2548 = vmatprep.subr.mxu0 0.0
        %2549 = vmatpush1.msra.mxu0 0.0
        %2550 = vmatprep.subr.mxu0 0.0
        %2551 = vmatpush1.msra.mxu0 0.0
        %2552 = vmatprep.subr.mxu0 0.0
        %2553 = vmatpush1.msra.mxu0 0.0
        %2554 = vmatprep.subr.mxu0 0.0
        %2555 = vmatpush1.msra.mxu0 0.0
        %2556 = vmatprep.subr.mxu0 0.0
        %2557 = vmatpush1.msra.mxu0 0.0
        %2558 = vmatprep.subr.mxu0 0.0
        %2559 = vmatpush1.msra.mxu0 0.0
        %2560 = vmatprep.subr.mxu0 0.0
        %2561 = vmatpush1.msra.mxu0 0.0
        %2562 = vmatprep.subr.mxu0 0.0
        %2563 = vmatpush1.msra.mxu0 0.0
        %2564 = vmatprep.subr.mxu0 0.0
        %2565 = vmatpush1.msra.mxu0 0.0
        %2566 = vmatprep.subr.mxu0 0.0
        %2567 = vmatpush1.msra.mxu0 0.0
        %2568 = vmatprep.subr.mxu0 0.0
        %2569 = vmatpush1.msra.mxu0 0.0
        %2570 = vmatprep.subr.mxu0 0.0
        %2571 = vmatpush1.msra.mxu0 0.0
        %2572 = vmatprep.subr.mxu0 0.0
        %2573 = vmatpush1.msra.mxu0 0.0
        %2574 = vmatprep.subr.mxu0 0.0
        %2575 = vmatpush1.msra.mxu0 0.0
        %2576 = vmatprep.subr.mxu0 0.0
        %2577 = vmatpush1.msra.mxu0 0.0
        %2578 = vmatprep.subr.mxu0 0.0
        %2579 = vmatpush1.msra.mxu0 0.0
        %2580 = vmatprep.subr.mxu0 0.0
        %2581 = vmatpush1.msra.mxu0 0.0
        %2582 = vmatprep.subr.mxu0 0.0
        %2583 = vmatpush1.msra.mxu0 0.0
        %2584 = vmatprep.subr.mxu0 0.0
        %2585 = vmatpush1.msra.mxu0 0.0
        %2586 = vmatprep.mubr.f32.mxu0 0.0
        %2587 = vmatmul.mubr.f32.gmra.mrb[0].mxu0 %v2518
        %v2588 = vpop.f32.mrb[0].mxu0
        %v2589 = vadd.f32 0.0, %v2588
        %v2590 = vpop.f32.mrb[0].mxu0
        %2591 = vdwg.mxu0
        %2592 = vrot.lane.b32.xlu0 %v672, 48
        %v2593 = vpop.permute.xlu0 %2592
        %v2595 = vsel %vm797, %v2360, 0
        %v2597 = vsel %vm801, %v2593, 0
        %2599 = vmatprep.subr.mxu0 0.0
        %2600 = vmatpush1.msra.mxu0 %v2597
        %2601 = vmatprep.subr.mxu0 0.0
        %2602 = vmatpush1.msra.mxu0 0.0
        %2603 = vmatprep.subr.mxu0 0.0
        %2604 = vmatpush1.msra.mxu0 0.0
        %2605 = vmatprep.subr.mxu0 0.0
        %2606 = vmatpush1.msra.mxu0 0.0
        %2607 = vmatprep.subr.mxu0 0.0
        %2608 = vmatpush1.msra.mxu0 0.0
        %2609 = vmatprep.subr.mxu0 0.0
        %2610 = vmatpush1.msra.mxu0 0.0
        %2611 = vmatprep.subr.mxu0 0.0
        %2612 = vmatpush1.msra.mxu0 0.0
        %2613 = vmatprep.subr.mxu0 0.0
        %2614 = vmatpush1.msra.mxu0 0.0
        %2615 = vmatprep.subr.mxu0 0.0
        %2616 = vmatpush1.msra.mxu0 0.0
        %2617 = vmatprep.subr.mxu0 0.0
        %2618 = vmatpush1.msra.mxu0 0.0
        %2619 = vmatprep.subr.mxu0 0.0
        %2620 = vmatpush1.msra.mxu0 0.0
        %2621 = vmatprep.subr.mxu0 0.0
        %2622 = vmatpush1.msra.mxu0 0.0
        %2623 = vmatprep.subr.mxu0 0.0
        %2624 = vmatpush1.msra.mxu0 0.0
        %2625 = vmatprep.subr.mxu0 0.0
        %2626 = vmatpush1.msra.mxu0 0.0
        %2627 = vmatprep.subr.mxu0 0.0
        %2628 = vmatpush1.msra.mxu0 0.0
        %2629 = vmatprep.subr.mxu0 0.0
        %2630 = vmatpush1.msra.mxu0 0.0
        %2631 = vmatprep.subr.mxu0 0.0
        %2632 = vmatpush1.msra.mxu0 0.0
        %2633 = vmatprep.subr.mxu0 0.0
        %2634 = vmatpush1.msra.mxu0 0.0
        %2635 = vmatprep.subr.mxu0 0.0
        %2636 = vmatpush1.msra.mxu0 0.0
        %2637 = vmatprep.subr.mxu0 0.0
        %2638 = vmatpush1.msra.mxu0 0.0
        %2639 = vmatprep.subr.mxu0 0.0
        %2640 = vmatpush1.msra.mxu0 0.0
        %2641 = vmatprep.subr.mxu0 0.0
        %2642 = vmatpush1.msra.mxu0 0.0
        %2643 = vmatprep.subr.mxu0 0.0
        %2644 = vmatpush1.msra.mxu0 0.0
        %2645 = vmatprep.subr.mxu0 0.0
        %2646 = vmatpush1.msra.mxu0 0.0
        %2647 = vmatprep.subr.mxu0 0.0
        %2648 = vmatpush1.msra.mxu0 0.0
        %2649 = vmatprep.subr.mxu0 0.0
        %2650 = vmatpush1.msra.mxu0 0.0
        %2651 = vmatprep.subr.mxu0 0.0
        %2652 = vmatpush1.msra.mxu0 0.0
        %2653 = vmatprep.subr.mxu0 0.0
        %2654 = vmatpush1.msra.mxu0 0.0
        %2655 = vmatprep.subr.mxu0 0.0
        %2656 = vmatpush1.msra.mxu0 0.0
        %2657 = vmatprep.subr.mxu0 0.0
        %2658 = vmatpush1.msra.mxu0 0.0
        %2659 = vmatprep.subr.mxu0 0.0
        %2660 = vmatpush1.msra.mxu0 0.0
        %2661 = vmatprep.subr.mxu0 0.0
        %2662 = vmatpush1.msra.mxu0 0.0
        %2663 = vmatprep.mubr.f32.mxu0 0.0
        %2664 = vmatmul.mubr.f32.gmra.mrb[0].mxu0 %v2595
        %v2665 = vpop.f32.mrb[0].mxu0
        %v2666 = vadd.f32 0.0, %v2665
        %v2667 = vpop.f32.mrb[0].mxu0
        %2668 = vdwg.mxu0
        %v2673 = vcombine.low %v2435, %v2512
        %v2674 = vcombine.low %v2589, %v2666
        %v2676 = vunpack.c.l.s4 1983009808
        %v2677 = vunpack.c.0.s8 %v2676
        %v2678 = vlaneseq
        %v2679 = vshrl.u32 %v2678, 7
        %v2680 = vsub.s32 %v2677, %v2679
        %v2681 = vrot.slane %v2673, %v2680
        %v2683 = vunpack.c.l.s4 1983009808
        %v2684 = vunpack.c.0.s8 %v2683
        %v2685 = vlaneseq
        %v2686 = vshrl.u32 %v2685, 7
        %v2687 = vsub.s32 %v2684, %v2686
        %v2688 = vrot.slane %v2674, %v2687
        %v2689 = vcombine.low %v2681, %v2688
        %v2690 = vsel %vm422, %v2689, 0
        %2692 = vmatprep.subr.mxu0 0.0
        %2693 = vmatpush1.msra.mxu0 %v411
        %2694 = vmatprep.subr.mxu0 0.0
        %2695 = vmatpush1.msra.mxu0 0.0
        %2696 = vmatprep.subr.mxu0 0.0
        %2697 = vmatpush1.msra.mxu0 0.0
        %2698 = vmatprep.subr.mxu0 0.0
        %2699 = vmatpush1.msra.mxu0 0.0
        %2700 = vmatprep.subr.mxu0 0.0
        %2701 = vmatpush1.msra.mxu0 0.0
        %2702 = vmatprep.subr.mxu0 0.0
        %2703 = vmatpush1.msra.mxu0 0.0
        %2704 = vmatprep.subr.mxu0 0.0
        %2705 = vmatpush1.msra.mxu0 0.0
        %2706 = vmatprep.subr.mxu0 0.0
        %2707 = vmatpush1.msra.mxu0 0.0
        %2708 = vmatprep.subr.mxu0 0.0
        %2709 = vmatpush1.msra.mxu0 0.0
        %2710 = vmatprep.subr.mxu0 0.0
        %2711 = vmatpush1.msra.mxu0 0.0
        %2712 = vmatprep.subr.mxu0 0.0
        %2713 = vmatpush1.msra.mxu0 0.0
        %2714 = vmatprep.subr.mxu0 0.0
        %2715 = vmatpush1.msra.mxu0 0.0
        %2716 = vmatprep.subr.mxu0 0.0
        %2717 = vmatpush1.msra.mxu0 0.0
        %2718 = vmatprep.subr.mxu0 0.0
        %2719 = vmatpush1.msra.mxu0 0.0
        %2720 = vmatprep.subr.mxu0 0.0
        %2721 = vmatpush1.msra.mxu0 0.0
        %2722 = vmatprep.subr.mxu0 0.0
        %2723 = vmatpush1.msra.mxu0 0.0
        %2724 = vmatprep.subr.mxu0 0.0
        %2725 = vmatpush1.msra.mxu0 0.0
        %2726 = vmatprep.subr.mxu0 0.0
        %2727 = vmatpush1.msra.mxu0 0.0
        %2728 = vmatprep.subr.mxu0 0.0
        %2729 = vmatpush1.msra.mxu0 0.0
        %2730 = vmatprep.subr.mxu0 0.0
        %2731 = vmatpush1.msra.mxu0 0.0
        %2732 = vmatprep.subr.mxu0 0.0
        %2733 = vmatpush1.msra.mxu0 0.0
        %2734 = vmatprep.subr.mxu0 0.0
        %2735 = vmatpush1.msra.mxu0 0.0
        %2736 = vmatprep.subr.mxu0 0.0
        %2737 = vmatpush1.msra.mxu0 0.0
        %2738 = vmatprep.subr.mxu0 0.0
        %2739 = vmatpush1.msra.mxu0 0.0
        %2740 = vmatprep.subr.mxu0 0.0
        %2741 = vmatpush1.msra.mxu0 0.0
        %2742 = vmatprep.subr.mxu0 0.0
        %2743 = vmatpush1.msra.mxu0 0.0
        %2744 = vmatprep.subr.mxu0 0.0
        %2745 = vmatpush1.msra.mxu0 0.0
        %2746 = vmatprep.subr.mxu0 0.0
        %2747 = vmatpush1.msra.mxu0 0.0
        %2748 = vmatprep.subr.mxu0 0.0
        %2749 = vmatpush1.msra.mxu0 0.0
        %2750 = vmatprep.subr.mxu0 0.0
        %2751 = vmatpush1.msra.mxu0 0.0
        %2752 = vmatprep.subr.mxu0 0.0
        %2753 = vmatpush1.msra.mxu0 0.0
        %2754 = vmatprep.subr.mxu0 0.0
        %2755 = vmatpush1.msra.mxu0 0.0
        %2756 = vmatprep.mubr.f32.mxu0 0.0
        %2757 = vmatmul.mubr.f32.gmra.mrb[0].mxu0 %v2690
        %v2758 = vpop.f32.mrb[0].mxu0
        %v2759 = vadd.f32 0.0, %v2758
        %v2760 = vpop.f32.mrb[0].mxu0
        %2761 = vdwg.mxu0
        %v2763 = vcombine.high %v2759, %v2759
        %v2765 = vunpack.c.l.s4 1983009808
        %v2766 = vunpack.c.0.s8 %v2765
        %v2767 = vlaneseq
        %v2768 = vshrl.u32 %v2767, 7
        %v2769 = vsub.s32 %v2766, %v2768
        %v2770 = vrot.slane %v2759, %v2769
        %v2772 = vunpack.c.l.s4 1983009808
        %v2773 = vunpack.c.0.s8 %v2772
        %v2774 = vlaneseq
        %v2775 = vshrl.u32 %v2774, 7
        %v2776 = vsub.s32 %v2773, %v2775
        %v2777 = vrot.slane %v2763, %v2776
        %v2778 = vcombine.high %v2770, %v2770
        %v2779 = vcombine.high %v2777, %v2777
        %v2784 = vadd.f32 %v1991, %v2770
        %v2785 = vadd.f32 %v1999, %v2778
        %v2786 = vadd.f32 %v1998, %v2777
        %v2787 = vadd.f32 %v2000, %v2779
        %2788 = vrot.lane.b32.xlu0 %v1111, 104
        %v2789 = vpop.permute.xlu0 %2788
        %2790 = vrot.lane.b32.xlu0 %v419, 72
        %v2791 = vpop.permute.xlu0 %2790
        %v2792 = vsel %vm422, %v2789, 0
        %v2794 = vsel %vm422, %v2791, 0
        %2796 = vmatprep.subr.mxu0 0.0
        %2797 = vmatpush1.xpose.msra.mxu0 %v2794
        %2798 = vmatprep.subr.mxu0 0.0
        %2799 = vmatpush1.xpose.msra.mxu0 0.0
        %2800 = vmatprep.subr.mxu0 0.0
        %2801 = vmatpush1.xpose.msra.mxu0 0.0
        %2802 = vmatprep.subr.mxu0 0.0
        %2803 = vmatpush1.xpose.msra.mxu0 0.0
        %2804 = vmatprep.subr.mxu0 0.0
        %2805 = vmatpush1.xpose.msra.mxu0 0.0
        %2806 = vmatprep.subr.mxu0 0.0
        %2807 = vmatpush1.xpose.msra.mxu0 0.0
        %2808 = vmatprep.subr.mxu0 0.0
        %2809 = vmatpush1.xpose.msra.mxu0 0.0
        %2810 = vmatprep.subr.mxu0 0.0
        %2811 = vmatpush1.xpose.msra.mxu0 0.0
        %2812 = vmatprep.subr.mxu0 0.0
        %2813 = vmatpush1.xpose.msra.mxu0 0.0
        %2814 = vmatprep.subr.mxu0 0.0
        %2815 = vmatpush1.xpose.msra.mxu0 0.0
        %2816 = vmatprep.subr.mxu0 0.0
        %2817 = vmatpush1.xpose.msra.mxu0 0.0
        %2818 = vmatprep.subr.mxu0 0.0
        %2819 = vmatpush1.xpose.msra.mxu0 0.0
        %2820 = vmatprep.subr.mxu0 0.0
        %2821 = vmatpush1.xpose.msra.mxu0 0.0
        %2822 = vmatprep.subr.mxu0 0.0
        %2823 = vmatpush1.xpose.msra.mxu0 0.0
        %2824 = vmatprep.subr.mxu0 0.0
        %2825 = vmatpush1.xpose.msra.mxu0 0.0
        %2826 = vmatprep.subr.mxu0 0.0
        %2827 = vmatpush1.xpose.msra.mxu0 0.0
        %2828 = vmatprep.subr.mxu0 0.0
        %2829 = vmatpush1.xpose.msra.mxu0 0.0
        %2830 = vmatprep.subr.mxu0 0.0
        %2831 = vmatpush1.xpose.msra.mxu0 0.0
        %2832 = vmatprep.subr.mxu0 0.0
        %2833 = vmatpush1.xpose.msra.mxu0 0.0
        %2834 = vmatprep.subr.mxu0 0.0
        %2835 = vmatpush1.xpose.msra.mxu0 0.0
        %2836 = vmatprep.subr.mxu0 0.0
        %2837 = vmatpush1.xpose.msra.mxu0 0.0
        %2838 = vmatprep.subr.mxu0 0.0
        %2839 = vmatpush1.xpose.msra.mxu0 0.0
        %2840 = vmatprep.subr.mxu0 0.0
        %2841 = vmatpush1.xpose.msra.mxu0 0.0
        %2842 = vmatprep.subr.mxu0 0.0
        %2843 = vmatpush1.xpose.msra.mxu0 0.0
        %2844 = vmatprep.subr.mxu0 0.0
        %2845 = vmatpush1.xpose.msra.mxu0 0.0
        %2846 = vmatprep.subr.mxu0 0.0
        %2847 = vmatpush1.xpose.msra.mxu0 0.0
        %2848 = vmatprep.subr.mxu0 0.0
        %2849 = vmatpush1.xpose.msra.mxu0 0.0
        %2850 = vmatprep.subr.mxu0 0.0
        %2851 = vmatpush1.xpose.msra.mxu0 0.0
        %2852 = vmatprep.subr.mxu0 0.0
        %2853 = vmatpush1.xpose.msra.mxu0 0.0
        %2854 = vmatprep.subr.mxu0 0.0
        %2855 = vmatpush1.xpose.msra.mxu0 0.0
        %2856 = vmatprep.subr.mxu0 0.0
        %2857 = vmatpush1.xpose.msra.mxu0 0.0
        %2858 = vmatprep.subr.mxu0 0.0
        %2859 = vmatpush1.xpose.msra.mxu0 0.0
        %2860 = vmatprep.mubr.f32.mxu0 0.0
        %2861 = vmatmul.mubr.f32.gmra.mrb[0].mxu0 %v2792
        %v2862 = vpop.f32.mrb[0].mxu0
        %v2863 = vadd.f32 0.0, %v2862
        %v2864 = vpop.f32.mrb[0].mxu0
        %2865 = vdwg.mxu0
        %2866 = vrot.lane.b32.xlu0 %v1196, 104
        %v2867 = vpop.permute.xlu0 %2866
        %2868 = vrot.lane.b32.xlu0 %v504, 72
        %v2869 = vpop.permute.xlu0 %2868
        %v2870 = vsel %vm422, %v2867, 0
        %v2872 = vsel %vm422, %v2869, 0
        %2874 = vmatprep.subr.mxu0 0.0
        %2875 = vmatpush1.xpose.msra.mxu0 %v2872
        %2876 = vmatprep.subr.mxu0 0.0
        %2877 = vmatpush1.xpose.msra.mxu0 0.0
        %2878 = vmatprep.subr.mxu0 0.0
        %2879 = vmatpush1.xpose.msra.mxu0 0.0
        %2880 = vmatprep.subr.mxu0 0.0
        %2881 = vmatpush1.xpose.msra.mxu0 0.0
        %2882 = vmatprep.subr.mxu0 0.0
        %2883 = vmatpush1.xpose.msra.mxu0 0.0
        %2884 = vmatprep.subr.mxu0 0.0
        %2885 = vmatpush1.xpose.msra.mxu0 0.0
        %2886 = vmatprep.subr.mxu0 0.0
        %2887 = vmatpush1.xpose.msra.mxu0 0.0
        %2888 = vmatprep.subr.mxu0 0.0
        %2889 = vmatpush1.xpose.msra.mxu0 0.0
        %2890 = vmatprep.subr.mxu0 0.0
        %2891 = vmatpush1.xpose.msra.mxu0 0.0
        %2892 = vmatprep.subr.mxu0 0.0
        %2893 = vmatpush1.xpose.msra.mxu0 0.0
        %2894 = vmatprep.subr.mxu0 0.0
        %2895 = vmatpush1.xpose.msra.mxu0 0.0
        %2896 = vmatprep.subr.mxu0 0.0
        %2897 = vmatpush1.xpose.msra.mxu0 0.0
        %2898 = vmatprep.subr.mxu0 0.0
        %2899 = vmatpush1.xpose.msra.mxu0 0.0
        %2900 = vmatprep.subr.mxu0 0.0
        %2901 = vmatpush1.xpose.msra.mxu0 0.0
        %2902 = vmatprep.subr.mxu0 0.0
        %2903 = vmatpush1.xpose.msra.mxu0 0.0
        %2904 = vmatprep.subr.mxu0 0.0
        %2905 = vmatpush1.xpose.msra.mxu0 0.0
        %2906 = vmatprep.subr.mxu0 0.0
        %2907 = vmatpush1.xpose.msra.mxu0 0.0
        %2908 = vmatprep.subr.mxu0 0.0
        %2909 = vmatpush1.xpose.msra.mxu0 0.0
        %2910 = vmatprep.subr.mxu0 0.0
        %2911 = vmatpush1.xpose.msra.mxu0 0.0
        %2912 = vmatprep.subr.mxu0 0.0
        %2913 = vmatpush1.xpose.msra.mxu0 0.0
        %2914 = vmatprep.subr.mxu0 0.0
        %2915 = vmatpush1.xpose.msra.mxu0 0.0
        %2916 = vmatprep.subr.mxu0 0.0
        %2917 = vmatpush1.xpose.msra.mxu0 0.0
        %2918 = vmatprep.subr.mxu0 0.0
        %2919 = vmatpush1.xpose.msra.mxu0 0.0
        %2920 = vmatprep.subr.mxu0 0.0
        %2921 = vmatpush1.xpose.msra.mxu0 0.0
        %2922 = vmatprep.subr.mxu0 0.0
        %2923 = vmatpush1.xpose.msra.mxu0 0.0
        %2924 = vmatprep.subr.mxu0 0.0
        %2925 = vmatpush1.xpose.msra.mxu0 0.0
        %2926 = vmatprep.subr.mxu0 0.0
        %2927 = vmatpush1.xpose.msra.mxu0 0.0
        %2928 = vmatprep.subr.mxu0 0.0
        %2929 = vmatpush1.xpose.msra.mxu0 0.0
        %2930 = vmatprep.subr.mxu0 0.0
        %2931 = vmatpush1.xpose.msra.mxu0 0.0
        %2932 = vmatprep.subr.mxu0 0.0
        %2933 = vmatpush1.xpose.msra.mxu0 0.0
        %2934 = vmatprep.subr.mxu0 0.0
        %2935 = vmatpush1.xpose.msra.mxu0 0.0
        %2936 = vmatprep.subr.mxu0 0.0
        %2937 = vmatpush1.xpose.msra.mxu0 0.0
        %2938 = vmatprep.mubr.f32.mxu0 0.0
        %2939 = vmatmul.mubr.f32.gmra.mrb[0].mxu0 %v2870
        %v2940 = vpop.f32.mrb[0].mxu0
        %v2941 = vadd.f32 0.0, %v2940
        %v2942 = vpop.f32.mrb[0].mxu0
        %2943 = vdwg.mxu0
        %2944 = vrot.lane.b32.xlu0 %v1281, 104
        %v2945 = vpop.permute.xlu0 %2944
        %2946 = vrot.lane.b32.xlu0 %v588, 72
        %v2947 = vpop.permute.xlu0 %2946
        %v2948 = vsel %vm422, %v2945, 0
        %v2950 = vsel %vm422, %v2947, 0
        %2952 = vmatprep.subr.mxu0 0.0
        %2953 = vmatpush1.xpose.msra.mxu0 %v2950
        %2954 = vmatprep.subr.mxu0 0.0
        %2955 = vmatpush1.xpose.msra.mxu0 0.0
        %2956 = vmatprep.subr.mxu0 0.0
        %2957 = vmatpush1.xpose.msra.mxu0 0.0
        %2958 = vmatprep.subr.mxu0 0.0
        %2959 = vmatpush1.xpose.msra.mxu0 0.0
        %2960 = vmatprep.subr.mxu0 0.0
        %2961 = vmatpush1.xpose.msra.mxu0 0.0
        %2962 = vmatprep.subr.mxu0 0.0
        %2963 = vmatpush1.xpose.msra.mxu0 0.0
        %2964 = vmatprep.subr.mxu0 0.0
        %2965 = vmatpush1.xpose.msra.mxu0 0.0
        %2966 = vmatprep.subr.mxu0 0.0
        %2967 = vmatpush1.xpose.msra.mxu0 0.0
        %2968 = vmatprep.subr.mxu0 0.0
        %2969 = vmatpush1.xpose.msra.mxu0 0.0
        %2970 = vmatprep.subr.mxu0 0.0
        %2971 = vmatpush1.xpose.msra.mxu0 0.0
        %2972 = vmatprep.subr.mxu0 0.0
        %2973 = vmatpush1.xpose.msra.mxu0 0.0
        %2974 = vmatprep.subr.mxu0 0.0
        %2975 = vmatpush1.xpose.msra.mxu0 0.0
        %2976 = vmatprep.subr.mxu0 0.0
        %2977 = vmatpush1.xpose.msra.mxu0 0.0
        %2978 = vmatprep.subr.mxu0 0.0
        %2979 = vmatpush1.xpose.msra.mxu0 0.0
        %2980 = vmatprep.subr.mxu0 0.0
        %2981 = vmatpush1.xpose.msra.mxu0 0.0
        %2982 = vmatprep.subr.mxu0 0.0
        %2983 = vmatpush1.xpose.msra.mxu0 0.0
        %2984 = vmatprep.subr.mxu0 0.0
        %2985 = vmatpush1.xpose.msra.mxu0 0.0
        %2986 = vmatprep.subr.mxu0 0.0
        %2987 = vmatpush1.xpose.msra.mxu0 0.0
        %2988 = vmatprep.subr.mxu0 0.0
        %2989 = vmatpush1.xpose.msra.mxu0 0.0
        %2990 = vmatprep.subr.mxu0 0.0
        %2991 = vmatpush1.xpose.msra.mxu0 0.0
        %2992 = vmatprep.subr.mxu0 0.0
        %2993 = vmatpush1.xpose.msra.mxu0 0.0
        %2994 = vmatprep.subr.mxu0 0.0
        %2995 = vmatpush1.xpose.msra.mxu0 0.0
        %2996 = vmatprep.subr.mxu0 0.0
        %2997 = vmatpush1.xpose.msra.mxu0 0.0
        %2998 = vmatprep.subr.mxu0 0.0
        %2999 = vmatpush1.xpose.msra.mxu0 0.0
        %3000 = vmatprep.subr.mxu0 0.0
        %3001 = vmatpush1.xpose.msra.mxu0 0.0
        %3002 = vmatprep.subr.mxu0 0.0
        %3003 = vmatpush1.xpose.msra.mxu0 0.0
        %3004 = vmatprep.subr.mxu0 0.0
        %3005 = vmatpush1.xpose.msra.mxu0 0.0
        %3006 = vmatprep.subr.mxu0 0.0
        %3007 = vmatpush1.xpose.msra.mxu0 0.0
        %3008 = vmatprep.subr.mxu0 0.0
        %3009 = vmatpush1.xpose.msra.mxu0 0.0
        %3010 = vmatprep.subr.mxu0 0.0
        %3011 = vmatpush1.xpose.msra.mxu0 0.0
        %3012 = vmatprep.subr.mxu0 0.0
        %3013 = vmatpush1.xpose.msra.mxu0 0.0
        %3014 = vmatprep.subr.mxu0 0.0
        %3015 = vmatpush1.xpose.msra.mxu0 0.0
        %3016 = vmatprep.mubr.f32.mxu0 0.0
        %3017 = vmatmul.mubr.f32.gmra.mrb[0].mxu0 %v2948
        %v3018 = vpop.f32.mrb[0].mxu0
        %v3019 = vadd.f32 0.0, %v3018
        %v3020 = vpop.f32.mrb[0].mxu0
        %3021 = vdwg.mxu0
        %3022 = vrot.lane.b32.xlu0 %v1366, 104
        %v3023 = vpop.permute.xlu0 %3022
        %3024 = vrot.lane.b32.xlu0 %v672, 72
        %v3025 = vpop.permute.xlu0 %3024
        %v3026 = vsel %vm422, %v3023, 0
        %v3028 = vsel %vm422, %v3025, 0
        %3030 = vmatprep.subr.mxu0 0.0
        %3031 = vmatpush1.xpose.msra.mxu0 %v3028
        %3032 = vmatprep.subr.mxu0 0.0
        %3033 = vmatpush1.xpose.msra.mxu0 0.0
        %3034 = vmatprep.subr.mxu0 0.0
        %3035 = vmatpush1.xpose.msra.mxu0 0.0
        %3036 = vmatprep.subr.mxu0 0.0
        %3037 = vmatpush1.xpose.msra.mxu0 0.0
        %3038 = vmatprep.subr.mxu0 0.0
        %3039 = vmatpush1.xpose.msra.mxu0 0.0
        %3040 = vmatprep.subr.mxu0 0.0
        %3041 = vmatpush1.xpose.msra.mxu0 0.0
        %3042 = vmatprep.subr.mxu0 0.0
        %3043 = vmatpush1.xpose.msra.mxu0 0.0
        %3044 = vmatprep.subr.mxu0 0.0
        %3045 = vmatpush1.xpose.msra.mxu0 0.0
        %3046 = vmatprep.subr.mxu0 0.0
        %3047 = vmatpush1.xpose.msra.mxu0 0.0
        %3048 = vmatprep.subr.mxu0 0.0
        %3049 = vmatpush1.xpose.msra.mxu0 0.0
        %3050 = vmatprep.subr.mxu0 0.0
        %3051 = vmatpush1.xpose.msra.mxu0 0.0
        %3052 = vmatprep.subr.mxu0 0.0
        %3053 = vmatpush1.xpose.msra.mxu0 0.0
        %3054 = vmatprep.subr.mxu0 0.0
        %3055 = vmatpush1.xpose.msra.mxu0 0.0
        %3056 = vmatprep.subr.mxu0 0.0
        %3057 = vmatpush1.xpose.msra.mxu0 0.0
        %3058 = vmatprep.subr.mxu0 0.0
        %3059 = vmatpush1.xpose.msra.mxu0 0.0
        %3060 = vmatprep.subr.mxu0 0.0
        %3061 = vmatpush1.xpose.msra.mxu0 0.0
        %3062 = vmatprep.subr.mxu0 0.0
        %3063 = vmatpush1.xpose.msra.mxu0 0.0
        %3064 = vmatprep.subr.mxu0 0.0
        %3065 = vmatpush1.xpose.msra.mxu0 0.0
        %3066 = vmatprep.subr.mxu0 0.0
        %3067 = vmatpush1.xpose.msra.mxu0 0.0
        %3068 = vmatprep.subr.mxu0 0.0
        %3069 = vmatpush1.xpose.msra.mxu0 0.0
        %3070 = vmatprep.subr.mxu0 0.0
        %3071 = vmatpush1.xpose.msra.mxu0 0.0
        %3072 = vmatprep.subr.mxu0 0.0
        %3073 = vmatpush1.xpose.msra.mxu0 0.0
        %3074 = vmatprep.subr.mxu0 0.0
        %3075 = vmatpush1.xpose.msra.mxu0 0.0
        %3076 = vmatprep.subr.mxu0 0.0
        %3077 = vmatpush1.xpose.msra.mxu0 0.0
        %3078 = vmatprep.subr.mxu0 0.0
        %3079 = vmatpush1.xpose.msra.mxu0 0.0
        %3080 = vmatprep.subr.mxu0 0.0
        %3081 = vmatpush1.xpose.msra.mxu0 0.0
        %3082 = vmatprep.subr.mxu0 0.0
        %3083 = vmatpush1.xpose.msra.mxu0 0.0
        %3084 = vmatprep.subr.mxu0 0.0
        %3085 = vmatpush1.xpose.msra.mxu0 0.0
        %3086 = vmatprep.subr.mxu0 0.0
        %3087 = vmatpush1.xpose.msra.mxu0 0.0
        %3088 = vmatprep.subr.mxu0 0.0
        %3089 = vmatpush1.xpose.msra.mxu0 0.0
        %3090 = vmatprep.subr.mxu0 0.0
        %3091 = vmatpush1.xpose.msra.mxu0 0.0
        %3092 = vmatprep.subr.mxu0 0.0
        %3093 = vmatpush1.xpose.msra.mxu0 0.0
        %3094 = vmatprep.mubr.f32.mxu0 0.0
        %3095 = vmatmul.mubr.f32.gmra.mrb[0].mxu0 %v3026
        %v3096 = vpop.f32.mrb[0].mxu0
        %v3097 = vadd.f32 0.0, %v3096
        %v3098 = vpop.f32.mrb[0].mxu0
        %3099 = vdwg.mxu0
        %v3100 = vsel %vm750, %v2863, -inf
        %3101 = vmax.xlane.f32.xlu0 %v3100
        %v3102 = vpop.xlane.xlu0 %3101
        %v3103 = vsel %vm750, %v2941, -inf
        %3104 = vmax.xlane.f32.xlu0 %v3103
        %v3105 = vpop.xlane.xlu0 %3104
        %v3106 = vsel %vm750, %v3019, -inf
        %3107 = vmax.xlane.f32.xlu0 %v3106
        %v3108 = vpop.xlane.xlu0 %3107
        %v3109 = vsel %vm750, %v3097, -inf
        %3110 = vmax.xlane.f32.xlu0 %v3109
        %v3111 = vpop.xlane.xlu0 %3110
        %v3112 = vsub.f32 %v2863, %v3102
        %v3113 = vsub.f32 %v2941, %v3105
        %v3114 = vsub.f32 %v3019, %v3108
        %v3115 = vsub.f32 %v3097, %v3111
        %v3116 = vmul.f32 %v3112, 1.442695
        %v3117 = vpow.pop %v3116
        %v3118 = vmul.f32 %v3113, 1.442695
        %v3119 = vpow.pop %v3118
        %v3120 = vmul.f32 %v3114, 1.442695
        %v3121 = vpow.pop %v3120
        %v3122 = vmul.f32 %v3115, 1.442695
        %v3123 = vpow.pop %v3122
        %v3124 = vsel %vm750, %v3117, 0.0
        %3125 = vadd.xlane.f32.xlu0 %v3124
        %v3126 = vpop.xlane.xlu0 %3125
        %v3127 = vsel %vm750, %v3119, 0.0
        %3128 = vadd.xlane.f32.xlu0 %v3127
        %v3129 = vpop.xlane.xlu0 %3128
        %v3130 = vsel %vm750, %v3121, 0.0
        %3131 = vadd.xlane.f32.xlu0 %v3130
        %v3132 = vpop.xlane.xlu0 %3131
        %v3133 = vsel %vm750, %v3123, 0.0
        %3134 = vadd.xlane.f32.xlu0 %v3133
        %v3135 = vpop.xlane.xlu0 %3134
        %v3136 = vrcp.pop %v3126
        %v3137 = vrcp.pop %v3129
        %v3138 = vrcp.pop %v3132
        %v3139 = vrcp.pop %v3135
        %v3140 = vmul.f32 %v3117, %v3136
        %v3141 = vmul.f32 %v3119, %v3137
        %v3142 = vmul.f32 %v3121, %v3138
        %v3143 = vmul.f32 %v3123, %v3139
        %3144 = vrot.lane.b32.xlu0 %v419, 40
        %v3145 = vpop.permute.xlu0 %3144
        %v3147 = vsel %vm797, %v3140, 0
        %v3149 = vsel %vm801, %v3145, 0
        %3151 = vmatprep.subr.mxu0 0.0
        %3152 = vmatpush1.msra.mxu0 %v3149
        %3153 = vmatprep.subr.mxu0 0.0
        %3154 = vmatpush1.msra.mxu0 0.0
        %3155 = vmatprep.subr.mxu0 0.0
        %3156 = vmatpush1.msra.mxu0 0.0
        %3157 = vmatprep.subr.mxu0 0.0
        %3158 = vmatpush1.msra.mxu0 0.0
        %3159 = vmatprep.subr.mxu0 0.0
        %3160 = vmatpush1.msra.mxu0 0.0
        %3161 = vmatprep.subr.mxu0 0.0
        %3162 = vmatpush1.msra.mxu0 0.0
        %3163 = vmatprep.subr.mxu0 0.0
        %3164 = vmatpush1.msra.mxu0 0.0
        %3165 = vmatprep.subr.mxu0 0.0
        %3166 = vmatpush1.msra.mxu0 0.0
        %3167 = vmatprep.subr.mxu0 0.0
        %3168 = vmatpush1.msra.mxu0 0.0
        %3169 = vmatprep.subr.mxu0 0.0
        %3170 = vmatpush1.msra.mxu0 0.0
        %3171 = vmatprep.subr.mxu0 0.0
        %3172 = vmatpush1.msra.mxu0 0.0
        %3173 = vmatprep.subr.mxu0 0.0
        %3174 = vmatpush1.msra.mxu0 0.0
        %3175 = vmatprep.subr.mxu0 0.0
        %3176 = vmatpush1.msra.mxu0 0.0
        %3177 = vmatprep.subr.mxu0 0.0
        %3178 = vmatpush1.msra.mxu0 0.0
        %3179 = vmatprep.subr.mxu0 0.0
        %3180 = vmatpush1.msra.mxu0 0.0
        %3181 = vmatprep.subr.mxu0 0.0
        %3182 = vmatpush1.msra.mxu0 0.0
        %3183 = vmatprep.subr.mxu0 0.0
        %3184 = vmatpush1.msra.mxu0 0.0
        %3185 = vmatprep.subr.mxu0 0.0
        %3186 = vmatpush1.msra.mxu0 0.0
        %3187 = vmatprep.subr.mxu0 0.0
        %3188 = vmatpush1.msra.mxu0 0.0
        %3189 = vmatprep.subr.mxu0 0.0
        %3190 = vmatpush1.msra.mxu0 0.0
        %3191 = vmatprep.subr.mxu0 0.0
        %3192 = vmatpush1.msra.mxu0 0.0
        %3193 = vmatprep.subr.mxu0 0.0
        %3194 = vmatpush1.msra.mxu0 0.0
        %3195 = vmatprep.subr.mxu0 0.0
        %3196 = vmatpush1.msra.mxu0 0.0
        %3197 = vmatprep.subr.mxu0 0.0
        %3198 = vmatpush1.msra.mxu0 0.0
        %3199 = vmatprep.subr.mxu0 0.0
        %3200 = vmatpush1.msra.mxu0 0.0
        %3201 = vmatprep.subr.mxu0 0.0
        %3202 = vmatpush1.msra.mxu0 0.0
        %3203 = vmatprep.subr.mxu0 0.0
        %3204 = vmatpush1.msra.mxu0 0.0
        %3205 = vmatprep.subr.mxu0 0.0
        %3206 = vmatpush1.msra.mxu0 0.0
        %3207 = vmatprep.subr.mxu0 0.0
        %3208 = vmatpush1.msra.mxu0 0.0
        %3209 = vmatprep.subr.mxu0 0.0
        %3210 = vmatpush1.msra.mxu0 0.0
        %3211 = vmatprep.subr.mxu0 0.0
        %3212 = vmatpush1.msra.mxu0 0.0
        %3213 = vmatprep.subr.mxu0 0.0
        %3214 = vmatpush1.msra.mxu0 0.0
        %3215 = vmatprep.mubr.f32.mxu0 0.0
        %3216 = vmatmul.mubr.f32.gmra.mrb[0].mxu0 %v3147
        %v3217 = vpop.f32.mrb[0].mxu0
        %v3218 = vadd.f32 0.0, %v3217
        %v3219 = vpop.f32.mrb[0].mxu0
        %3220 = vdwg.mxu0
        %3221 = vrot.lane.b32.xlu0 %v504, 40
        %v3222 = vpop.permute.xlu0 %3221
        %v3224 = vsel %vm797, %v3141, 0
        %v3226 = vsel %vm801, %v3222, 0
        %3228 = vmatprep.subr.mxu0 0.0
        %3229 = vmatpush1.msra.mxu0 %v3226
        %3230 = vmatprep.subr.mxu0 0.0
        %3231 = vmatpush1.msra.mxu0 0.0
        %3232 = vmatprep.subr.mxu0 0.0
        %3233 = vmatpush1.msra.mxu0 0.0
        %3234 = vmatprep.subr.mxu0 0.0
        %3235 = vmatpush1.msra.mxu0 0.0
        %3236 = vmatprep.subr.mxu0 0.0
        %3237 = vmatpush1.msra.mxu0 0.0
        %3238 = vmatprep.subr.mxu0 0.0
        %3239 = vmatpush1.msra.mxu0 0.0
        %3240 = vmatprep.subr.mxu0 0.0
        %3241 = vmatpush1.msra.mxu0 0.0
        %3242 = vmatprep.subr.mxu0 0.0
        %3243 = vmatpush1.msra.mxu0 0.0
        %3244 = vmatprep.subr.mxu0 0.0
        %3245 = vmatpush1.msra.mxu0 0.0
        %3246 = vmatprep.subr.mxu0 0.0
        %3247 = vmatpush1.msra.mxu0 0.0
        %3248 = vmatprep.subr.mxu0 0.0
        %3249 = vmatpush1.msra.mxu0 0.0
        %3250 = vmatprep.subr.mxu0 0.0
        %3251 = vmatpush1.msra.mxu0 0.0
        %3252 = vmatprep.subr.mxu0 0.0
        %3253 = vmatpush1.msra.mxu0 0.0
        %3254 = vmatprep.subr.mxu0 0.0
        %3255 = vmatpush1.msra.mxu0 0.0
        %3256 = vmatprep.subr.mxu0 0.0
        %3257 = vmatpush1.msra.mxu0 0.0
        %3258 = vmatprep.subr.mxu0 0.0
        %3259 = vmatpush1.msra.mxu0 0.0
        %3260 = vmatprep.subr.mxu0 0.0
        %3261 = vmatpush1.msra.mxu0 0.0
        %3262 = vmatprep.subr.mxu0 0.0
        %3263 = vmatpush1.msra.mxu0 0.0
        %3264 = vmatprep.subr.mxu0 0.0
        %3265 = vmatpush1.msra.mxu0 0.0
        %3266 = vmatprep.subr.mxu0 0.0
        %3267 = vmatpush1.msra.mxu0 0.0
        %3268 = vmatprep.subr.mxu0 0.0
        %3269 = vmatpush1.msra.mxu0 0.0
        %3270 = vmatprep.subr.mxu0 0.0
        %3271 = vmatpush1.msra.mxu0 0.0
        %3272 = vmatprep.subr.mxu0 0.0
        %3273 = vmatpush1.msra.mxu0 0.0
        %3274 = vmatprep.subr.mxu0 0.0
        %3275 = vmatpush1.msra.mxu0 0.0
        %3276 = vmatprep.subr.mxu0 0.0
        %3277 = vmatpush1.msra.mxu0 0.0
        %3278 = vmatprep.subr.mxu0 0.0
        %3279 = vmatpush1.msra.mxu0 0.0
        %3280 = vmatprep.subr.mxu0 0.0
        %3281 = vmatpush1.msra.mxu0 0.0
        %3282 = vmatprep.subr.mxu0 0.0
        %3283 = vmatpush1.msra.mxu0 0.0
        %3284 = vmatprep.subr.mxu0 0.0
        %3285 = vmatpush1.msra.mxu0 0.0
        %3286 = vmatprep.subr.mxu0 0.0
        %3287 = vmatpush1.msra.mxu0 0.0
        %3288 = vmatprep.subr.mxu0 0.0
        %3289 = vmatpush1.msra.mxu0 0.0
        %3290 = vmatprep.subr.mxu0 0.0
        %3291 = vmatpush1.msra.mxu0 0.0
        %3292 = vmatprep.mubr.f32.mxu0 0.0
        %3293 = vmatmul.mubr.f32.gmra.mrb[0].mxu0 %v3224
        %v3294 = vpop.f32.mrb[0].mxu0
        %v3295 = vadd.f32 0.0, %v3294
        %v3296 = vpop.f32.mrb[0].mxu0
        %3297 = vdwg.mxu0
        %3298 = vrot.lane.b32.xlu0 %v588, 40
        %v3299 = vpop.permute.xlu0 %3298
        %v3301 = vsel %vm797, %v3142, 0
        %v3303 = vsel %vm801, %v3299, 0
        %3305 = vmatprep.subr.mxu0 0.0
        %3306 = vmatpush1.msra.mxu0 %v3303
        %3307 = vmatprep.subr.mxu0 0.0
        %3308 = vmatpush1.msra.mxu0 0.0
        %3309 = vmatprep.subr.mxu0 0.0
        %3310 = vmatpush1.msra.mxu0 0.0
        %3311 = vmatprep.subr.mxu0 0.0
        %3312 = vmatpush1.msra.mxu0 0.0
        %3313 = vmatprep.subr.mxu0 0.0
        %3314 = vmatpush1.msra.mxu0 0.0
        %3315 = vmatprep.subr.mxu0 0.0
        %3316 = vmatpush1.msra.mxu0 0.0
        %3317 = vmatprep.subr.mxu0 0.0
        %3318 = vmatpush1.msra.mxu0 0.0
        %3319 = vmatprep.subr.mxu0 0.0
        %3320 = vmatpush1.msra.mxu0 0.0
        %3321 = vmatprep.subr.mxu0 0.0
        %3322 = vmatpush1.msra.mxu0 0.0
        %3323 = vmatprep.subr.mxu0 0.0
        %3324 = vmatpush1.msra.mxu0 0.0
        %3325 = vmatprep.subr.mxu0 0.0
        %3326 = vmatpush1.msra.mxu0 0.0
        %3327 = vmatprep.subr.mxu0 0.0
        %3328 = vmatpush1.msra.mxu0 0.0
        %3329 = vmatprep.subr.mxu0 0.0
        %3330 = vmatpush1.msra.mxu0 0.0
        %3331 = vmatprep.subr.mxu0 0.0
        %3332 = vmatpush1.msra.mxu0 0.0
        %3333 = vmatprep.subr.mxu0 0.0
        %3334 = vmatpush1.msra.mxu0 0.0
        %3335 = vmatprep.subr.mxu0 0.0
        %3336 = vmatpush1.msra.mxu0 0.0
        %3337 = vmatprep.subr.mxu0 0.0
        %3338 = vmatpush1.msra.mxu0 0.0
        %3339 = vmatprep.subr.mxu0 0.0
        %3340 = vmatpush1.msra.mxu0 0.0
        %3341 = vmatprep.subr.mxu0 0.0
        %3342 = vmatpush1.msra.mxu0 0.0
        %3343 = vmatprep.subr.mxu0 0.0
        %3344 = vmatpush1.msra.mxu0 0.0
        %3345 = vmatprep.subr.mxu0 0.0
        %3346 = vmatpush1.msra.mxu0 0.0
        %3347 = vmatprep.subr.mxu0 0.0
        %3348 = vmatpush1.msra.mxu0 0.0
        %3349 = vmatprep.subr.mxu0 0.0
        %3350 = vmatpush1.msra.mxu0 0.0
        %3351 = vmatprep.subr.mxu0 0.0
        %3352 = vmatpush1.msra.mxu0 0.0
        %3353 = vmatprep.subr.mxu0 0.0
        %3354 = vmatpush1.msra.mxu0 0.0
        %3355 = vmatprep.subr.mxu0 0.0
        %3356 = vmatpush1.msra.mxu0 0.0
        %3357 = vmatprep.subr.mxu0 0.0
        %3358 = vmatpush1.msra.mxu0 0.0
        %3359 = vmatprep.subr.mxu0 0.0
        %3360 = vmatpush1.msra.mxu0 0.0
        %3361 = vmatprep.subr.mxu0 0.0
        %3362 = vmatpush1.msra.mxu0 0.0
        %3363 = vmatprep.subr.mxu0 0.0
        %3364 = vmatpush1.msra.mxu0 0.0
        %3365 = vmatprep.subr.mxu0 0.0
        %3366 = vmatpush1.msra.mxu0 0.0
        %3367 = vmatprep.subr.mxu0 0.0
        %3368 = vmatpush1.msra.mxu0 0.0
        %3369 = vmatprep.mubr.f32.mxu0 0.0
        %3370 = vmatmul.mubr.f32.gmra.mrb[0].mxu0 %v3301
        %v3371 = vpop.f32.mrb[0].mxu0
        %v3372 = vadd.f32 0.0, %v3371
        %v3373 = vpop.f32.mrb[0].mxu0
        %3374 = vdwg.mxu0
        %3375 = vrot.lane.b32.xlu0 %v672, 40
        %v3376 = vpop.permute.xlu0 %3375
        %v3378 = vsel %vm797, %v3143, 0
        %v3380 = vsel %vm801, %v3376, 0
        %3382 = vmatprep.subr.mxu0 0.0
        %3383 = vmatpush1.msra.mxu0 %v3380
        %3384 = vmatprep.subr.mxu0 0.0
        %3385 = vmatpush1.msra.mxu0 0.0
        %3386 = vmatprep.subr.mxu0 0.0
        %3387 = vmatpush1.msra.mxu0 0.0
        %3388 = vmatprep.subr.mxu0 0.0
        %3389 = vmatpush1.msra.mxu0 0.0
        %3390 = vmatprep.subr.mxu0 0.0
        %3391 = vmatpush1.msra.mxu0 0.0
        %3392 = vmatprep.subr.mxu0 0.0
        %3393 = vmatpush1.msra.mxu0 0.0
        %3394 = vmatprep.subr.mxu0 0.0
        %3395 = vmatpush1.msra.mxu0 0.0
        %3396 = vmatprep.subr.mxu0 0.0
        %3397 = vmatpush1.msra.mxu0 0.0
        %3398 = vmatprep.subr.mxu0 0.0
        %3399 = vmatpush1.msra.mxu0 0.0
        %3400 = vmatprep.subr.mxu0 0.0
        %3401 = vmatpush1.msra.mxu0 0.0
        %3402 = vmatprep.subr.mxu0 0.0
        %3403 = vmatpush1.msra.mxu0 0.0
        %3404 = vmatprep.subr.mxu0 0.0
        %3405 = vmatpush1.msra.mxu0 0.0
        %3406 = vmatprep.subr.mxu0 0.0
        %3407 = vmatpush1.msra.mxu0 0.0
        %3408 = vmatprep.subr.mxu0 0.0
        %3409 = vmatpush1.msra.mxu0 0.0
        %3410 = vmatprep.subr.mxu0 0.0
        %3411 = vmatpush1.msra.mxu0 0.0
        %3412 = vmatprep.subr.mxu0 0.0
        %3413 = vmatpush1.msra.mxu0 0.0
        %3414 = vmatprep.subr.mxu0 0.0
        %3415 = vmatpush1.msra.mxu0 0.0
        %3416 = vmatprep.subr.mxu0 0.0
        %3417 = vmatpush1.msra.mxu0 0.0
        %3418 = vmatprep.subr.mxu0 0.0
        %3419 = vmatpush1.msra.mxu0 0.0
        %3420 = vmatprep.subr.mxu0 0.0
        %3421 = vmatpush1.msra.mxu0 0.0
        %3422 = vmatprep.subr.mxu0 0.0
        %3423 = vmatpush1.msra.mxu0 0.0
        %3424 = vmatprep.subr.mxu0 0.0
        %3425 = vmatpush1.msra.mxu0 0.0
        %3426 = vmatprep.subr.mxu0 0.0
        %3427 = vmatpush1.msra.mxu0 0.0
        %3428 = vmatprep.subr.mxu0 0.0
        %3429 = vmatpush1.msra.mxu0 0.0
        %3430 = vmatprep.subr.mxu0 0.0
        %3431 = vmatpush1.msra.mxu0 0.0
        %3432 = vmatprep.subr.mxu0 0.0
        %3433 = vmatpush1.msra.mxu0 0.0
        %3434 = vmatprep.subr.mxu0 0.0
        %3435 = vmatpush1.msra.mxu0 0.0
        %3436 = vmatprep.subr.mxu0 0.0
        %3437 = vmatpush1.msra.mxu0 0.0
        %3438 = vmatprep.subr.mxu0 0.0
        %3439 = vmatpush1.msra.mxu0 0.0
        %3440 = vmatprep.subr.mxu0 0.0
        %3441 = vmatpush1.msra.mxu0 0.0
        %3442 = vmatprep.subr.mxu0 0.0
        %3443 = vmatpush1.msra.mxu0 0.0
        %3444 = vmatprep.subr.mxu0 0.0
        %3445 = vmatpush1.msra.mxu0 0.0
        %3446 = vmatprep.mubr.f32.mxu0 0.0
        %3447 = vmatmul.mubr.f32.gmra.mrb[0].mxu0 %v3378
        %v3448 = vpop.f32.mrb[0].mxu0
        %v3449 = vadd.f32 0.0, %v3448
        %v3450 = vpop.f32.mrb[0].mxu0
        %3451 = vdwg.mxu0
        %v3456 = vcombine.low %v3218, %v3295
        %v3457 = vcombine.low %v3372, %v3449
        %v3459 = vunpack.c.l.s4 1983009808
        %v3460 = vunpack.c.0.s8 %v3459
        %v3461 = vlaneseq
        %v3462 = vshrl.u32 %v3461, 7
        %v3463 = vsub.s32 %v3460, %v3462
        %v3464 = vrot.slane %v3456, %v3463
        %v3466 = vunpack.c.l.s4 1983009808
        %v3467 = vunpack.c.0.s8 %v3466
        %v3468 = vlaneseq
        %v3469 = vshrl.u32 %v3468, 7
        %v3470 = vsub.s32 %v3467, %v3469
        %v3471 = vrot.slane %v3457, %v3470
        %v3472 = vcombine.low %v3464, %v3471
        %v3473 = vsel %vm422, %v3472, 0
        %3475 = vmatprep.subr.mxu0 0.0
        %3476 = vmatpush1.msra.mxu0 %v412
        %3477 = vmatprep.subr.mxu0 0.0
        %3478 = vmatpush1.msra.mxu0 0.0
        %3479 = vmatprep.subr.mxu0 0.0
        %3480 = vmatpush1.msra.mxu0 0.0
        %3481 = vmatprep.subr.mxu0 0.0
        %3482 = vmatpush1.msra.mxu0 0.0
        %3483 = vmatprep.subr.mxu0 0.0
        %3484 = vmatpush1.msra.mxu0 0.0
        %3485 = vmatprep.subr.mxu0 0.0
        %3486 = vmatpush1.msra.mxu0 0.0
        %3487 = vmatprep.subr.mxu0 0.0
        %3488 = vmatpush1.msra.mxu0 0.0
        %3489 = vmatprep.subr.mxu0 0.0
        %3490 = vmatpush1.msra.mxu0 0.0
        %3491 = vmatprep.subr.mxu0 0.0
        %3492 = vmatpush1.msra.mxu0 0.0
        %3493 = vmatprep.subr.mxu0 0.0
        %3494 = vmatpush1.msra.mxu0 0.0
        %3495 = vmatprep.subr.mxu0 0.0
        %3496 = vmatpush1.msra.mxu0 0.0
        %3497 = vmatprep.subr.mxu0 0.0
        %3498 = vmatpush1.msra.mxu0 0.0
        %3499 = vmatprep.subr.mxu0 0.0
        %3500 = vmatpush1.msra.mxu0 0.0
        %3501 = vmatprep.subr.mxu0 0.0
        %3502 = vmatpush1.msra.mxu0 0.0
        %3503 = vmatprep.subr.mxu0 0.0
        %3504 = vmatpush1.msra.mxu0 0.0
        %3505 = vmatprep.subr.mxu0 0.0
        %3506 = vmatpush1.msra.mxu0 0.0
        %3507 = vmatprep.subr.mxu0 0.0
        %3508 = vmatpush1.msra.mxu0 0.0
        %3509 = vmatprep.subr.mxu0 0.0
        %3510 = vmatpush1.msra.mxu0 0.0
        %3511 = vmatprep.subr.mxu0 0.0
        %3512 = vmatpush1.msra.mxu0 0.0
        %3513 = vmatprep.subr.mxu0 0.0
        %3514 = vmatpush1.msra.mxu0 0.0
        %3515 = vmatprep.subr.mxu0 0.0
        %3516 = vmatpush1.msra.mxu0 0.0
        %3517 = vmatprep.subr.mxu0 0.0
        %3518 = vmatpush1.msra.mxu0 0.0
        %3519 = vmatprep.subr.mxu0 0.0
        %3520 = vmatpush1.msra.mxu0 0.0
        %3521 = vmatprep.subr.mxu0 0.0
        %3522 = vmatpush1.msra.mxu0 0.0
        %3523 = vmatprep.subr.mxu0 0.0
        %3524 = vmatpush1.msra.mxu0 0.0
        %3525 = vmatprep.subr.mxu0 0.0
        %3526 = vmatpush1.msra.mxu0 0.0
        %3527 = vmatprep.subr.mxu0 0.0
        %3528 = vmatpush1.msra.mxu0 0.0
        %3529 = vmatprep.subr.mxu0 0.0
        %3530 = vmatpush1.msra.mxu0 0.0
        %3531 = vmatprep.subr.mxu0 0.0
        %3532 = vmatpush1.msra.mxu0 0.0
        %3533 = vmatprep.subr.mxu0 0.0
        %3534 = vmatpush1.msra.mxu0 0.0
        %3535 = vmatprep.subr.mxu0 0.0
        %3536 = vmatpush1.msra.mxu0 0.0
        %3537 = vmatprep.subr.mxu0 0.0
        %3538 = vmatpush1.msra.mxu0 0.0
        %3539 = vmatprep.mubr.f32.mxu0 0.0
        %3540 = vmatmul.mubr.f32.gmra.mrb[0].mxu0 %v3473
        %v3541 = vpop.f32.mrb[0].mxu0
        %v3542 = vadd.f32 0.0, %v3541
        %v3543 = vpop.f32.mrb[0].mxu0
        %3544 = vdwg.mxu0
        %v3546 = vcombine.high %v3542, %v3542
        %v3548 = vunpack.c.l.s4 1983009808
        %v3549 = vunpack.c.0.s8 %v3548
        %v3550 = vlaneseq
        %v3551 = vshrl.u32 %v3550, 7
        %v3552 = vsub.s32 %v3549, %v3551
        %v3553 = vrot.slane %v3542, %v3552
        %v3555 = vunpack.c.l.s4 1983009808
        %v3556 = vunpack.c.0.s8 %v3555
        %v3557 = vlaneseq
        %v3558 = vshrl.u32 %v3557, 7
        %v3559 = vsub.s32 %v3556, %v3558
        %v3560 = vrot.slane %v3546, %v3559
        %v3561 = vcombine.high %v3553, %v3553
        %v3562 = vcombine.high %v3560, %v3560
        %v3567 = vadd.f32 %v2784, %v3553
        %v3568 = vadd.f32 %v2785, %v3561
        %v3569 = vadd.f32 %v2786, %v3560
        %v3570 = vadd.f32 %v2787, %v3562
        %v3571 = vld [vmem:[%s4] sm:$0x1]
        %v3573 = vlaneseq
        %v3574 = vshrl.u32 %v3573, 7
        %v3575 = vsub.s32 0, %v3574
        %v3576 = vrot.slane %v3571, %v3575
        %v3578 = vadd.f32 %v3567, %v3576
        %v3579 = vadd.f32 %v3568, %v3576
        %v3580 = vadd.f32 %v3569, %v3576
        %v3581 = vadd.f32 %v3570, %v3576
        %vm3582 = vcmask 254976
        %3583 = vst.msk [vmem:[%s271] sm:$0x3] %vm3582, %v3578
        %3584 = vst.msk [vmem:[%s271 + $0x2] sm:$0x3] %vm3582, %v3579
        %3585 = vst.msk [vmem:[%s271 + $0x4] sm:$0x3] %vm3582, %v3580
        %3586 = vst.msk [vmem:[%s271 + $0x6] sm:$0x3] %vm3582, %v3581
        %s3587 = sand.u32 %s141, 1
        %s3588 = scalar_lea.sflag [#allocation4], %s3587
        %s3589 = sand.u32 %s141, 1
        %s3590 = smul.addr %s3589, 8
        %s3591 = scalar_lea.vmem [#allocation8], %s3590
        // Predicated region
        $region53: #{tpu_custom_call.1} parent=39 // pred_check
          %p3592 = pneg %p151
        $region54: #{tpu_custom_call.1} parent=39 // pred_check_branch
          %3594 = sbr.rel (%p3592) target = $region56
        $region55: #{tpu_custom_call.1} parent=39 // pred_region
          %s3595 = smul.u32 4, %s23
          %s3597 = ssub.s32 128, 128
          %3598 = vsyncadd %s3588, %s3597
          %s3599 = smul.addr %s3595, 32
          %s3600 = scalar_lea.hbm %s5, %s3599
          %s3601 = sshll.u32 %s3591, 4
          %s3602 = int_to_ptr.vmem [resolvable:$true] %s3601
          %3607 = dma.vmem_to_hbm [thread:$0]  %s3602, 128, %s3600, %s3588, 32, 32, 2
        $region56: #{tpu_custom_call.1} parent=39 // pred_fallthru
          _
      $region40: #{tpu_custom_call.1} parent=5 // pred_fallthru
        _
      %p3608 = scmp.le.s32.totalorder 2, %s18
      // Predicated region
      $region57: #{tpu_custom_call.1} parent=5 // pred_check
        %p3609 = pneg %p3608
      $region58: #{tpu_custom_call.1} parent=5 // pred_check_branch
        %3611 = sbr.rel (%p3609) target = $region60
      $region59: #{tpu_custom_call.1} parent=5 // pred_region
        %s3612 = ssub.s32 %s18, 2
        // Predicated region
        $region61: #{tpu_custom_call.1} parent=59 // pred_check
          %p3613 = pneg %p157
        $region62: #{tpu_custom_call.1} parent=59 // pred_check_branch
          %3615 = sbr.rel (%p3613) target = $region64
        $region63: #{tpu_custom_call.1} parent=59 // pred_region
          %s3616 = sand.u32 %s142, 1
          %s3617 = scalar_lea.sflag [#allocation4], %s3616
          %s3618 = sand.u32 %s142, 1
          %s3619 = smul.addr %s3618, 8
          %s3620 = scalar_lea.vmem [#allocation8], %s3619
          %3621 = dma.done %s3617, 128
        $region64: #{tpu_custom_call.1} parent=59 // pred_fallthru
          _
      $region60: #{tpu_custom_call.1} parent=5 // pred_fallthru
        _
    $region6: #{tpu_custom_call.1} parent=1 // loop_footer
      %s22 = sadd.s32 1, %s18
    $region7: #{tpu_custom_call.1} parent=1 // loop_footer_branch
      %17 = sbr.rel target = $region3
    $region8: #{tpu_custom_call.1} parent=1 // loop_exit
      _
    %3622 = vsyncpa [#allocation3], 1
    %s3623 = scalar_lea.sflag [#allocation3], 1
    %3624 = vsyncpa %s3623, 1
    %3625 = vsyncpa [#allocation6], 1
    %3626 = vsyncpa [#allocation4], 1
    %s3627 = scalar_lea.sflag [#allocation4], 1
    %3628 = vsyncpa %s3627, 1

</llo_original>
